<compile_context>
chip_gen: v7x
topology: tpu7x:2x2x1
jax: 0.10.0
libtpu: 0.0.40
codegen_flags: <defaults>
</compile_context>

<pallas_src>
import functools

import jax
import jax.numpy as jnp
from jax import lax
from jax.experimental import pallas as pl
from jax.experimental.pallas import tpu as pltpu


def _batch_block(B):
    """Batch rows per grid step.

    Multiple of 8 (sublane rule) when possible, grown well past 8 so the serial
    LSTM recurrence feeds the MXU with many rows, while keeping >= 2 grid steps
    (when B allows) so the ("parallel",) axis can shard across v7x's two TCs.
    """
    if B <= 8 or B % 8 != 0:
        return B
    best = 8
    cap = min(B // 2, 64)          # >= 2 grid steps, bounded VMEM footprint
    for bb in range(8, cap + 1, 8):
        if B % bb == 0:
            best = bb
    return best


# --------------------------------------------------------------------------
# Fused kernel: BiLSTM -> self-attention + label-attention + fusion + head
# --------------------------------------------------------------------------
def _fused_lsan_kernel(
    emb_ref,                                   # (Bb, T, E)  bf16
    wih_f_ref, whh_f_ref, b_f_ref,             # (E,4H) bf16, (H,4H) bf16, (1,4H) f32
    wih_r_ref, whh_r_ref, b_r_ref,
    h0f_ref, c0f_ref, h0r_ref, c0r_ref,        # (Bb, H) f32
    label_ref,                                 # (H, C)   bf16  (label_embed^T)
    w1_ref, b1_ref,                            # (2H,d_a) bf16, (1,d_a) f32
    w2_ref, b2_ref,                            # (d_a,C)  bf16, (1,C)   f32
    wt1_ref, bt1_ref,                          # (1,2H) f32, (1,1) f32
    wt2_ref, bt2_ref,
    wo_ref, bo_ref,                            # (2H,C) bf16, (1,C) f32
    pred_ref,                                  # (Bb, C)    f32  out
    ww_ref,                                    # (Bb, C, T) f32  out
    gin_f_ref, gin_r_ref,                      # (T, Bb, 4H) f32 scratch
    hf_seq_ref, hr_seq_ref,                    # (T, Bb, H)  f32 scratch
):
    f32 = jnp.float32
    bf16 = jnp.bfloat16
    Bb, T, E = emb_ref.shape
    H = h0f_ref.shape[-1]
    C = pred_ref.shape[-1]

    whh_f = whh_f_ref[...]
    whh_r = whh_r_ref[...]

    # ---- Hoisted input projections: one tall (T*Bb, E) @ (E, 4H) matmul per
    # direction, written contiguously into the time-major scratch (off the
    # serial critical path; no per-b strided stores).
    x_flat = pltpu.einshape("bte->tbe", emb_ref[...]).reshape(T * Bb, E)
    gin_f_ref[...] = (jnp.dot(x_flat, wih_f_ref[...], preferred_element_type=f32)
                      .reshape(T, Bb, 4 * H) + b_f_ref[...])
    gin_r_ref[...] = (jnp.dot(x_flat, wih_r_ref[...], preferred_element_type=f32)
                      .reshape(T, Bb, 4 * H) + b_r_ref[...])

    def lstm_gates(g, c):
        # TODO(synk): gate slices sit at H-sized lane offsets; pad H to a
        # multiple of 128 at param-prep time for production sizes so they are
        # lane-aligned (H=32 in this smoke test).
        i = jax.nn.sigmoid(g[:, 0 * H:1 * H])
        f = jax.nn.sigmoid(g[:, 1 * H:2 * H])
        gg = jnp.tanh(g[:, 2 * H:3 * H])
        o = jax.nn.sigmoid(g[:, 3 * H:4 * H])
        c_new = f * c + i * gg
        h_new = o * jnp.tanh(c_new)
        return h_new, c_new

    # ---- Interleaved forward / reverse recurrences (independent chains hide
    # MXU result latency). bf16 MXU operands, f32 carries / state.
    def step(t, carry):
        hf, cf, hr, cr = carry
        tr = T - 1 - t
        gf = gin_f_ref[t] + jnp.dot(hf.astype(bf16), whh_f,
                                    preferred_element_type=f32)
        gr = gin_r_ref[tr] + jnp.dot(hr.astype(bf16), whh_r,
                                     preferred_element_type=f32)
        hf, cf = lstm_gates(gf, cf)
        hr, cr = lstm_gates(gr, cr)
        hf_seq_ref[t] = hf
        hr_seq_ref[tr] = hr
        return hf, cf, hr, cr

    # Partial unroll once T is production-sized; full unroll for short T.
    lax.fori_loop(0, T, step,
                  (h0f_ref[...], c0f_ref[...], h0r_ref[...], c0r_ref[...]),
                  unroll=(True if T <= 16 else 8))

    # ---- Attention head, fused: the LSTM output never leaves VMEM.
    # One XLU relayout per direction instead of per-b strided copies.
    hf_bth = pltpu.einshape("tbh->bth", hf_seq_ref[...]).astype(bf16)  # (Bb,T,H)
    hr_bth = pltpu.einshape("tbh->bth", hr_seq_ref[...]).astype(bf16)
    out_bth = jnp.concatenate([hf_bth, hr_bth], axis=-1)               # (Bb,T,2H)
    out_flat = out_bth.reshape(Bb * T, 2 * H)

    # self attention: tanh(linear_first) -> linear_second -> softmax over T.
    # Shared weights are plain matmul RHS (no broadcast_to / batched pushes).
    a_flat = jnp.tanh(jnp.dot(out_flat, w1_ref[...], preferred_element_type=f32)
                      + b1_ref[...])                                    # (Bb*T,d_a)
    s_flat = jnp.dot(a_flat.astype(bf16), w2_ref[...],
                     preferred_element_type=f32) + b2_ref[...]          # (Bb*T,C)
    s_bct = pltpu.einshape("btc->bct", s_flat.reshape(Bb, T, C))        # (Bb,C,T)
    s_bct = s_bct - jnp.max(s_bct, axis=-1, keepdims=True)
    e = jnp.exp(s_bct)
    sm = e * pl.reciprocal(jnp.sum(e, axis=-1, keepdims=True), approx=True)
    self_att = jnp.einsum('bct,bth->bch', sm.astype(bf16), out_bth,
                          preferred_element_type=f32)                   # (Bb,C,2H)

    # label attention (reconstructed canonical LSAN branch).
    m1_flat = jnp.dot(hf_bth.reshape(Bb * T, H), label_ref[...],
                      preferred_element_type=f32)                       # (Bb*T,C)
    m2_flat = jnp.dot(hr_bth.reshape(Bb * T, H), label_ref[...],
                      preferred_element_type=f32)
    m1 = pltpu.einshape("btc->bct", m1_flat.reshape(Bb, T, C))          # (Bb,C,T)
    m2 = pltpu.einshape("btc->bct", m2_flat.reshape(Bb, T, C))
    label_att = jnp.concatenate(
        [jnp.einsum('bct,bth->bch', m1.astype(bf16), hf_bth,
                    preferred_element_type=f32),
         jnp.einsum('bct,bth->bch', m2.astype(bf16), hr_bth,
                    preferred_element_type=f32)],
        axis=-1)                                                        # (Bb,C,2H)

    # adaptive fusion gates (weight1 / weight2): VPU dot + EUP reciprocal.
    g1 = jax.nn.sigmoid(jnp.sum(label_att * wt1_ref[...], axis=-1, keepdims=True)
                        + bt1_ref[...])                                 # (Bb,C,1)
    g2 = jax.nn.sigmoid(jnp.sum(self_att * wt2_ref[...], axis=-1, keepdims=True)
                        + bt2_ref[...])
    w1n = g1 * pl.reciprocal(g1 + g2, approx=True)
    w2n = 1.0 - w1n
    doc = w1n * label_att + w2n * self_att                              # (Bb,C,2H)
    avg = jnp.sum(doc, axis=1) * (1.0 / C)                              # (Bb,2H)

    pred_ref[...] = jax.nn.sigmoid(
        jnp.dot(avg.astype(bf16), wo_ref[...], preferred_element_type=f32)
        + bo_ref[...])                                                  # (Bb,C)
    # TODO(synk): `ww = selfatt + w2` uses an undefined `w2` in the reference
    # forward; interpreted as the normalized weight2 gate broadcast over T.
    # TODO(synk): pad T to a multiple of 128 at production sizes so this
    # writeback stays lane-dense (masked vst otherwise).
    ww_ref[...] = sm + w2n


def lsan_forward_fused(emb, prep, h0, c0):
    """emb: (B, T, E) bf16; h0/c0: (2, B, H) f32. Returns pred (B,C), ww (B,C,T)."""
    B, T, E = emb.shape
    H = h0.shape[-1]
    C = prep["bo"].shape[-1]
    Bb = _batch_block(B)

    def full(a):
        return pl.BlockSpec(a.shape, lambda b: (0,) * a.ndim)

    state_spec = pl.BlockSpec((Bb, H), lambda b: (b, 0))

    pred, ww = pl.pallas_call(
        _fused_lsan_kernel,
        grid=(B // Bb,),
        out_shape=(jax.ShapeDtypeStruct((B, C), jnp.float32),
                   jax.ShapeDtypeStruct((B, C, T), jnp.float32)),
        in_specs=[
            pl.BlockSpec((Bb, T, E), lambda b: (b, 0, 0)),
            full(prep["wih_f"]), full(prep["whh_f"]), full(prep["b_f"]),
            full(prep["wih_r"]), full(prep["whh_r"]), full(prep["b_r"]),
            state_spec, state_spec, state_spec, state_spec,
            full(prep["label_hc"]),
            full(prep["w1"]), full(prep["b1"]),
            full(prep["w2"]), full(prep["b2"]),
            full(prep["wt1"]), full(prep["bt1"]),
            full(prep["wt2"]), full(prep["bt2"]),
            full(prep["wo"]), full(prep["bo"]),
        ],
        out_specs=(pl.BlockSpec((Bb, C), lambda b: (b, 0)),
                   pl.BlockSpec((Bb, C, T), lambda b: (b, 0, 0))),
        scratch_shapes=[
            pltpu.VMEM((T, Bb, 4 * H), jnp.float32),   # gin_f
            pltpu.VMEM((T, Bb, 4 * H), jnp.float32),   # gin_r
            pltpu.VMEM((T, Bb, H), jnp.float32),       # hf_seq (bf16 option for v7x)
            pltpu.VMEM((T, Bb, H), jnp.float32),       # hr_seq
        ],
        compiler_params=pltpu.CompilerParams(
            dimension_semantics=("parallel",),
            vmem_limit_bytes=64 * 1024 * 1024),
    )(emb,
      prep["wih_f"], prep["whh_f"], prep["b_f"],
      prep["wih_r"], prep["whh_r"], prep["b_r"],
      h0[0], c0[0], h0[1], c0[1],
      prep["label_hc"],
      prep["w1"], prep["b1"], prep["w2"], prep["b2"],
      prep["wt1"], prep["bt1"], prep["wt2"], prep["bt2"],
      prep["wo"], prep["bo"])
    return pred, ww


# --------------------------------------------------------------------------
# Full forward
# --------------------------------------------------------------------------
def structured_self_attention_forward(x, prep, h0, c0, n_classes):
    # Embedding lookup (vocab-sized dynamic gather has no clean Pallas form;
    # done with XLA). Table is already bf16 -> gather reads half the HBM bytes.
    emb = jnp.take(prep["emb_table"], x, axis=0)          # (B, T, E) bf16
    # embedding_dropout(p=0.3): identity at inference time.
    del n_classes  # implied by the parameter shapes
    return lsan_forward_fused(emb, prep, h0, c0)


# --------------------------------------------------------------------------
# Parameter construction + one-time (outside jit) kernel-layout prep
# --------------------------------------------------------------------------
def make_params(key, vocab, embed_dim, lstm_hid_dim, d_a, n_classes):
    keys = jax.random.split(key, 20)
    H, E, C = lstm_hid_dim, embed_dim, n_classes
    s = 0.1
    return {
        "embeddings": jax.random.normal(keys[0], (vocab, E), jnp.float32) * s,
        "label_embed": jax.random.normal(keys[1], (C, H), jnp.float32) * s,
        # LSTM (gate order i, f, g, o), stored pre-transposed for x @ W; single
        # combined bias per direction (b_ih + b_hh folded).
        "wih_f": jax.random.normal(keys[2], (E, 4 * H), jnp.float32) * s,
        "whh_f": jax.random.normal(keys[3], (H, 4 * H), jnp.float32) * s,
        "b_f": jax.random.normal(keys[4], (1, 4 * H), jnp.float32) * s,
        "wih_r": jax.random.normal(keys[5], (E, 4 * H), jnp.float32) * s,
        "whh_r": jax.random.normal(keys[6], (H, 4 * H), jnp.float32) * s,
        "b_r": jax.random.normal(keys[7], (1, 4 * H), jnp.float32) * s,
        # linear_first / linear_second
        "w1": jax.random.normal(keys[8], (2 * H, d_a), jnp.float32) * s,
        "b1": jax.random.normal(keys[9], (1, d_a), jnp.float32) * s,
        "w2": jax.random.normal(keys[10], (d_a, C), jnp.float32) * s,
        "b2": jax.random.normal(keys[11], (1, C), jnp.float32) * s,
        # weight1 / weight2 (Linear(2H, 1))
        "wt1": jax.random.normal(keys[12], (2 * H, 1), jnp.float32) * s,
        "bt1": jax.random.normal(keys[13], (1, 1), jnp.float32) * s,
        "wt2": jax.random.normal(keys[14], (2 * H, 1), jnp.float32) * s,
        "bt2": jax.random.normal(keys[15], (1, 1), jnp.float32) * s,
        # output_layer
        "wo": jax.random.normal(keys[16], (2 * H, C), jnp.float32) * s,
        "bo": jax.random.normal(keys[17], (1, C), jnp.float32) * s,
    }


def prepare_params(p):
    """One-time prep OUTSIDE jit: bf16 MXU operands / embedding table, fused
    layouts (label^T, weight1^T, weight2^T). Biases stay f32."""
    bf16 = jnp.bfloat16
    return {
        "emb_table": p["embeddings"].astype(bf16),
        "wih_f": p["wih_f"].astype(bf16), "whh_f": p["whh_f"].astype(bf16),
        "b_f": p["b_f"],
        "wih_r": p["wih_r"].astype(bf16), "whh_r": p["whh_r"].astype(bf16),
        "b_r": p["b_r"],
        "label_hc": p["label_embed"].T.astype(bf16),       # (H, C)
        "w1": p["w1"].astype(bf16), "b1": p["b1"],
        "w2": p["w2"].astype(bf16), "b2": p["b2"],
        "wt1": p["wt1"].T, "bt1": p["bt1"],                 # (1, 2H)
        "wt2": p["wt2"].T, "bt2": p["bt2"],
        "wo": p["wo"].astype(bf16), "bo": p["bo"],
    }


if __name__ == "__main__":
    B, T, V, E = 2, 8, 50, 300
    H, d_a, C = 32, 16, 4

    root = jax.random.PRNGKey(0)
    k_par, k_x, k_h0, k_c0 = jax.random.split(root, 4)

    raw_params = make_params(k_par, V, E, H, d_a, C)
    prep = prepare_params(raw_params)

    x = jax.random.randint(k_x, (B, T), 0, V, dtype=jnp.int32)
    # init_hidden(): deterministic stand-in for torch.randn(2, B, H)
    h0 = jax.random.normal(k_h0, (2, B, H), jnp.float32)
    c0 = jax.random.normal(k_c0, (2, B, H), jnp.float32)

    fwd = jax.jit(functools.partial(structured_self_attention_forward, n_classes=C))
    pred, ww = fwd(x, prep, h0, c0)
    pred, ww = jax.block_until_ready((pred, ww))

    assert pred.shape == (B, C) and pred.dtype == jnp.float32
    assert ww.shape == (B, C, T) and ww.dtype == jnp.float32
    assert bool(jnp.all(jnp.isfinite(pred))) and bool(jnp.all(jnp.isfinite(ww)))
    print("KERNEL_OK")
</pallas_src>

<mosaic_0001>
module attributes {stable_mosaic.version = 11 : i64} {
  func.func @_fused_lsan_kernel(%arg0: i32, %arg1: memref<2x8x300xbf16, #tpu.memory_space<vmem>>, %arg2: memref<300x128xbf16, #tpu.memory_space<vmem>>, %arg3: memref<32x128xbf16, #tpu.memory_space<vmem>>, %arg4: memref<1x128xf32, #tpu.memory_space<vmem>>, %arg5: memref<300x128xbf16, #tpu.memory_space<vmem>>, %arg6: memref<32x128xbf16, #tpu.memory_space<vmem>>, %arg7: memref<1x128xf32, #tpu.memory_space<vmem>>, %arg8: memref<2x32xf32, #tpu.memory_space<vmem>>, %arg9: memref<2x32xf32, #tpu.memory_space<vmem>>, %arg10: memref<2x32xf32, #tpu.memory_space<vmem>>, %arg11: memref<2x32xf32, #tpu.memory_space<vmem>>, %arg12: memref<32x4xbf16, #tpu.memory_space<vmem>>, %arg13: memref<64x16xbf16, #tpu.memory_space<vmem>>, %arg14: memref<1x16xf32, #tpu.memory_space<vmem>>, %arg15: memref<16x4xbf16, #tpu.memory_space<vmem>>, %arg16: memref<1x4xf32, #tpu.memory_space<vmem>>, %arg17: memref<1x64xf32, #tpu.memory_space<vmem>>, %arg18: memref<1x1xf32, #tpu.memory_space<vmem>>, %arg19: memref<1x64xf32, #tpu.memory_space<vmem>>, %arg20: memref<1x1xf32, #tpu.memory_space<vmem>>, %arg21: memref<64x4xbf16, #tpu.memory_space<vmem>>, %arg22: memref<1x4xf32, #tpu.memory_space<vmem>>, %arg23: memref<2x4xf32, #tpu.memory_space<vmem>>, %arg24: memref<2x4x8xf32, #tpu.memory_space<vmem>>, %arg25: memref<8x2x128xf32, #tpu.memory_space<vmem>>, %arg26: memref<8x2x128xf32, #tpu.memory_space<vmem>>, %arg27: memref<8x2x32xf32, #tpu.memory_space<vmem>>, %arg28: memref<8x2x32xf32, #tpu.memory_space<vmem>>) attributes {dimension_semantics = [#tpu.dimension_semantics<parallel>], iteration_bounds = array<i64: 1>, scalar_prefetch = 0 : i64, scratch_operands = 4 : i64, tpu.core_type = #tpu.core_type<tc>, window_params = [{transform_indices = @transform_0, window_bounds = array<i64: 2, 8, 300>}, {pipeline_mode = #tpu.pipeline_mode<synchronous>, transform_indices = @transform_1, window_bounds = array<i64: 300, 128>}, {pipeline_mode = #tpu.pipeline_mode<synchronous>, transform_indices = @transform_2, window_bounds = array<i64: 32, 128>}, {pipeline_mode = #tpu.pipeline_mode<synchronous>, transform_indices = @transform_3, window_bounds = array<i64: 1, 128>}, {pipeline_mode = #tpu.pipeline_mode<synchronous>, transform_indices = @transform_4, window_bounds = array<i64: 300, 128>}, {pipeline_mode = #tpu.pipeline_mode<synchronous>, transform_indices = @transform_5, window_bounds = array<i64: 32, 128>}, {pipeline_mode = #tpu.pipeline_mode<synchronous>, transform_indices = @transform_6, window_bounds = array<i64: 1, 128>}, {transform_indices = @transform_7, window_bounds = array<i64: 2, 32>}, {transform_indices = @transform_8, window_bounds = array<i64: 2, 32>}, {transform_indices = @transform_9, window_bounds = array<i64: 2, 32>}, {transform_indices = @transform_10, window_bounds = array<i64: 2, 32>}, {pipeline_mode = #tpu.pipeline_mode<synchronous>, transform_indices = @transform_11, window_bounds = array<i64: 32, 4>}, {pipeline_mode = #tpu.pipeline_mode<synchronous>, transform_indices = @transform_12, window_bounds = array<i64: 64, 16>}, {pipeline_mode = #tpu.pipeline_mode<synchronous>, transform_indices = @transform_13, window_bounds = array<i64: 1, 16>}, {pipeline_mode = #tpu.pipeline_mode<synchronous>, transform_indices = @transform_14, window_bounds = array<i64: 16, 4>}, {pipeline_mode = #tpu.pipeline_mode<synchronous>, transform_indices = @transform_15, window_bounds = array<i64: 1, 4>}, {pipeline_mode = #tpu.pipeline_mode<synchronous>, transform_indices = @transform_16, window_bounds = array<i64: 1, 64>}, {pipeline_mode = #tpu.pipeline_mode<synchronous>, transform_indices = @transform_17, window_bounds = array<i64: 1, 1>}, {pipeline_mode = #tpu.pipeline_mode<synchronous>, transform_indices = @transform_18, window_bounds = array<i64: 1, 64>}, {pipeline_mode = #tpu.pipeline_mode<synchronous>, transform_indices = @transform_19, window_bounds = array<i64: 1, 1>}, {pipeline_mode = #tpu.pipeline_mode<synchronous>, transform_indices = @transform_20, window_bounds = array<i64: 64, 4>}, {pipeline_mode = #tpu.pipeline_mode<synchronous>, transform_indices = @transform_21, window_bounds = array<i64: 1, 4>}, {transform_indices = @transform_22, window_bounds = array<i64: 2, 4>}, {transform_indices = @transform_23, window_bounds = array<i64: 2, 4, 8>}]} {
    %c0 = arith.constant 0 : index
    %c0_0 = arith.constant 0 : index
    %0 = vector.load %arg3[%c0, %c0_0] : memref<32x128xbf16, #tpu.memory_space<vmem>>, vector<32x128xbf16>
    %c0_1 = arith.constant 0 : index
    %c0_2 = arith.constant 0 : index
    %1 = vector.load %arg6[%c0_1, %c0_2] : memref<32x128xbf16, #tpu.memory_space<vmem>>, vector<32x128xbf16>
    %c0_3 = arith.constant 0 : index
    %c0_4 = arith.constant 0 : index
    %c0_5 = arith.constant 0 : index
    %2 = vector.load %arg1[%c0_3, %c0_4, %c0_5] : memref<2x8x300xbf16, #tpu.memory_space<vmem>>, vector<2x8x300xbf16>
    %3 = tpu.transpose %2, [1, 0, 2] : vector<2x8x300xbf16> -> vector<8x2x300xbf16>
    %4 = vector.shape_cast %3 : vector<8x2x300xbf16> to vector<16x300xbf16>
    %c0_6 = arith.constant 0 : index
    %c0_7 = arith.constant 0 : index
    %5 = vector.load %arg2[%c0_6, %c0_7] : memref<300x128xbf16, #tpu.memory_space<vmem>>, vector<300x128xbf16>
    %cst = arith.constant dense<0.000000e+00> : vector<16x128xf32>
    %6 = tpu.matmul %4, %5, %cst {dimension_numbers = #tpu.dot_dimension_numbers<[1], [0], [0], [1], [0, 0, 1, 1], [], []>} : vector<16x300xbf16>, vector<300x128xbf16>, vector<16x128xf32> -> vector<16x128xf32>
    %7 = vector.shape_cast %6 : vector<16x128xf32> to vector<8x2x128xf32>
    %c0_8 = arith.constant 0 : index
    %c0_9 = arith.constant 0 : index
    %8 = vector.load %arg4[%c0_8, %c0_9] : memref<1x128xf32, #tpu.memory_space<vmem>>, vector<1x128xf32>
    %9 = vector.shape_cast %8 : vector<1x128xf32> to vector<1x1x128xf32>
    %10 = vector.broadcast %9 : vector<1x1x128xf32> to vector<8x2x128xf32>
    %11 = arith.addf %7, %10 : vector<8x2x128xf32>
    %c0_10 = arith.constant 0 : index
    %c0_11 = arith.constant 0 : index
    %c0_12 = arith.constant 0 : index
    %12 = vector.load %arg25[%c0_10, %c0_11, %c0_12] : memref<8x2x128xf32, #tpu.memory_space<vmem>>, vector<8x2x128xf32>
    tpu.vector_store %arg25[%c0_10, %c0_11, %c0_12], %11 {strides = array<i32>} : memref<8x2x128xf32, #tpu.memory_space<vmem>>, vector<8x2x128xf32>,
    %c0_13 = arith.constant 0 : index
    %c0_14 = arith.constant 0 : index
    %13 = vector.load %arg5[%c0_13, %c0_14] : memref<300x128xbf16, #tpu.memory_space<vmem>>, vector<300x128xbf16>
    %cst_15 = arith.constant dense<0.000000e+00> : vector<16x128xf32>
    %14 = tpu.matmul %4, %13, %cst_15 {dimension_numbers = #tpu.dot_dimension_numbers<[1], [0], [0], [1], [0, 0, 1, 1], [], []>} : vector<16x300xbf16>, vector<300x128xbf16>, vector<16x128xf32> -> vector<16x128xf32>
    %15 = vector.shape_cast %14 : vector<16x128xf32> to vector<8x2x128xf32>
    %c0_16 = arith.constant 0 : index
    %c0_17 = arith.constant 0 : index
    %16 = vector.load %arg7[%c0_16, %c0_17] : memref<1x128xf32, #tpu.memory_space<vmem>>, vector<1x128xf32>
    %17 = vector.shape_cast %16 : vector<1x128xf32> to vector<1x1x128xf32>
    %18 = vector.broadcast %17 : vector<1x1x128xf32> to vector<8x2x128xf32>
    %19 = arith.addf %15, %18 : vector<8x2x128xf32>
    %c0_18 = arith.constant 0 : index
    %c0_19 = arith.constant 0 : index
    %c0_20 = arith.constant 0 : index
    %20 = vector.load %arg26[%c0_18, %c0_19, %c0_20] : memref<8x2x128xf32, #tpu.memory_space<vmem>>, vector<8x2x128xf32>
    tpu.vector_store %arg26[%c0_18, %c0_19, %c0_20], %19 {strides = array<i32>} : memref<8x2x128xf32, #tpu.memory_space<vmem>>, vector<8x2x128xf32>,
    %c0_21 = arith.constant 0 : index
    %c0_22 = arith.constant 0 : index
    %21 = vector.load %arg8[%c0_21, %c0_22] : memref<2x32xf32, #tpu.memory_space<vmem>>, vector<2x32xf32>
    %c0_23 = arith.constant 0 : index
    %c0_24 = arith.constant 0 : index
    %22 = vector.load %arg9[%c0_23, %c0_24] : memref<2x32xf32, #tpu.memory_space<vmem>>, vector<2x32xf32>
    %c0_25 = arith.constant 0 : index
    %c0_26 = arith.constant 0 : index
    %23 = vector.load %arg10[%c0_25, %c0_26] : memref<2x32xf32, #tpu.memory_space<vmem>>, vector<2x32xf32>
    %c0_27 = arith.constant 0 : index
    %c0_28 = arith.constant 0 : index
    %24 = vector.load %arg11[%c0_27, %c0_28] : memref<2x32xf32, #tpu.memory_space<vmem>>, vector<2x32xf32>
    %c0_i32 = arith.constant 0 : i32
    %c7_i32 = arith.constant 7 : i32
    %25 = arith.subi %c7_i32, %c0_i32 : i32
    %26 = arith.index_cast %c0_i32 : i32 to index
    %c0_29 = arith.constant 0 : index
    %c0_30 = arith.constant 0 : index
    %27 = vector.load %arg25[%26, %c0_29, %c0_30] : memref<8x2x128xf32, #tpu.memory_space<vmem>>, vector<1x2x128xf32>
    %28 = vector.shape_cast %27 : vector<1x2x128xf32> to vector<2x128xf32>
    %29 = arith.truncf %21 : vector<2x32xf32> to vector<2x32xbf16>
    %cst_31 = arith.constant dense<0.000000e+00> : vector<2x128xf32>
    %30 = tpu.matmul %29, %0, %cst_31 {dimension_numbers = #tpu.dot_dimension_numbers<[1], [0], [0], [1], [0, 0, 1, 1], [], []>} : vector<2x32xbf16>, vector<32x128xbf16>, vector<2x128xf32> -> vector<2x128xf32>
    %31 = arith.addf %28, %30 : vector<2x128xf32>
    %32 = arith.index_cast %25 : i32 to index
    %c0_32 = arith.constant 0 : index
    %c0_33 = arith.constant 0 : index
    %33 = vector.load %arg26[%32, %c0_32, %c0_33] : memref<8x2x128xf32, #tpu.memory_space<vmem>>, vector<1x2x128xf32>
    %34 = vector.shape_cast %33 : vector<1x2x128xf32> to vector<2x128xf32>
    %35 = arith.truncf %23 : vector<2x32xf32> to vector<2x32xbf16>
    %cst_34 = arith.constant dense<0.000000e+00> : vector<2x128xf32>
    %36 = tpu.matmul %35, %1, %cst_34 {dimension_numbers = #tpu.dot_dimension_numbers<[1], [0], [0], [1], [0, 0, 1, 1], [], []>} : vector<2x32xbf16>, vector<32x128xbf16>, vector<2x128xf32> -> vector<2x128xf32>
    %37 = arith.addf %34, %36 : vector<2x128xf32>
    %38 = vector.extract_strided_slice %31 {offsets = [0, 0], sizes = [2, 32], strides = [1, 1]} : vector<2x128xf32> to vector<2x32xf32>
    %39 = arith.negf %38 : vector<2x32xf32>
    %40 = math.exp %39 : vector<2x32xf32>
    %cst_35 = arith.constant 1.000000e+00 : f32
    %41 = vector.broadcast %cst_35 : f32 to vector<2x32xf32>
    %42 = arith.addf %41, %40 : vector<2x32xf32>
    %43 = arith.divf %41, %42 : vector<2x32xf32>
    %44 = vector.extract_strided_slice %31 {offsets = [0, 32], sizes = [2, 32], strides = [1, 1]} : vector<2x128xf32> to vector<2x32xf32>
    %45 = arith.negf %44 : vector<2x32xf32>
    %46 = math.exp %45 : vector<2x32xf32>
    %cst_36 = arith.constant 1.000000e+00 : f32
    %47 = vector.broadcast %cst_36 : f32 to vector<2x32xf32>
    %48 = arith.addf %47, %46 : vector<2x32xf32>
    %49 = arith.divf %47, %48 : vector<2x32xf32>
    %50 = vector.extract_strided_slice %31 {offsets = [0, 64], sizes = [2, 32], strides = [1, 1]} : vector<2x128xf32> to vector<2x32xf32>
    %51 = math.tanh %50 : vector<2x32xf32>
    %52 = vector.extract_strided_slice %31 {offsets = [0, 96], sizes = [2, 32], strides = [1, 1]} : vector<2x128xf32> to vector<2x32xf32>
    %53 = arith.negf %52 : vector<2x32xf32>
    %54 = math.exp %53 : vector<2x32xf32>
    %cst_37 = arith.constant 1.000000e+00 : f32
    %55 = vector.broadcast %cst_37 : f32 to vector<2x32xf32>
    %56 = arith.addf %55, %54 : vector<2x32xf32>
    %57 = arith.divf %55, %56 : vector<2x32xf32>
    %58 = arith.mulf %49, %22 : vector<2x32xf32>
    %59 = arith.mulf %43, %51 : vector<2x32xf32>
    %60 = arith.addf %58, %59 : vector<2x32xf32>
    %61 = math.tanh %60 : vector<2x32xf32>
    %62 = arith.mulf %57, %61 : vector<2x32xf32>
    %63 = vector.extract_strided_slice %37 {offsets = [0, 0], sizes = [2, 32], strides = [1, 1]} : vector<2x128xf32> to vector<2x32xf32>
    %64 = arith.negf %63 : vector<2x32xf32>
    %65 = math.exp %64 : vector<2x32xf32>
    %cst_38 = arith.constant 1.000000e+00 : f32
    %66 = vector.broadcast %cst_38 : f32 to vector<2x32xf32>
    %67 = arith.addf %66, %65 : vector<2x32xf32>
    %68 = arith.divf %66, %67 : vector<2x32xf32>
    %69 = vector.extract_strided_slice %37 {offsets = [0, 32], sizes = [2, 32], strides = [1, 1]} : vector<2x128xf32> to vector<2x32xf32>
    %70 = arith.negf %69 : vector<2x32xf32>
    %71 = math.exp %70 : vector<2x32xf32>
    %cst_39 = arith.constant 1.000000e+00 : f32
    %72 = vector.broadcast %cst_39 : f32 to vector<2x32xf32>
    %73 = arith.addf %72, %71 : vector<2x32xf32>
    %74 = arith.divf %72, %73 : vector<2x32xf32>
    %75 = vector.extract_strided_slice %37 {offsets = [0, 64], sizes = [2, 32], strides = [1, 1]} : vector<2x128xf32> to vector<2x32xf32>
    %76 = math.tanh %75 : vector<2x32xf32>
    %77 = vector.extract_strided_slice %37 {offsets = [0, 96], sizes = [2, 32], strides = [1, 1]} : vector<2x128xf32> to vector<2x32xf32>
    %78 = arith.negf %77 : vector<2x32xf32>
    %79 = math.exp %78 : vector<2x32xf32>
    %cst_40 = arith.constant 1.000000e+00 : f32
    %80 = vector.broadcast %cst_40 : f32 to vector<2x32xf32>
    %81 = arith.addf %80, %79 : vector<2x32xf32>
    %82 = arith.divf %80, %81 : vector<2x32xf32>
    %83 = arith.mulf %74, %24 : vector<2x32xf32>
    %84 = arith.mulf %68, %76 : vector<2x32xf32>
    %85 = arith.addf %83, %84 : vector<2x32xf32>
    %86 = math.tanh %85 : vector<2x32xf32>
    %87 = arith.mulf %82, %86 : vector<2x32xf32>
    %88 = arith.index_cast %c0_i32 : i32 to index
    %c0_41 = arith.constant 0 : index
    %c0_42 = arith.constant 0 : index
    %89 = vector.load %arg27[%88, %c0_41, %c0_42] : memref<8x2x32xf32, #tpu.memory_space<vmem>>, vector<1x2x32xf32>
    %90 = vector.shape_cast %89 : vector<1x2x32xf32> to vector<2x32xf32>
    %91 = vector.shape_cast %62 : vector<2x32xf32> to vector<1x2x32xf32>
    tpu.vector_store %arg27[%88, %c0_41, %c0_42], %91 {strides = array<i32>} : memref<8x2x32xf32, #tpu.memory_space<vmem>>, vector<1x2x32xf32>,
    %92 = arith.index_cast %25 : i32 to index
    %c0_43 = arith.constant 0 : index
    %c0_44 = arith.constant 0 : index
    %93 = vector.load %arg28[%92, %c0_43, %c0_44] : memref<8x2x32xf32, #tpu.memory_space<vmem>>, vector<1x2x32xf32>
    %94 = vector.shape_cast %93 : vector<1x2x32xf32> to vector<2x32xf32>
    %95 = vector.shape_cast %87 : vector<2x32xf32> to vector<1x2x32xf32>
    tpu.vector_store %arg28[%92, %c0_43, %c0_44], %95 {strides = array<i32>} : memref<8x2x32xf32, #tpu.memory_space<vmem>>, vector<1x2x32xf32>,
    %c1_i32 = arith.constant 1 : i32
    %c7_i32_45 = arith.constant 7 : i32
    %96 = arith.subi %c7_i32_45, %c1_i32 : i32
    %97 = arith.index_cast %c1_i32 : i32 to index
    %c0_46 = arith.constant 0 : index
    %c0_47 = arith.constant 0 : index
    %98 = vector.load %arg25[%97, %c0_46, %c0_47] : memref<8x2x128xf32, #tpu.memory_space<vmem>>, vector<1x2x128xf32>
    %99 = vector.shape_cast %98 : vector<1x2x128xf32> to vector<2x128xf32>
    %100 = arith.truncf %62 : vector<2x32xf32> to vector<2x32xbf16>
    %cst_48 = arith.constant dense<0.000000e+00> : vector<2x128xf32>
    %101 = tpu.matmul %100, %0, %cst_48 {dimension_numbers = #tpu.dot_dimension_numbers<[1], [0], [0], [1], [0, 0, 1, 1], [], []>} : vector<2x32xbf16>, vector<32x128xbf16>, vector<2x128xf32> -> vector<2x128xf32>
    %102 = arith.addf %99, %101 : vector<2x128xf32>
    %103 = arith.index_cast %96 : i32 to index
    %c0_49 = arith.constant 0 : index
    %c0_50 = arith.constant 0 : index
    %104 = vector.load %arg26[%103, %c0_49, %c0_50] : memref<8x2x128xf32, #tpu.memory_space<vmem>>, vector<1x2x128xf32>
    %105 = vector.shape_cast %104 : vector<1x2x128xf32> to vector<2x128xf32>
    %106 = arith.truncf %87 : vector<2x32xf32> to vector<2x32xbf16>
    %cst_51 = arith.constant dense<0.000000e+00> : vector<2x128xf32>
    %107 = tpu.matmul %106, %1, %cst_51 {dimension_numbers = #tpu.dot_dimension_numbers<[1], [0], [0], [1], [0, 0, 1, 1], [], []>} : vector<2x32xbf16>, vector<32x128xbf16>, vector<2x128xf32> -> vector<2x128xf32>
    %108 = arith.addf %105, %107 : vector<2x128xf32>
    %109 = vector.extract_strided_slice %102 {offsets = [0, 0], sizes = [2, 32], strides = [1, 1]} : vector<2x128xf32> to vector<2x32xf32>
    %110 = arith.negf %109 : vector<2x32xf32>
    %111 = math.exp %110 : vector<2x32xf32>
    %cst_52 = arith.constant 1.000000e+00 : f32
    %112 = vector.broadcast %cst_52 : f32 to vector<2x32xf32>
    %113 = arith.addf %112, %111 : vector<2x32xf32>
    %114 = arith.divf %112, %113 : vector<2x32xf32>
    %115 = vector.extract_strided_slice %102 {offsets = [0, 32], sizes = [2, 32], strides = [1, 1]} : vector<2x128xf32> to vector<2x32xf32>
    %116 = arith.negf %115 : vector<2x32xf32>
    %117 = math.exp %116 : vector<2x32xf32>
    %cst_53 = arith.constant 1.000000e+00 : f32
    %118 = vector.broadcast %cst_53 : f32 to vector<2x32xf32>
    %119 = arith.addf %118, %117 : vector<2x32xf32>
    %120 = arith.divf %118, %119 : vector<2x32xf32>
    %121 = vector.extract_strided_slice %102 {offsets = [0, 64], sizes = [2, 32], strides = [1, 1]} : vector<2x128xf32> to vector<2x32xf32>
    %122 = math.tanh %121 : vector<2x32xf32>
    %123 = vector.extract_strided_slice %102 {offsets = [0, 96], sizes = [2, 32], strides = [1, 1]} : vector<2x128xf32> to vector<2x32xf32>
    %124 = arith.negf %123 : vector<2x32xf32>
    %125 = math.exp %124 : vector<2x32xf32>
    %cst_54 = arith.constant 1.000000e+00 : f32
    %126 = vector.broadcast %cst_54 : f32 to vector<2x32xf32>
    %127 = arith.addf %126, %125 : vector<2x32xf32>
    %128 = arith.divf %126, %127 : vector<2x32xf32>
    %129 = arith.mulf %120, %60 : vector<2x32xf32>
    %130 = arith.mulf %114, %122 : vector<2x32xf32>
    %131 = arith.addf %129, %130 : vector<2x32xf32>
    %132 = math.tanh %131 : vector<2x32xf32>
    %133 = arith.mulf %128, %132 : vector<2x32xf32>
    %134 = vector.extract_strided_slice %108 {offsets = [0, 0], sizes = [2, 32], strides = [1, 1]} : vector<2x128xf32> to vector<2x32xf32>
    %135 = arith.negf %134 : vector<2x32xf32>
    %136 = math.exp %135 : vector<2x32xf32>
    %cst_55 = arith.constant 1.000000e+00 : f32
    %137 = vector.broadcast %cst_55 : f32 to vector<2x32xf32>
    %138 = arith.addf %137, %136 : vector<2x32xf32>
    %139 = arith.divf %137, %138 : vector<2x32xf32>
    %140 = vector.extract_strided_slice %108 {offsets = [0, 32], sizes = [2, 32], strides = [1, 1]} : vector<2x128xf32> to vector<2x32xf32>
    %141 = arith.negf %140 : vector<2x32xf32>
    %142 = math.exp %141 : vector<2x32xf32>
    %cst_56 = arith.constant 1.000000e+00 : f32
    %143 = vector.broadcast %cst_56 : f32 to vector<2x32xf32>
    %144 = arith.addf %143, %142 : vector<2x32xf32>
    %145 = arith.divf %143, %144 : vector<2x32xf32>
    %146 = vector.extract_strided_slice %108 {offsets = [0, 64], sizes = [2, 32], strides = [1, 1]} : vector<2x128xf32> to vector<2x32xf32>
    %147 = math.tanh %146 : vector<2x32xf32>
    %148 = vector.extract_strided_slice %108 {offsets = [0, 96], sizes = [2, 32], strides = [1, 1]} : vector<2x128xf32> to vector<2x32xf32>
    %149 = arith.negf %148 : vector<2x32xf32>
    %150 = math.exp %149 : vector<2x32xf32>
    %cst_57 = arith.constant 1.000000e+00 : f32
    %151 = vector.broadcast %cst_57 : f32 to vector<2x32xf32>
    %152 = arith.addf %151, %150 : vector<2x32xf32>
    %153 = arith.divf %151, %152 : vector<2x32xf32>
    %154 = arith.mulf %145, %85 : vector<2x32xf32>
    %155 = arith.mulf %139, %147 : vector<2x32xf32>
    %156 = arith.addf %154, %155 : vector<2x32xf32>
    %157 = math.tanh %156 : vector<2x32xf32>
    %158 = arith.mulf %153, %157 : vector<2x32xf32>
    %159 = arith.index_cast %c1_i32 : i32 to index
    %c0_58 = arith.constant 0 : index
    %c0_59 = arith.constant 0 : index
    %160 = vector.load %arg27[%159, %c0_58, %c0_59] : memref<8x2x32xf32, #tpu.memory_space<vmem>>, vector<1x2x32xf32>
    %161 = vector.shape_cast %160 : vector<1x2x32xf32> to vector<2x32xf32>
    %162 = vector.shape_cast %133 : vector<2x32xf32> to vector<1x2x32xf32>
    tpu.vector_store %arg27[%159, %c0_58, %c0_59], %162 {strides = array<i32>} : memref<8x2x32xf32, #tpu.memory_space<vmem>>, vector<1x2x32xf32>,
    %163 = arith.index_cast %96 : i32 to index
    %c0_60 = arith.constant 0 : index
    %c0_61 = arith.constant 0 : index
    %164 = vector.load %arg28[%163, %c0_60, %c0_61] : memref<8x2x32xf32, #tpu.memory_space<vmem>>, vector<1x2x32xf32>
    %165 = vector.shape_cast %164 : vector<1x2x32xf32> to vector<2x32xf32>
    %166 = vector.shape_cast %158 : vector<2x32xf32> to vector<1x2x32xf32>
    tpu.vector_store %arg28[%163, %c0_60, %c0_61], %166 {strides = array<i32>} : memref<8x2x32xf32, #tpu.memory_space<vmem>>, vector<1x2x32xf32>,
    %c2_i32 = arith.constant 2 : i32
    %c7_i32_62 = arith.constant 7 : i32
    %167 = arith.subi %c7_i32_62, %c2_i32 : i32
    %168 = arith.index_cast %c2_i32 : i32 to index
    %c0_63 = arith.constant 0 : index
    %c0_64 = arith.constant 0 : index
    %169 = vector.load %arg25[%168, %c0_63, %c0_64] : memref<8x2x128xf32, #tpu.memory_space<vmem>>, vector<1x2x128xf32>
    %170 = vector.shape_cast %169 : vector<1x2x128xf32> to vector<2x128xf32>
    %171 = arith.truncf %133 : vector<2x32xf32> to vector<2x32xbf16>
    %cst_65 = arith.constant dense<0.000000e+00> : vector<2x128xf32>
    %172 = tpu.matmul %171, %0, %cst_65 {dimension_numbers = #tpu.dot_dimension_numbers<[1], [0], [0], [1], [0, 0, 1, 1], [], []>} : vector<2x32xbf16>, vector<32x128xbf16>, vector<2x128xf32> -> vector<2x128xf32>
    %173 = arith.addf %170, %172 : vector<2x128xf32>
    %174 = arith.index_cast %167 : i32 to index
    %c0_66 = arith.constant 0 : index
    %c0_67 = arith.constant 0 : index
    %175 = vector.load %arg26[%174, %c0_66, %c0_67] : memref<8x2x128xf32, #tpu.memory_space<vmem>>, vector<1x2x128xf32>
    %176 = vector.shape_cast %175 : vector<1x2x128xf32> to vector<2x128xf32>
    %177 = arith.truncf %158 : vector<2x32xf32> to vector<2x32xbf16>
    %cst_68 = arith.constant dense<0.000000e+00> : vector<2x128xf32>
    %178 = tpu.matmul %177, %1, %cst_68 {dimension_numbers = #tpu.dot_dimension_numbers<[1], [0], [0], [1], [0, 0, 1, 1], [], []>} : vector<2x32xbf16>, vector<32x128xbf16>, vector<2x128xf32> -> vector<2x128xf32>
    %179 = arith.addf %176, %178 : vector<2x128xf32>
    %180 = vector.extract_strided_slice %173 {offsets = [0, 0], sizes = [2, 32], strides = [1, 1]} : vector<2x128xf32> to vector<2x32xf32>
    %181 = arith.negf %180 : vector<2x32xf32>
    %182 = math.exp %181 : vector<2x32xf32>
    %cst_69 = arith.constant 1.000000e+00 : f32
    %183 = vector.broadcast %cst_69 : f32 to vector<2x32xf32>
    %184 = arith.addf %183, %182 : vector<2x32xf32>
    %185 = arith.divf %183, %184 : vector<2x32xf32>
    %186 = vector.extract_strided_slice %173 {offsets = [0, 32], sizes = [2, 32], strides = [1, 1]} : vector<2x128xf32> to vector<2x32xf32>
    %187 = arith.negf %186 : vector<2x32xf32>
    %188 = math.exp %187 : vector<2x32xf32>
    %cst_70 = arith.constant 1.000000e+00 : f32
    %189 = vector.broadcast %cst_70 : f32 to vector<2x32xf32>
    %190 = arith.addf %189, %188 : vector<2x32xf32>
    %191 = arith.divf %189, %190 : vector<2x32xf32>
    %192 = vector.extract_strided_slice %173 {offsets = [0, 64], sizes = [2, 32], strides = [1, 1]} : vector<2x128xf32> to vector<2x32xf32>
    %193 = math.tanh %192 : vector<2x32xf32>
    %194 = vector.extract_strided_slice %173 {offsets = [0, 96], sizes = [2, 32], strides = [1, 1]} : vector<2x128xf32> to vector<2x32xf32>
    %195 = arith.negf %194 : vector<2x32xf32>
    %196 = math.exp %195 : vector<2x32xf32>
    %cst_71 = arith.constant 1.000000e+00 : f32
    %197 = vector.broadcast %cst_71 : f32 to vector<2x32xf32>
    %198 = arith.addf %197, %196 : vector<2x32xf32>
    %199 = arith.divf %197, %198 : vector<2x32xf32>
    %200 = arith.mulf %191, %131 : vector<2x32xf32>
    %201 = arith.mulf %185, %193 : vector<2x32xf32>
    %202 = arith.addf %200, %201 : vector<2x32xf32>
    %203 = math.tanh %202 : vector<2x32xf32>
    %204 = arith.mulf %199, %203 : vector<2x32xf32>
    %205 = vector.extract_strided_slice %179 {offsets = [0, 0], sizes = [2, 32], strides = [1, 1]} : vector<2x128xf32> to vector<2x32xf32>
    %206 = arith.negf %205 : vector<2x32xf32>
    %207 = math.exp %206 : vector<2x32xf32>
    %cst_72 = arith.constant 1.000000e+00 : f32
    %208 = vector.broadcast %cst_72 : f32 to vector<2x32xf32>
    %209 = arith.addf %208, %207 : vector<2x32xf32>
    %210 = arith.divf %208, %209 : vector<2x32xf32>
    %211 = vector.extract_strided_slice %179 {offsets = [0, 32], sizes = [2, 32], strides = [1, 1]} : vector<2x128xf32> to vector<2x32xf32>
    %212 = arith.negf %211 : vector<2x32xf32>
    %213 = math.exp %212 : vector<2x32xf32>
    %cst_73 = arith.constant 1.000000e+00 : f32
    %214 = vector.broadcast %cst_73 : f32 to vector<2x32xf32>
    %215 = arith.addf %214, %213 : vector<2x32xf32>
    %216 = arith.divf %214, %215 : vector<2x32xf32>
    %217 = vector.extract_strided_slice %179 {offsets = [0, 64], sizes = [2, 32], strides = [1, 1]} : vector<2x128xf32> to vector<2x32xf32>
    %218 = math.tanh %217 : vector<2x32xf32>
    %219 = vector.extract_strided_slice %179 {offsets = [0, 96], sizes = [2, 32], strides = [1, 1]} : vector<2x128xf32> to vector<2x32xf32>
    %220 = arith.negf %219 : vector<2x32xf32>
    %221 = math.exp %220 : vector<2x32xf32>
    %cst_74 = arith.constant 1.000000e+00 : f32
    %222 = vector.broadcast %cst_74 : f32 to vector<2x32xf32>
    %223 = arith.addf %222, %221 : vector<2x32xf32>
    %224 = arith.divf %222, %223 : vector<2x32xf32>
    %225 = arith.mulf %216, %156 : vector<2x32xf32>
    %226 = arith.mulf %210, %218 : vector<2x32xf32>
    %227 = arith.addf %225, %226 : vector<2x32xf32>
    %228 = math.tanh %227 : vector<2x32xf32>
    %229 = arith.mulf %224, %228 : vector<2x32xf32>
    %230 = arith.index_cast %c2_i32 : i32 to index
    %c0_75 = arith.constant 0 : index
    %c0_76 = arith.constant 0 : index
    %231 = vector.load %arg27[%230, %c0_75, %c0_76] : memref<8x2x32xf32, #tpu.memory_space<vmem>>, vector<1x2x32xf32>
    %232 = vector.shape_cast %231 : vector<1x2x32xf32> to vector<2x32xf32>
    %233 = vector.shape_cast %204 : vector<2x32xf32> to vector<1x2x32xf32>
    tpu.vector_store %arg27[%230, %c0_75, %c0_76], %233 {strides = array<i32>} : memref<8x2x32xf32, #tpu.memory_space<vmem>>, vector<1x2x32xf32>,
    %234 = arith.index_cast %167 : i32 to index
    %c0_77 = arith.constant 0 : index
    %c0_78 = arith.constant 0 : index
    %235 = vector.load %arg28[%234, %c0_77, %c0_78] : memref<8x2x32xf32, #tpu.memory_space<vmem>>, vector<1x2x32xf32>
    %236 = vector.shape_cast %235 : vector<1x2x32xf32> to vector<2x32xf32>
    %237 = vector.shape_cast %229 : vector<2x32xf32> to vector<1x2x32xf32>
    tpu.vector_store %arg28[%234, %c0_77, %c0_78], %237 {strides = array<i32>} : memref<8x2x32xf32, #tpu.memory_space<vmem>>, vector<1x2x32xf32>,
    %c3_i32 = arith.constant 3 : i32
    %c7_i32_79 = arith.constant 7 : i32
    %238 = arith.subi %c7_i32_79, %c3_i32 : i32
    %239 = arith.index_cast %c3_i32 : i32 to index
    %c0_80 = arith.constant 0 : index
    %c0_81 = arith.constant 0 : index
    %240 = vector.load %arg25[%239, %c0_80, %c0_81] : memref<8x2x128xf32, #tpu.memory_space<vmem>>, vector<1x2x128xf32>
    %241 = vector.shape_cast %240 : vector<1x2x128xf32> to vector<2x128xf32>
    %242 = arith.truncf %204 : vector<2x32xf32> to vector<2x32xbf16>
    %cst_82 = arith.constant dense<0.000000e+00> : vector<2x128xf32>
    %243 = tpu.matmul %242, %0, %cst_82 {dimension_numbers = #tpu.dot_dimension_numbers<[1], [0], [0], [1], [0, 0, 1, 1], [], []>} : vector<2x32xbf16>, vector<32x128xbf16>, vector<2x128xf32> -> vector<2x128xf32>
    %244 = arith.addf %241, %243 : vector<2x128xf32>
    %245 = arith.index_cast %238 : i32 to index
    %c0_83 = arith.constant 0 : index
    %c0_84 = arith.constant 0 : index
    %246 = vector.load %arg26[%245, %c0_83, %c0_84] : memref<8x2x128xf32, #tpu.memory_space<vmem>>, vector<1x2x128xf32>
    %247 = vector.shape_cast %246 : vector<1x2x128xf32> to vector<2x128xf32>
    %248 = arith.truncf %229 : vector<2x32xf32> to vector<2x32xbf16>
    %cst_85 = arith.constant dense<0.000000e+00> : vector<2x128xf32>
    %249 = tpu.matmul %248, %1, %cst_85 {dimension_numbers = #tpu.dot_dimension_numbers<[1], [0], [0], [1], [0, 0, 1, 1], [], []>} : vector<2x32xbf16>, vector<32x128xbf16>, vector<2x128xf32> -> vector<2x128xf32>
    %250 = arith.addf %247, %249 : vector<2x128xf32>
    %251 = vector.extract_strided_slice %244 {offsets = [0, 0], sizes = [2, 32], strides = [1, 1]} : vector<2x128xf32> to vector<2x32xf32>
    %252 = arith.negf %251 : vector<2x32xf32>
    %253 = math.exp %252 : vector<2x32xf32>
    %cst_86 = arith.constant 1.000000e+00 : f32
    %254 = vector.broadcast %cst_86 : f32 to vector<2x32xf32>
    %255 = arith.addf %254, %253 : vector<2x32xf32>
    %256 = arith.divf %254, %255 : vector<2x32xf32>
    %257 = vector.extract_strided_slice %244 {offsets = [0, 32], sizes = [2, 32], strides = [1, 1]} : vector<2x128xf32> to vector<2x32xf32>
    %258 = arith.negf %257 : vector<2x32xf32>
    %259 = math.exp %258 : vector<2x32xf32>
    %cst_87 = arith.constant 1.000000e+00 : f32
    %260 = vector.broadcast %cst_87 : f32 to vector<2x32xf32>
    %261 = arith.addf %260, %259 : vector<2x32xf32>
    %262 = arith.divf %260, %261 : vector<2x32xf32>
    %263 = vector.extract_strided_slice %244 {offsets = [0, 64], sizes = [2, 32], strides = [1, 1]} : vector<2x128xf32> to vector<2x32xf32>
    %264 = math.tanh %263 : vector<2x32xf32>
    %265 = vector.extract_strided_slice %244 {offsets = [0, 96], sizes = [2, 32], strides = [1, 1]} : vector<2x128xf32> to vector<2x32xf32>
    %266 = arith.negf %265 : vector<2x32xf32>
    %267 = math.exp %266 : vector<2x32xf32>
    %cst_88 = arith.constant 1.000000e+00 : f32
    %268 = vector.broadcast %cst_88 : f32 to vector<2x32xf32>
    %269 = arith.addf %268, %267 : vector<2x32xf32>
    %270 = arith.divf %268, %269 : vector<2x32xf32>
    %271 = arith.mulf %262, %202 : vector<2x32xf32>
    %272 = arith.mulf %256, %264 : vector<2x32xf32>
    %273 = arith.addf %271, %272 : vector<2x32xf32>
    %274 = math.tanh %273 : vector<2x32xf32>
    %275 = arith.mulf %270, %274 : vector<2x32xf32>
    %276 = vector.extract_strided_slice %250 {offsets = [0, 0], sizes = [2, 32], strides = [1, 1]} : vector<2x128xf32> to vector<2x32xf32>
    %277 = arith.negf %276 : vector<2x32xf32>
    %278 = math.exp %277 : vector<2x32xf32>
    %cst_89 = arith.constant 1.000000e+00 : f32
    %279 = vector.broadcast %cst_89 : f32 to vector<2x32xf32>
    %280 = arith.addf %279, %278 : vector<2x32xf32>
    %281 = arith.divf %279, %280 : vector<2x32xf32>
    %282 = vector.extract_strided_slice %250 {offsets = [0, 32], sizes = [2, 32], strides = [1, 1]} : vector<2x128xf32> to vector<2x32xf32>
    %283 = arith.negf %282 : vector<2x32xf32>
    %284 = math.exp %283 : vector<2x32xf32>
    %cst_90 = arith.constant 1.000000e+00 : f32
    %285 = vector.broadcast %cst_90 : f32 to vector<2x32xf32>
    %286 = arith.addf %285, %284 : vector<2x32xf32>
    %287 = arith.divf %285, %286 : vector<2x32xf32>
    %288 = vector.extract_strided_slice %250 {offsets = [0, 64], sizes = [2, 32], strides = [1, 1]} : vector<2x128xf32> to vector<2x32xf32>
    %289 = math.tanh %288 : vector<2x32xf32>
    %290 = vector.extract_strided_slice %250 {offsets = [0, 96], sizes = [2, 32], strides = [1, 1]} : vector<2x128xf32> to vector<2x32xf32>
    %291 = arith.negf %290 : vector<2x32xf32>
    %292 = math.exp %291 : vector<2x32xf32>
    %cst_91 = arith.constant 1.000000e+00 : f32
    %293 = vector.broadcast %cst_91 : f32 to vector<2x32xf32>
    %294 = arith.addf %293, %292 : vector<2x32xf32>
    %295 = arith.divf %293, %294 : vector<2x32xf32>
    %296 = arith.mulf %287, %227 : vector<2x32xf32>
    %297 = arith.mulf %281, %289 : vector<2x32xf32>
    %298 = arith.addf %296, %297 : vector<2x32xf32>
    %299 = math.tanh %298 : vector<2x32xf32>
    %300 = arith.mulf %295, %299 : vector<2x32xf32>
    %301 = arith.index_cast %c3_i32 : i32 to index
    %c0_92 = arith.constant 0 : index
    %c0_93 = arith.constant 0 : index
    %302 = vector.load %arg27[%301, %c0_92, %c0_93] : memref<8x2x32xf32, #tpu.memory_space<vmem>>, vector<1x2x32xf32>
    %303 = vector.shape_cast %302 : vector<1x2x32xf32> to vector<2x32xf32>
    %304 = vector.shape_cast %275 : vector<2x32xf32> to vector<1x2x32xf32>
    tpu.vector_store %arg27[%301, %c0_92, %c0_93], %304 {strides = array<i32>} : memref<8x2x32xf32, #tpu.memory_space<vmem>>, vector<1x2x32xf32>,
    %305 = arith.index_cast %238 : i32 to index
    %c0_94 = arith.constant 0 : index
    %c0_95 = arith.constant 0 : index
    %306 = vector.load %arg28[%305, %c0_94, %c0_95] : memref<8x2x32xf32, #tpu.memory_space<vmem>>, vector<1x2x32xf32>
    %307 = vector.shape_cast %306 : vector<1x2x32xf32> to vector<2x32xf32>
    %308 = vector.shape_cast %300 : vector<2x32xf32> to vector<1x2x32xf32>
    tpu.vector_store %arg28[%305, %c0_94, %c0_95], %308 {strides = array<i32>} : memref<8x2x32xf32, #tpu.memory_space<vmem>>, vector<1x2x32xf32>,
    %c4_i32 = arith.constant 4 : i32
    %c7_i32_96 = arith.constant 7 : i32
    %309 = arith.subi %c7_i32_96, %c4_i32 : i32
    %310 = arith.index_cast %c4_i32 : i32 to index
    %c0_97 = arith.constant 0 : index
    %c0_98 = arith.constant 0 : index
    %311 = vector.load %arg25[%310, %c0_97, %c0_98] : memref<8x2x128xf32, #tpu.memory_space<vmem>>, vector<1x2x128xf32>
    %312 = vector.shape_cast %311 : vector<1x2x128xf32> to vector<2x128xf32>
    %313 = arith.truncf %275 : vector<2x32xf32> to vector<2x32xbf16>
    %cst_99 = arith.constant dense<0.000000e+00> : vector<2x128xf32>
    %314 = tpu.matmul %313, %0, %cst_99 {dimension_numbers = #tpu.dot_dimension_numbers<[1], [0], [0], [1], [0, 0, 1, 1], [], []>} : vector<2x32xbf16>, vector<32x128xbf16>, vector<2x128xf32> -> vector<2x128xf32>
    %315 = arith.addf %312, %314 : vector<2x128xf32>
    %316 = arith.index_cast %309 : i32 to index
    %c0_100 = arith.constant 0 : index
    %c0_101 = arith.constant 0 : index
    %317 = vector.load %arg26[%316, %c0_100, %c0_101] : memref<8x2x128xf32, #tpu.memory_space<vmem>>, vector<1x2x128xf32>
    %318 = vector.shape_cast %317 : vector<1x2x128xf32> to vector<2x128xf32>
    %319 = arith.truncf %300 : vector<2x32xf32> to vector<2x32xbf16>
    %cst_102 = arith.constant dense<0.000000e+00> : vector<2x128xf32>
    %320 = tpu.matmul %319, %1, %cst_102 {dimension_numbers = #tpu.dot_dimension_numbers<[1], [0], [0], [1], [0, 0, 1, 1], [], []>} : vector<2x32xbf16>, vector<32x128xbf16>, vector<2x128xf32> -> vector<2x128xf32>
    %321 = arith.addf %318, %320 : vector<2x128xf32>
    %322 = vector.extract_strided_slice %315 {offsets = [0, 0], sizes = [2, 32], strides = [1, 1]} : vector<2x128xf32> to vector<2x32xf32>
    %323 = arith.negf %322 : vector<2x32xf32>
    %324 = math.exp %323 : vector<2x32xf32>
    %cst_103 = arith.constant 1.000000e+00 : f32
    %325 = vector.broadcast %cst_103 : f32 to vector<2x32xf32>
    %326 = arith.addf %325, %324 : vector<2x32xf32>
    %327 = arith.divf %325, %326 : vector<2x32xf32>
    %328 = vector.extract_strided_slice %315 {offsets = [0, 32], sizes = [2, 32], strides = [1, 1]} : vector<2x128xf32> to vector<2x32xf32>
    %329 = arith.negf %328 : vector<2x32xf32>
    %330 = math.exp %329 : vector<2x32xf32>
    %cst_104 = arith.constant 1.000000e+00 : f32
    %331 = vector.broadcast %cst_104 : f32 to vector<2x32xf32>
    %332 = arith.addf %331, %330 : vector<2x32xf32>
    %333 = arith.divf %331, %332 : vector<2x32xf32>
    %334 = vector.extract_strided_slice %315 {offsets = [0, 64], sizes = [2, 32], strides = [1, 1]} : vector<2x128xf32> to vector<2x32xf32>
    %335 = math.tanh %334 : vector<2x32xf32>
    %336 = vector.extract_strided_slice %315 {offsets = [0, 96], sizes = [2, 32], strides = [1, 1]} : vector<2x128xf32> to vector<2x32xf32>
    %337 = arith.negf %336 : vector<2x32xf32>
    %338 = math.exp %337 : vector<2x32xf32>
    %cst_105 = arith.constant 1.000000e+00 : f32
    %339 = vector.broadcast %cst_105 : f32 to vector<2x32xf32>
    %340 = arith.addf %339, %338 : vector<2x32xf32>
    %341 = arith.divf %339, %340 : vector<2x32xf32>
    %342 = arith.mulf %333, %273 : vector<2x32xf32>
    %343 = arith.mulf %327, %335 : vector<2x32xf32>
    %344 = arith.addf %342, %343 : vector<2x32xf32>
    %345 = math.tanh %344 : vector<2x32xf32>
    %346 = arith.mulf %341, %345 : vector<2x32xf32>
    %347 = vector.extract_strided_slice %321 {offsets = [0, 0], sizes = [2, 32], strides = [1, 1]} : vector<2x128xf32> to vector<2x32xf32>
    %348 = arith.negf %347 : vector<2x32xf32>
    %349 = math.exp %348 : vector<2x32xf32>
    %cst_106 = arith.constant 1.000000e+00 : f32
    %350 = vector.broadcast %cst_106 : f32 to vector<2x32xf32>
    %351 = arith.addf %350, %349 : vector<2x32xf32>
    %352 = arith.divf %350, %351 : vector<2x32xf32>
    %353 = vector.extract_strided_slice %321 {offsets = [0, 32], sizes = [2, 32], strides = [1, 1]} : vector<2x128xf32> to vector<2x32xf32>
    %354 = arith.negf %353 : vector<2x32xf32>
    %355 = math.exp %354 : vector<2x32xf32>
    %cst_107 = arith.constant 1.000000e+00 : f32
    %356 = vector.broadcast %cst_107 : f32 to vector<2x32xf32>
    %357 = arith.addf %356, %355 : vector<2x32xf32>
    %358 = arith.divf %356, %357 : vector<2x32xf32>
    %359 = vector.extract_strided_slice %321 {offsets = [0, 64], sizes = [2, 32], strides = [1, 1]} : vector<2x128xf32> to vector<2x32xf32>
    %360 = math.tanh %359 : vector<2x32xf32>
    %361 = vector.extract_strided_slice %321 {offsets = [0, 96], sizes = [2, 32], strides = [1, 1]} : vector<2x128xf32> to vector<2x32xf32>
    %362 = arith.negf %361 : vector<2x32xf32>
    %363 = math.exp %362 : vector<2x32xf32>
    %cst_108 = arith.constant 1.000000e+00 : f32
    %364 = vector.broadcast %cst_108 : f32 to vector<2x32xf32>
    %365 = arith.addf %364, %363 : vector<2x32xf32>
    %366 = arith.divf %364, %365 : vector<2x32xf32>
    %367 = arith.mulf %358, %298 : vector<2x32xf32>
    %368 = arith.mulf %352, %360 : vector<2x32xf32>
    %369 = arith.addf %367, %368 : vector<2x32xf32>
    %370 = math.tanh %369 : vector<2x32xf32>
    %371 = arith.mulf %366, %370 : vector<2x32xf32>
    %372 = arith.index_cast %c4_i32 : i32 to index
    %c0_109 = arith.constant 0 : index
    %c0_110 = arith.constant 0 : index
    %373 = vector.load %arg27[%372, %c0_109, %c0_110] : memref<8x2x32xf32, #tpu.memory_space<vmem>>, vector<1x2x32xf32>
    %374 = vector.shape_cast %373 : vector<1x2x32xf32> to vector<2x32xf32>
    %375 = vector.shape_cast %346 : vector<2x32xf32> to vector<1x2x32xf32>
    tpu.vector_store %arg27[%372, %c0_109, %c0_110], %375 {strides = array<i32>} : memref<8x2x32xf32, #tpu.memory_space<vmem>>, vector<1x2x32xf32>,
    %376 = arith.index_cast %309 : i32 to index
    %c0_111 = arith.constant 0 : index
    %c0_112 = arith.constant 0 : index
    %377 = vector.load %arg28[%376, %c0_111, %c0_112] : memref<8x2x32xf32, #tpu.memory_space<vmem>>, vector<1x2x32xf32>
    %378 = vector.shape_cast %377 : vector<1x2x32xf32> to vector<2x32xf32>
    %379 = vector.shape_cast %371 : vector<2x32xf32> to vector<1x2x32xf32>
    tpu.vector_store %arg28[%376, %c0_111, %c0_112], %379 {strides = array<i32>} : memref<8x2x32xf32, #tpu.memory_space<vmem>>, vector<1x2x32xf32>,
    %c5_i32 = arith.constant 5 : i32
    %c7_i32_113 = arith.constant 7 : i32
    %380 = arith.subi %c7_i32_113, %c5_i32 : i32
    %381 = arith.index_cast %c5_i32 : i32 to index
    %c0_114 = arith.constant 0 : index
    %c0_115 = arith.constant 0 : index
    %382 = vector.load %arg25[%381, %c0_114, %c0_115] : memref<8x2x128xf32, #tpu.memory_space<vmem>>, vector<1x2x128xf32>
    %383 = vector.shape_cast %382 : vector<1x2x128xf32> to vector<2x128xf32>
    %384 = arith.truncf %346 : vector<2x32xf32> to vector<2x32xbf16>
    %cst_116 = arith.constant dense<0.000000e+00> : vector<2x128xf32>
    %385 = tpu.matmul %384, %0, %cst_116 {dimension_numbers = #tpu.dot_dimension_numbers<[1], [0], [0], [1], [0, 0, 1, 1], [], []>} : vector<2x32xbf16>, vector<32x128xbf16>, vector<2x128xf32> -> vector<2x128xf32>
    %386 = arith.addf %383, %385 : vector<2x128xf32>
    %387 = arith.index_cast %380 : i32 to index
    %c0_117 = arith.constant 0 : index
    %c0_118 = arith.constant 0 : index
    %388 = vector.load %arg26[%387, %c0_117, %c0_118] : memref<8x2x128xf32, #tpu.memory_space<vmem>>, vector<1x2x128xf32>
    %389 = vector.shape_cast %388 : vector<1x2x128xf32> to vector<2x128xf32>
    %390 = arith.truncf %371 : vector<2x32xf32> to vector<2x32xbf16>
    %cst_119 = arith.constant dense<0.000000e+00> : vector<2x128xf32>
    %391 = tpu.matmul %390, %1, %cst_119 {dimension_numbers = #tpu.dot_dimension_numbers<[1], [0], [0], [1], [0, 0, 1, 1], [], []>} : vector<2x32xbf16>, vector<32x128xbf16>, vector<2x128xf32> -> vector<2x128xf32>
    %392 = arith.addf %389, %391 : vector<2x128xf32>
    %393 = vector.extract_strided_slice %386 {offsets = [0, 0], sizes = [2, 32], strides = [1, 1]} : vector<2x128xf32> to vector<2x32xf32>
    %394 = arith.negf %393 : vector<2x32xf32>
    %395 = math.exp %394 : vector<2x32xf32>
    %cst_120 = arith.constant 1.000000e+00 : f32
    %396 = vector.broadcast %cst_120 : f32 to vector<2x32xf32>
    %397 = arith.addf %396, %395 : vector<2x32xf32>
    %398 = arith.divf %396, %397 : vector<2x32xf32>
    %399 = vector.extract_strided_slice %386 {offsets = [0, 32], sizes = [2, 32], strides = [1, 1]} : vector<2x128xf32> to vector<2x32xf32>
    %400 = arith.negf %399 : vector<2x32xf32>
    %401 = math.exp %400 : vector<2x32xf32>
    %cst_121 = arith.constant 1.000000e+00 : f32
    %402 = vector.broadcast %cst_121 : f32 to vector<2x32xf32>
    %403 = arith.addf %402, %401 : vector<2x32xf32>
    %404 = arith.divf %402, %403 : vector<2x32xf32>
    %405 = vector.extract_strided_slice %386 {offsets = [0, 64], sizes = [2, 32], strides = [1, 1]} : vector<2x128xf32> to vector<2x32xf32>
    %406 = math.tanh %405 : vector<2x32xf32>
    %407 = vector.extract_strided_slice %386 {offsets = [0, 96], sizes = [2, 32], strides = [1, 1]} : vector<2x128xf32> to vector<2x32xf32>
    %408 = arith.negf %407 : vector<2x32xf32>
    %409 = math.exp %408 : vector<2x32xf32>
    %cst_122 = arith.constant 1.000000e+00 : f32
    %410 = vector.broadcast %cst_122 : f32 to vector<2x32xf32>
    %411 = arith.addf %410, %409 : vector<2x32xf32>
    %412 = arith.divf %410, %411 : vector<2x32xf32>
    %413 = arith.mulf %404, %344 : vector<2x32xf32>
    %414 = arith.mulf %398, %406 : vector<2x32xf32>
    %415 = arith.addf %413, %414 : vector<2x32xf32>
    %416 = math.tanh %415 : vector<2x32xf32>
    %417 = arith.mulf %412, %416 : vector<2x32xf32>
    %418 = vector.extract_strided_slice %392 {offsets = [0, 0], sizes = [2, 32], strides = [1, 1]} : vector<2x128xf32> to vector<2x32xf32>
    %419 = arith.negf %418 : vector<2x32xf32>
    %420 = math.exp %419 : vector<2x32xf32>
    %cst_123 = arith.constant 1.000000e+00 : f32
    %421 = vector.broadcast %cst_123 : f32 to vector<2x32xf32>
    %422 = arith.addf %421, %420 : vector<2x32xf32>
    %423 = arith.divf %421, %422 : vector<2x32xf32>
    %424 = vector.extract_strided_slice %392 {offsets = [0, 32], sizes = [2, 32], strides = [1, 1]} : vector<2x128xf32> to vector<2x32xf32>
    %425 = arith.negf %424 : vector<2x32xf32>
    %426 = math.exp %425 : vector<2x32xf32>
    %cst_124 = arith.constant 1.000000e+00 : f32
    %427 = vector.broadcast %cst_124 : f32 to vector<2x32xf32>
    %428 = arith.addf %427, %426 : vector<2x32xf32>
    %429 = arith.divf %427, %428 : vector<2x32xf32>
    %430 = vector.extract_strided_slice %392 {offsets = [0, 64], sizes = [2, 32], strides = [1, 1]} : vector<2x128xf32> to vector<2x32xf32>
    %431 = math.tanh %430 : vector<2x32xf32>
    %432 = vector.extract_strided_slice %392 {offsets = [0, 96], sizes = [2, 32], strides = [1, 1]} : vector<2x128xf32> to vector<2x32xf32>
    %433 = arith.negf %432 : vector<2x32xf32>
    %434 = math.exp %433 : vector<2x32xf32>
    %cst_125 = arith.constant 1.000000e+00 : f32
    %435 = vector.broadcast %cst_125 : f32 to vector<2x32xf32>
    %436 = arith.addf %435, %434 : vector<2x32xf32>
    %437 = arith.divf %435, %436 : vector<2x32xf32>
    %438 = arith.mulf %429, %369 : vector<2x32xf32>
    %439 = arith.mulf %423, %431 : vector<2x32xf32>
    %440 = arith.addf %438, %439 : vector<2x32xf32>
    %441 = math.tanh %440 : vector<2x32xf32>
    %442 = arith.mulf %437, %441 : vector<2x32xf32>
    %443 = arith.index_cast %c5_i32 : i32 to index
    %c0_126 = arith.constant 0 : index
    %c0_127 = arith.constant 0 : index
    %444 = vector.load %arg27[%443, %c0_126, %c0_127] : memref<8x2x32xf32, #tpu.memory_space<vmem>>, vector<1x2x32xf32>
    %445 = vector.shape_cast %444 : vector<1x2x32xf32> to vector<2x32xf32>
    %446 = vector.shape_cast %417 : vector<2x32xf32> to vector<1x2x32xf32>
    tpu.vector_store %arg27[%443, %c0_126, %c0_127], %446 {strides = array<i32>} : memref<8x2x32xf32, #tpu.memory_space<vmem>>, vector<1x2x32xf32>,
    %447 = arith.index_cast %380 : i32 to index
    %c0_128 = arith.constant 0 : index
    %c0_129 = arith.constant 0 : index
    %448 = vector.load %arg28[%447, %c0_128, %c0_129] : memref<8x2x32xf32, #tpu.memory_space<vmem>>, vector<1x2x32xf32>
    %449 = vector.shape_cast %448 : vector<1x2x32xf32> to vector<2x32xf32>
    %450 = vector.shape_cast %442 : vector<2x32xf32> to vector<1x2x32xf32>
    tpu.vector_store %arg28[%447, %c0_128, %c0_129], %450 {strides = array<i32>} : memref<8x2x32xf32, #tpu.memory_space<vmem>>, vector<1x2x32xf32>,
    %c6_i32 = arith.constant 6 : i32
    %c7_i32_130 = arith.constant 7 : i32
    %451 = arith.subi %c7_i32_130, %c6_i32 : i32
    %452 = arith.index_cast %c6_i32 : i32 to index
    %c0_131 = arith.constant 0 : index
    %c0_132 = arith.constant 0 : index
    %453 = vector.load %arg25[%452, %c0_131, %c0_132] : memref<8x2x128xf32, #tpu.memory_space<vmem>>, vector<1x2x128xf32>
    %454 = vector.shape_cast %453 : vector<1x2x128xf32> to vector<2x128xf32>
    %455 = arith.truncf %417 : vector<2x32xf32> to vector<2x32xbf16>
    %cst_133 = arith.constant dense<0.000000e+00> : vector<2x128xf32>
    %456 = tpu.matmul %455, %0, %cst_133 {dimension_numbers = #tpu.dot_dimension_numbers<[1], [0], [0], [1], [0, 0, 1, 1], [], []>} : vector<2x32xbf16>, vector<32x128xbf16>, vector<2x128xf32> -> vector<2x128xf32>
    %457 = arith.addf %454, %456 : vector<2x128xf32>
    %458 = arith.index_cast %451 : i32 to index
    %c0_134 = arith.constant 0 : index
    %c0_135 = arith.constant 0 : index
    %459 = vector.load %arg26[%458, %c0_134, %c0_135] : memref<8x2x128xf32, #tpu.memory_space<vmem>>, vector<1x2x128xf32>
    %460 = vector.shape_cast %459 : vector<1x2x128xf32> to vector<2x128xf32>
    %461 = arith.truncf %442 : vector<2x32xf32> to vector<2x32xbf16>
    %cst_136 = arith.constant dense<0.000000e+00> : vector<2x128xf32>
    %462 = tpu.matmul %461, %1, %cst_136 {dimension_numbers = #tpu.dot_dimension_numbers<[1], [0], [0], [1], [0, 0, 1, 1], [], []>} : vector<2x32xbf16>, vector<32x128xbf16>, vector<2x128xf32> -> vector<2x128xf32>
    %463 = arith.addf %460, %462 : vector<2x128xf32>
    %464 = vector.extract_strided_slice %457 {offsets = [0, 0], sizes = [2, 32], strides = [1, 1]} : vector<2x128xf32> to vector<2x32xf32>
    %465 = arith.negf %464 : vector<2x32xf32>
    %466 = math.exp %465 : vector<2x32xf32>
    %cst_137 = arith.constant 1.000000e+00 : f32
    %467 = vector.broadcast %cst_137 : f32 to vector<2x32xf32>
    %468 = arith.addf %467, %466 : vector<2x32xf32>
    %469 = arith.divf %467, %468 : vector<2x32xf32>
    %470 = vector.extract_strided_slice %457 {offsets = [0, 32], sizes = [2, 32], strides = [1, 1]} : vector<2x128xf32> to vector<2x32xf32>
    %471 = arith.negf %470 : vector<2x32xf32>
    %472 = math.exp %471 : vector<2x32xf32>
    %cst_138 = arith.constant 1.000000e+00 : f32
    %473 = vector.broadcast %cst_138 : f32 to vector<2x32xf32>
    %474 = arith.addf %473, %472 : vector<2x32xf32>
    %475 = arith.divf %473, %474 : vector<2x32xf32>
    %476 = vector.extract_strided_slice %457 {offsets = [0, 64], sizes = [2, 32], strides = [1, 1]} : vector<2x128xf32> to vector<2x32xf32>
    %477 = math.tanh %476 : vector<2x32xf32>
    %478 = vector.extract_strided_slice %457 {offsets = [0, 96], sizes = [2, 32], strides = [1, 1]} : vector<2x128xf32> to vector<2x32xf32>
    %479 = arith.negf %478 : vector<2x32xf32>
    %480 = math.exp %479 : vector<2x32xf32>
    %cst_139 = arith.constant 1.000000e+00 : f32
    %481 = vector.broadcast %cst_139 : f32 to vector<2x32xf32>
    %482 = arith.addf %481, %480 : vector<2x32xf32>
    %483 = arith.divf %481, %482 : vector<2x32xf32>
    %484 = arith.mulf %475, %415 : vector<2x32xf32>
    %485 = arith.mulf %469, %477 : vector<2x32xf32>
    %486 = arith.addf %484, %485 : vector<2x32xf32>
    %487 = math.tanh %486 : vector<2x32xf32>
    %488 = arith.mulf %483, %487 : vector<2x32xf32>
    %489 = vector.extract_strided_slice %463 {offsets = [0, 0], sizes = [2, 32], strides = [1, 1]} : vector<2x128xf32> to vector<2x32xf32>
    %490 = arith.negf %489 : vector<2x32xf32>
    %491 = math.exp %490 : vector<2x32xf32>
    %cst_140 = arith.constant 1.000000e+00 : f32
    %492 = vector.broadcast %cst_140 : f32 to vector<2x32xf32>
    %493 = arith.addf %492, %491 : vector<2x32xf32>
    %494 = arith.divf %492, %493 : vector<2x32xf32>
    %495 = vector.extract_strided_slice %463 {offsets = [0, 32], sizes = [2, 32], strides = [1, 1]} : vector<2x128xf32> to vector<2x32xf32>
    %496 = arith.negf %495 : vector<2x32xf32>
    %497 = math.exp %496 : vector<2x32xf32>
    %cst_141 = arith.constant 1.000000e+00 : f32
    %498 = vector.broadcast %cst_141 : f32 to vector<2x32xf32>
    %499 = arith.addf %498, %497 : vector<2x32xf32>
    %500 = arith.divf %498, %499 : vector<2x32xf32>
    %501 = vector.extract_strided_slice %463 {offsets = [0, 64], sizes = [2, 32], strides = [1, 1]} : vector<2x128xf32> to vector<2x32xf32>
    %502 = math.tanh %501 : vector<2x32xf32>
    %503 = vector.extract_strided_slice %463 {offsets = [0, 96], sizes = [2, 32], strides = [1, 1]} : vector<2x128xf32> to vector<2x32xf32>
    %504 = arith.negf %503 : vector<2x32xf32>
    %505 = math.exp %504 : vector<2x32xf32>
    %cst_142 = arith.constant 1.000000e+00 : f32
    %506 = vector.broadcast %cst_142 : f32 to vector<2x32xf32>
    %507 = arith.addf %506, %505 : vector<2x32xf32>
    %508 = arith.divf %506, %507 : vector<2x32xf32>
    %509 = arith.mulf %500, %440 : vector<2x32xf32>
    %510 = arith.mulf %494, %502 : vector<2x32xf32>
    %511 = arith.addf %509, %510 : vector<2x32xf32>
    %512 = math.tanh %511 : vector<2x32xf32>
    %513 = arith.mulf %508, %512 : vector<2x32xf32>
    %514 = arith.index_cast %c6_i32 : i32 to index
    %c0_143 = arith.constant 0 : index
    %c0_144 = arith.constant 0 : index
    %515 = vector.load %arg27[%514, %c0_143, %c0_144] : memref<8x2x32xf32, #tpu.memory_space<vmem>>, vector<1x2x32xf32>
    %516 = vector.shape_cast %515 : vector<1x2x32xf32> to vector<2x32xf32>
    %517 = vector.shape_cast %488 : vector<2x32xf32> to vector<1x2x32xf32>
    tpu.vector_store %arg27[%514, %c0_143, %c0_144], %517 {strides = array<i32>} : memref<8x2x32xf32, #tpu.memory_space<vmem>>, vector<1x2x32xf32>,
    %518 = arith.index_cast %451 : i32 to index
    %c0_145 = arith.constant 0 : index
    %c0_146 = arith.constant 0 : index
    %519 = vector.load %arg28[%518, %c0_145, %c0_146] : memref<8x2x32xf32, #tpu.memory_space<vmem>>, vector<1x2x32xf32>
    %520 = vector.shape_cast %519 : vector<1x2x32xf32> to vector<2x32xf32>
    %521 = vector.shape_cast %513 : vector<2x32xf32> to vector<1x2x32xf32>
    tpu.vector_store %arg28[%518, %c0_145, %c0_146], %521 {strides = array<i32>} : memref<8x2x32xf32, #tpu.memory_space<vmem>>, vector<1x2x32xf32>,
    %c7_i32_147 = arith.constant 7 : i32
    %c7_i32_148 = arith.constant 7 : i32
    %522 = arith.subi %c7_i32_148, %c7_i32_147 : i32
    %523 = arith.index_cast %c7_i32_147 : i32 to index
    %c0_149 = arith.constant 0 : index
    %c0_150 = arith.constant 0 : index
    %524 = vector.load %arg25[%523, %c0_149, %c0_150] : memref<8x2x128xf32, #tpu.memory_space<vmem>>, vector<1x2x128xf32>
    %525 = vector.shape_cast %524 : vector<1x2x128xf32> to vector<2x128xf32>
    %526 = arith.truncf %488 : vector<2x32xf32> to vector<2x32xbf16>
    %cst_151 = arith.constant dense<0.000000e+00> : vector<2x128xf32>
    %527 = tpu.matmul %526, %0, %cst_151 {dimension_numbers = #tpu.dot_dimension_numbers<[1], [0], [0], [1], [0, 0, 1, 1], [], []>} : vector<2x32xbf16>, vector<32x128xbf16>, vector<2x128xf32> -> vector<2x128xf32>
    %528 = arith.addf %525, %527 : vector<2x128xf32>
    %529 = arith.index_cast %522 : i32 to index
    %c0_152 = arith.constant 0 : index
    %c0_153 = arith.constant 0 : index
    %530 = vector.load %arg26[%529, %c0_152, %c0_153] : memref<8x2x128xf32, #tpu.memory_space<vmem>>, vector<1x2x128xf32>
    %531 = vector.shape_cast %530 : vector<1x2x128xf32> to vector<2x128xf32>
    %532 = arith.truncf %513 : vector<2x32xf32> to vector<2x32xbf16>
    %cst_154 = arith.constant dense<0.000000e+00> : vector<2x128xf32>
    %533 = tpu.matmul %532, %1, %cst_154 {dimension_numbers = #tpu.dot_dimension_numbers<[1], [0], [0], [1], [0, 0, 1, 1], [], []>} : vector<2x32xbf16>, vector<32x128xbf16>, vector<2x128xf32> -> vector<2x128xf32>
    %534 = arith.addf %531, %533 : vector<2x128xf32>
    %535 = vector.extract_strided_slice %528 {offsets = [0, 0], sizes = [2, 32], strides = [1, 1]} : vector<2x128xf32> to vector<2x32xf32>
    %536 = arith.negf %535 : vector<2x32xf32>
    %537 = math.exp %536 : vector<2x32xf32>
    %cst_155 = arith.constant 1.000000e+00 : f32
    %538 = vector.broadcast %cst_155 : f32 to vector<2x32xf32>
    %539 = arith.addf %538, %537 : vector<2x32xf32>
    %540 = arith.divf %538, %539 : vector<2x32xf32>
    %541 = vector.extract_strided_slice %528 {offsets = [0, 32], sizes = [2, 32], strides = [1, 1]} : vector<2x128xf32> to vector<2x32xf32>
    %542 = arith.negf %541 : vector<2x32xf32>
    %543 = math.exp %542 : vector<2x32xf32>
    %cst_156 = arith.constant 1.000000e+00 : f32
    %544 = vector.broadcast %cst_156 : f32 to vector<2x32xf32>
    %545 = arith.addf %544, %543 : vector<2x32xf32>
    %546 = arith.divf %544, %545 : vector<2x32xf32>
    %547 = vector.extract_strided_slice %528 {offsets = [0, 64], sizes = [2, 32], strides = [1, 1]} : vector<2x128xf32> to vector<2x32xf32>
    %548 = math.tanh %547 : vector<2x32xf32>
    %549 = vector.extract_strided_slice %528 {offsets = [0, 96], sizes = [2, 32], strides = [1, 1]} : vector<2x128xf32> to vector<2x32xf32>
    %550 = arith.negf %549 : vector<2x32xf32>
    %551 = math.exp %550 : vector<2x32xf32>
    %cst_157 = arith.constant 1.000000e+00 : f32
    %552 = vector.broadcast %cst_157 : f32 to vector<2x32xf32>
    %553 = arith.addf %552, %551 : vector<2x32xf32>
    %554 = arith.divf %552, %553 : vector<2x32xf32>
    %555 = arith.mulf %546, %486 : vector<2x32xf32>
    %556 = arith.mulf %540, %548 : vector<2x32xf32>
    %557 = arith.addf %555, %556 : vector<2x32xf32>
    %558 = math.tanh %557 : vector<2x32xf32>
    %559 = arith.mulf %554, %558 : vector<2x32xf32>
    %560 = vector.extract_strided_slice %534 {offsets = [0, 0], sizes = [2, 32], strides = [1, 1]} : vector<2x128xf32> to vector<2x32xf32>
    %561 = arith.negf %560 : vector<2x32xf32>
    %562 = math.exp %561 : vector<2x32xf32>
    %cst_158 = arith.constant 1.000000e+00 : f32
    %563 = vector.broadcast %cst_158 : f32 to vector<2x32xf32>
    %564 = arith.addf %563, %562 : vector<2x32xf32>
    %565 = arith.divf %563, %564 : vector<2x32xf32>
    %566 = vector.extract_strided_slice %534 {offsets = [0, 32], sizes = [2, 32], strides = [1, 1]} : vector<2x128xf32> to vector<2x32xf32>
    %567 = arith.negf %566 : vector<2x32xf32>
    %568 = math.exp %567 : vector<2x32xf32>
    %cst_159 = arith.constant 1.000000e+00 : f32
    %569 = vector.broadcast %cst_159 : f32 to vector<2x32xf32>
    %570 = arith.addf %569, %568 : vector<2x32xf32>
    %571 = arith.divf %569, %570 : vector<2x32xf32>
    %572 = vector.extract_strided_slice %534 {offsets = [0, 64], sizes = [2, 32], strides = [1, 1]} : vector<2x128xf32> to vector<2x32xf32>
    %573 = math.tanh %572 : vector<2x32xf32>
    %574 = vector.extract_strided_slice %534 {offsets = [0, 96], sizes = [2, 32], strides = [1, 1]} : vector<2x128xf32> to vector<2x32xf32>
    %575 = arith.negf %574 : vector<2x32xf32>
    %576 = math.exp %575 : vector<2x32xf32>
    %cst_160 = arith.constant 1.000000e+00 : f32
    %577 = vector.broadcast %cst_160 : f32 to vector<2x32xf32>
    %578 = arith.addf %577, %576 : vector<2x32xf32>
    %579 = arith.divf %577, %578 : vector<2x32xf32>
    %580 = arith.mulf %571, %511 : vector<2x32xf32>
    %581 = arith.mulf %565, %573 : vector<2x32xf32>
    %582 = arith.addf %580, %581 : vector<2x32xf32>
    %583 = math.tanh %582 : vector<2x32xf32>
    %584 = arith.mulf %579, %583 : vector<2x32xf32>
    %585 = arith.index_cast %c7_i32_147 : i32 to index
    %c0_161 = arith.constant 0 : index
    %c0_162 = arith.constant 0 : index
    %586 = vector.load %arg27[%585, %c0_161, %c0_162] : memref<8x2x32xf32, #tpu.memory_space<vmem>>, vector<1x2x32xf32>
    %587 = vector.shape_cast %586 : vector<1x2x32xf32> to vector<2x32xf32>
    %588 = vector.shape_cast %559 : vector<2x32xf32> to vector<1x2x32xf32>
    tpu.vector_store %arg27[%585, %c0_161, %c0_162], %588 {strides = array<i32>} : memref<8x2x32xf32, #tpu.memory_space<vmem>>, vector<1x2x32xf32>,
    %589 = arith.index_cast %522 : i32 to index
    %c0_163 = arith.constant 0 : index
    %c0_164 = arith.constant 0 : index
    %590 = vector.load %arg28[%589, %c0_163, %c0_164] : memref<8x2x32xf32, #tpu.memory_space<vmem>>, vector<1x2x32xf32>
    %591 = vector.shape_cast %590 : vector<1x2x32xf32> to vector<2x32xf32>
    %592 = vector.shape_cast %584 : vector<2x32xf32> to vector<1x2x32xf32>
    tpu.vector_store %arg28[%589, %c0_163, %c0_164], %592 {strides = array<i32>} : memref<8x2x32xf32, #tpu.memory_space<vmem>>, vector<1x2x32xf32>,
    %c8_i32 = arith.constant 8 : i32
    %c0_165 = arith.constant 0 : index
    %c0_166 = arith.constant 0 : index
    %c0_167 = arith.constant 0 : index
    %593 = vector.load %arg27[%c0_165, %c0_166, %c0_167] : memref<8x2x32xf32, #tpu.memory_space<vmem>>, vector<8x2x32xf32>
    %594 = tpu.transpose %593, [1, 0, 2] : vector<8x2x32xf32> -> vector<2x8x32xf32>
    %595 = arith.truncf %594 : vector<2x8x32xf32> to vector<2x8x32xbf16>
    %c0_168 = arith.constant 0 : index
    %c0_169 = arith.constant 0 : index
    %c0_170 = arith.constant 0 : index
    %596 = vector.load %arg28[%c0_168, %c0_169, %c0_170] : memref<8x2x32xf32, #tpu.memory_space<vmem>>, vector<8x2x32xf32>
    %597 = tpu.transpose %596, [1, 0, 2] : vector<8x2x32xf32> -> vector<2x8x32xf32>
    %598 = arith.truncf %597 : vector<2x8x32xf32> to vector<2x8x32xbf16>
    %599 = tpu.concatenate %595, %598 in 2 : vector<2x8x32xbf16>, vector<2x8x32xbf16> -> vector<2x8x64xbf16>
    %600 = vector.shape_cast %599 : vector<2x8x64xbf16> to vector<16x64xbf16>
    %c0_171 = arith.constant 0 : index
    %c0_172 = arith.constant 0 : index
    %601 = vector.load %arg13[%c0_171, %c0_172] : memref<64x16xbf16, #tpu.memory_space<vmem>>, vector<64x16xbf16>
    %cst_173 = arith.constant dense<0.000000e+00> : vector<16x16xf32>
    %602 = tpu.matmul %600, %601, %cst_173 {dimension_numbers = #tpu.dot_dimension_numbers<[1], [0], [0], [1], [0, 0, 1, 1], [], []>} : vector<16x64xbf16>, vector<64x16xbf16>, vector<16x16xf32> -> vector<16x16xf32>
    %c0_174 = arith.constant 0 : index
    %c0_175 = arith.constant 0 : index
    %603 = vector.load %arg14[%c0_174, %c0_175] : memref<1x16xf32, #tpu.memory_space<vmem>>, vector<1x16xf32>
    %604 = vector.broadcast %603 : vector<1x16xf32> to vector<16x16xf32>
    %605 = arith.addf %602, %604 : vector<16x16xf32>
    %606 = math.tanh %605 : vector<16x16xf32>
    %607 = arith.truncf %606 : vector<16x16xf32> to vector<16x16xbf16>
    %c0_176 = arith.constant 0 : index
    %c0_177 = arith.constant 0 : index
    %608 = vector.load %arg15[%c0_176, %c0_177] : memref<16x4xbf16, #tpu.memory_space<vmem>>, vector<16x4xbf16>
    %cst_178 = arith.constant dense<0.000000e+00> : vector<16x4xf32>
    %609 = tpu.matmul %607, %608, %cst_178 {dimension_numbers = #tpu.dot_dimension_numbers<[1], [0], [0], [1], [0, 0, 1, 1], [], []>} : vector<16x16xbf16>, vector<16x4xbf16>, vector<16x4xf32> -> vector<16x4xf32>
    %c0_179 = arith.constant 0 : index
    %c0_180 = arith.constant 0 : index
    %610 = vector.load %arg16[%c0_179, %c0_180] : memref<1x4xf32, #tpu.memory_space<vmem>>, vector<1x4xf32>
    %611 = vector.broadcast %610 : vector<1x4xf32> to vector<16x4xf32>
    %612 = arith.addf %609, %611 : vector<16x4xf32>
    %613 = vector.shape_cast %612 : vector<16x4xf32> to vector<2x8x4xf32>
    %614 = tpu.transpose %613, [0, 2, 1] : vector<2x8x4xf32> -> vector<2x4x8xf32>
    %cst_181 = arith.constant dense<0xFF800000> : vector<2x4xf32>
    %615 = vector.multi_reduction <maximumf>, %614, %cst_181 [2] : vector<2x4x8xf32> to vector<2x4xf32>
    %616 = vector.shape_cast %615 : vector<2x4xf32> to vector<2x4x1xf32>
    %617 = vector.broadcast %616 : vector<2x4x1xf32> to vector<2x4x8xf32>
    %618 = arith.subf %614, %617 : vector<2x4x8xf32>
    %619 = math.exp %618 : vector<2x4x8xf32>
    %cst_182 = arith.constant dense<0.000000e+00> : vector<2x4xf32>
    %620 = vector.multi_reduction <add>, %619, %cst_182 [2] : vector<2x4x8xf32> to vector<2x4xf32>
    %621 = vector.shape_cast %620 : vector<2x4xf32> to vector<2x4x1xf32>
    %622 = tpu.reciprocal %621 {approx = true} : vector<2x4x1xf32> -> vector<2x4x1xf32>
    %623 = vector.broadcast %622 : vector<2x4x1xf32> to vector<2x4x8xf32>
    %624 = arith.mulf %619, %623 : vector<2x4x8xf32>
    %625 = arith.truncf %624 : vector<2x4x8xf32> to vector<2x4x8xbf16>
    "tpu.trace_start"() <{level = 10 : i32, message = "bct,bth->bch"}> : () -> ()
    %cst_183 = arith.constant dense<0.000000e+00> : vector<2x4x64xf32>
    %626 = tpu.matmul %625, %599, %cst_183 {dimension_numbers = #tpu.dot_dimension_numbers<[2], [1], [1], [2], [0, 0, 0, 1, 1, 2], [0], [0]>} : vector<2x4x8xbf16>, vector<2x8x64xbf16>, vector<2x4x64xf32> -> vector<2x4x64xf32>
    "tpu.trace_stop"() : () -> ()
    %627 = vector.shape_cast %595 : vector<2x8x32xbf16> to vector<16x32xbf16>
    %c0_184 = arith.constant 0 : index
    %c0_185 = arith.constant 0 : index
    %628 = vector.load %arg12[%c0_184, %c0_185] : memref<32x4xbf16, #tpu.memory_space<vmem>>, vector<32x4xbf16>
    %cst_186 = arith.constant dense<0.000000e+00> : vector<16x4xf32>
    %629 = tpu.matmul %627, %628, %cst_186 {dimension_numbers = #tpu.dot_dimension_numbers<[1], [0], [0], [1], [0, 0, 1, 1], [], []>} : vector<16x32xbf16>, vector<32x4xbf16>, vector<16x4xf32> -> vector<16x4xf32>
    %630 = vector.shape_cast %598 : vector<2x8x32xbf16> to vector<16x32xbf16>
    %c0_187 = arith.constant 0 : index
    %c0_188 = arith.constant 0 : index
    %631 = vector.load %arg12[%c0_187, %c0_188] : memref<32x4xbf16, #tpu.memory_space<vmem>>, vector<32x4xbf16>
    %cst_189 = arith.constant dense<0.000000e+00> : vector<16x4xf32>
    %632 = tpu.matmul %630, %631, %cst_189 {dimension_numbers = #tpu.dot_dimension_numbers<[1], [0], [0], [1], [0, 0, 1, 1], [], []>} : vector<16x32xbf16>, vector<32x4xbf16>, vector<16x4xf32> -> vector<16x4xf32>
    %633 = vector.shape_cast %629 : vector<16x4xf32> to vector<2x8x4xf32>
    %634 = tpu.transpose %633, [0, 2, 1] : vector<2x8x4xf32> -> vector<2x4x8xf32>
    %635 = vector.shape_cast %632 : vector<16x4xf32> to vector<2x8x4xf32>
    %636 = tpu.transpose %635, [0, 2, 1] : vector<2x8x4xf32> -> vector<2x4x8xf32>
    %637 = arith.truncf %634 : vector<2x4x8xf32> to vector<2x4x8xbf16>
    "tpu.trace_start"() <{level = 10 : i32, message = "bct,bth->bch"}> : () -> ()
    %cst_190 = arith.constant dense<0.000000e+00> : vector<2x4x32xf32>
    %638 = tpu.matmul %637, %595, %cst_190 {dimension_numbers = #tpu.dot_dimension_numbers<[2], [1], [1], [2], [0, 0, 0, 1, 1, 2], [0], [0]>} : vector<2x4x8xbf16>, vector<2x8x32xbf16>, vector<2x4x32xf32> -> vector<2x4x32xf32>
    "tpu.trace_stop"() : () -> ()
    %639 = arith.truncf %636 : vector<2x4x8xf32> to vector<2x4x8xbf16>
    "tpu.trace_start"() <{level = 10 : i32, message = "bct,bth->bch"}> : () -> ()
    %cst_191 = arith.constant dense<0.000000e+00> : vector<2x4x32xf32>
    %640 = tpu.matmul %639, %598, %cst_191 {dimension_numbers = #tpu.dot_dimension_numbers<[2], [1], [1], [2], [0, 0, 0, 1, 1, 2], [0], [0]>} : vector<2x4x8xbf16>, vector<2x8x32xbf16>, vector<2x4x32xf32> -> vector<2x4x32xf32>
    "tpu.trace_stop"() : () -> ()
    %641 = tpu.concatenate %638, %640 in 2 : vector<2x4x32xf32>, vector<2x4x32xf32> -> vector<2x4x64xf32>
    %c0_192 = arith.constant 0 : index
    %c0_193 = arith.constant 0 : index
    %642 = vector.load %arg17[%c0_192, %c0_193] : memref<1x64xf32, #tpu.memory_space<vmem>>, vector<1x64xf32>
    %643 = vector.shape_cast %642 : vector<1x64xf32> to vector<1x1x64xf32>
    %644 = vector.broadcast %643 : vector<1x1x64xf32> to vector<2x4x64xf32>
    %645 = arith.mulf %641, %644 : vector<2x4x64xf32>
    %cst_194 = arith.constant dense<0.000000e+00> : vector<2x4xf32>
    %646 = vector.multi_reduction <add>, %645, %cst_194 [2] : vector<2x4x64xf32> to vector<2x4xf32>
    %647 = vector.shape_cast %646 : vector<2x4xf32> to vector<2x4x1xf32>
    %c0_195 = arith.constant 0 : index
    %c0_196 = arith.constant 0 : index
    %648 = vector.load %arg18[%c0_195, %c0_196] : memref<1x1xf32, #tpu.memory_space<vmem>>, vector<1x1xf32>
    %649 = vector.shape_cast %648 : vector<1x1xf32> to vector<1x1x1xf32>
    %650 = vector.broadcast %649 : vector<1x1x1xf32> to vector<2x4x1xf32>
    %651 = arith.addf %647, %650 : vector<2x4x1xf32>
    %652 = arith.negf %651 : vector<2x4x1xf32>
    %653 = math.exp %652 : vector<2x4x1xf32>
    %cst_197 = arith.constant 1.000000e+00 : f32
    %654 = vector.broadcast %cst_197 : f32 to vector<2x4x1xf32>
    %655 = arith.addf %654, %653 : vector<2x4x1xf32>
    %656 = arith.divf %654, %655 : vector<2x4x1xf32>
    %c0_198 = arith.constant 0 : index
    %c0_199 = arith.constant 0 : index
    %657 = vector.load %arg19[%c0_198, %c0_199] : memref<1x64xf32, #tpu.memory_space<vmem>>, vector<1x64xf32>
    %658 = vector.shape_cast %657 : vector<1x64xf32> to vector<1x1x64xf32>
    %659 = vector.broadcast %658 : vector<1x1x64xf32> to vector<2x4x64xf32>
    %660 = arith.mulf %626, %659 : vector<2x4x64xf32>
    %cst_200 = arith.constant dense<0.000000e+00> : vector<2x4xf32>
    %661 = vector.multi_reduction <add>, %660, %cst_200 [2] : vector<2x4x64xf32> to vector<2x4xf32>
    %662 = vector.shape_cast %661 : vector<2x4xf32> to vector<2x4x1xf32>
    %c0_201 = arith.constant 0 : index
    %c0_202 = arith.constant 0 : index
    %663 = vector.load %arg20[%c0_201, %c0_202] : memref<1x1xf32, #tpu.memory_space<vmem>>, vector<1x1xf32>
    %664 = vector.shape_cast %663 : vector<1x1xf32> to vector<1x1x1xf32>
    %665 = vector.broadcast %664 : vector<1x1x1xf32> to vector<2x4x1xf32>
    %666 = arith.addf %662, %665 : vector<2x4x1xf32>
    %667 = arith.negf %666 : vector<2x4x1xf32>
    %668 = math.exp %667 : vector<2x4x1xf32>
    %cst_203 = arith.constant 1.000000e+00 : f32
    %669 = vector.broadcast %cst_203 : f32 to vector<2x4x1xf32>
    %670 = arith.addf %669, %668 : vector<2x4x1xf32>
    %671 = arith.divf %669, %670 : vector<2x4x1xf32>
    %672 = arith.addf %656, %671 : vector<2x4x1xf32>
    %673 = tpu.reciprocal %672 {approx = true} : vector<2x4x1xf32> -> vector<2x4x1xf32>
    %674 = arith.mulf %656, %673 : vector<2x4x1xf32>
    %cst_204 = arith.constant 1.000000e+00 : f32
    %675 = vector.broadcast %cst_204 : f32 to vector<2x4x1xf32>
    %676 = arith.subf %675, %674 : vector<2x4x1xf32>
    %677 = vector.broadcast %674 : vector<2x4x1xf32> to vector<2x4x64xf32>
    %678 = arith.mulf %677, %641 : vector<2x4x64xf32>
    %679 = vector.broadcast %676 : vector<2x4x1xf32> to vector<2x4x64xf32>
    %680 = arith.mulf %679, %626 : vector<2x4x64xf32>
    %681 = arith.addf %678, %680 : vector<2x4x64xf32>
    %cst_205 = arith.constant dense<0.000000e+00> : vector<2x64xf32>
    %682 = vector.multi_reduction <add>, %681, %cst_205 [1] : vector<2x4x64xf32> to vector<2x64xf32>
    %cst_206 = arith.constant 2.500000e-01 : f32
    %683 = vector.broadcast %cst_206 : f32 to vector<2x64xf32>
    %684 = arith.mulf %682, %683 : vector<2x64xf32>
    %685 = arith.truncf %684 : vector<2x64xf32> to vector<2x64xbf16>
    %c0_207 = arith.constant 0 : index
    %c0_208 = arith.constant 0 : index
    %686 = vector.load %arg21[%c0_207, %c0_208] : memref<64x4xbf16, #tpu.memory_space<vmem>>, vector<64x4xbf16>
    %cst_209 = arith.constant dense<0.000000e+00> : vector<2x4xf32>
    %687 = tpu.matmul %685, %686, %cst_209 {dimension_numbers = #tpu.dot_dimension_numbers<[1], [0], [0], [1], [0, 0, 1, 1], [], []>} : vector<2x64xbf16>, vector<64x4xbf16>, vector<2x4xf32> -> vector<2x4xf32>
    %c0_210 = arith.constant 0 : index
    %c0_211 = arith.constant 0 : index
    %688 = vector.load %arg22[%c0_210, %c0_211] : memref<1x4xf32, #tpu.memory_space<vmem>>, vector<1x4xf32>
    %689 = vector.broadcast %688 : vector<1x4xf32> to vector<2x4xf32>
    %690 = arith.addf %687, %689 : vector<2x4xf32>
    %691 = arith.negf %690 : vector<2x4xf32>
    %692 = math.exp %691 : vector<2x4xf32>
    %cst_212 = arith.constant 1.000000e+00 : f32
    %693 = vector.broadcast %cst_212 : f32 to vector<2x4xf32>
    %694 = arith.addf %693, %692 : vector<2x4xf32>
    %695 = arith.divf %693, %694 : vector<2x4xf32>
    %c0_213 = arith.constant 0 : index
    %c0_214 = arith.constant 0 : index
    %696 = vector.load %arg23[%c0_213, %c0_214] : memref<2x4xf32, #tpu.memory_space<vmem>>, vector<2x4xf32>
    tpu.vector_store %arg23[%c0_213, %c0_214], %695 {strides = array<i32>} : memref<2x4xf32, #tpu.memory_space<vmem>>, vector<2x4xf32>,
    %697 = vector.broadcast %676 : vector<2x4x1xf32> to vector<2x4x8xf32>
    %698 = arith.addf %624, %697 : vector<2x4x8xf32>
    %c0_215 = arith.constant 0 : index
    %c0_216 = arith.constant 0 : index
    %c0_217 = arith.constant 0 : index
    %699 = vector.load %arg24[%c0_215, %c0_216, %c0_217] : memref<2x4x8xf32, #tpu.memory_space<vmem>>, vector<2x4x8xf32>
    tpu.vector_store %arg24[%c0_215, %c0_216, %c0_217], %698 {strides = array<i32>} : memref<2x4x8xf32, #tpu.memory_space<vmem>>, vector<2x4x8xf32>,
    return
  }
  func.func @transform_0(%arg0: i32) -> (i32, i32, i32) {
    %c0_i32 = arith.constant 0 : i32
    %c0_i32_0 = arith.constant 0 : i32
    %c0_i32_1 = arith.constant 0 : i32
    return %arg0, %c0_i32, %c0_i32_0 : i32, i32, i32
  }
  func.func @transform_1(%arg0: i32) -> (i32, i32) {
    %c0_i32 = arith.constant 0 : i32
    %c0_i32_0 = arith.constant 0 : i32
    %c0_i32_1 = arith.constant 0 : i32
    return %c0_i32, %c0_i32_0 : i32, i32
  }
  func.func @transform_2(%arg0: i32) -> (i32, i32) {
    %c0_i32 = arith.constant 0 : i32
    %c0_i32_0 = arith.constant 0 : i32
    %c0_i32_1 = arith.constant 0 : i32
    return %c0_i32, %c0_i32_0 : i32, i32
  }
  func.func @transform_3(%arg0: i32) -> (i32, i32) {
    %c0_i32 = arith.constant 0 : i32
    %c0_i32_0 = arith.constant 0 : i32
    %c0_i32_1 = arith.constant 0 : i32
    return %c0_i32, %c0_i32_0 : i32, i32
  }
  func.func @transform_4(%arg0: i32) -> (i32, i32) {
    %c0_i32 = arith.constant 0 : i32
    %c0_i32_0 = arith.constant 0 : i32
    %c0_i32_1 = arith.constant 0 : i32
    return %c0_i32, %c0_i32_0 : i32, i32
  }
  func.func @transform_5(%arg0: i32) -> (i32, i32) {
    %c0_i32 = arith.constant 0 : i32
    %c0_i32_0 = arith.constant 0 : i32
    %c0_i32_1 = arith.constant 0 : i32
    return %c0_i32, %c0_i32_0 : i32, i32
  }
  func.func @transform_6(%arg0: i32) -> (i32, i32) {
    %c0_i32 = arith.constant 0 : i32
    %c0_i32_0 = arith.constant 0 : i32
    %c0_i32_1 = arith.constant 0 : i32
    return %c0_i32, %c0_i32_0 : i32, i32
  }
  func.func @transform_7(%arg0: i32) -> (i32, i32) {
    %c0_i32 = arith.constant 0 : i32
    %c0_i32_0 = arith.constant 0 : i32
    return %arg0, %c0_i32 : i32, i32
  }
  func.func @transform_8(%arg0: i32) -> (i32, i32) {
    %c0_i32 = arith.constant 0 : i32
    %c0_i32_0 = arith.constant 0 : i32
    return %arg0, %c0_i32 : i32, i32
  }
  func.func @transform_9(%arg0: i32) -> (i32, i32) {
    %c0_i32 = arith.constant 0 : i32
    %c0_i32_0 = arith.constant 0 : i32
    return %arg0, %c0_i32 : i32, i32
  }
  func.func @transform_10(%arg0: i32) -> (i32, i32) {
    %c0_i32 = arith.constant 0 : i32
    %c0_i32_0 = arith.constant 0 : i32
    return %arg0, %c0_i32 : i32, i32
  }
  func.func @transform_11(%arg0: i32) -> (i32, i32) {
    %c0_i32 = arith.constant 0 : i32
    %c0_i32_0 = arith.constant 0 : i32
    %c0_i32_1 = arith.constant 0 : i32
    return %c0_i32, %c0_i32_0 : i32, i32
  }
  func.func @transform_12(%arg0: i32) -> (i32, i32) {
    %c0_i32 = arith.constant 0 : i32
    %c0_i32_0 = arith.constant 0 : i32
    %c0_i32_1 = arith.constant 0 : i32
    return %c0_i32, %c0_i32_0 : i32, i32
  }
  func.func @transform_13(%arg0: i32) -> (i32, i32) {
    %c0_i32 = arith.constant 0 : i32
    %c0_i32_0 = arith.constant 0 : i32
    %c0_i32_1 = arith.constant 0 : i32
    return %c0_i32, %c0_i32_0 : i32, i32
  }
  func.func @transform_14(%arg0: i32) -> (i32, i32) {
    %c0_i32 = arith.constant 0 : i32
    %c0_i32_0 = arith.constant 0 : i32
    %c0_i32_1 = arith.constant 0 : i32
    return %c0_i32, %c0_i32_0 : i32, i32
  }
  func.func @transform_15(%arg0: i32) -> (i32, i32) {
    %c0_i32 = arith.constant 0 : i32
    %c0_i32_0 = arith.constant 0 : i32
    %c0_i32_1 = arith.constant 0 : i32
    return %c0_i32, %c0_i32_0 : i32, i32
  }
  func.func @transform_16(%arg0: i32) -> (i32, i32) {
    %c0_i32 = arith.constant 0 : i32
    %c0_i32_0 = arith.constant 0 : i32
    %c0_i32_1 = arith.constant 0 : i32
    return %c0_i32, %c0_i32_0 : i32, i32
  }
  func.func @transform_17(%arg0: i32) -> (i32, i32) {
    %c0_i32 = arith.constant 0 : i32
    %c0_i32_0 = arith.constant 0 : i32
    %c0_i32_1 = arith.constant 0 : i32
    return %c0_i32, %c0_i32_0 : i32, i32
  }
  func.func @transform_18(%arg0: i32) -> (i32, i32) {
    %c0_i32 = arith.constant 0 : i32
    %c0_i32_0 = arith.constant 0 : i32
    %c0_i32_1 = arith.constant 0 : i32
    return %c0_i32, %c0_i32_0 : i32, i32
  }
  func.func @transform_19(%arg0: i32) -> (i32, i32) {
    %c0_i32 = arith.constant 0 : i32
    %c0_i32_0 = arith.constant 0 : i32
    %c0_i32_1 = arith.constant 0 : i32
    return %c0_i32, %c0_i32_0 : i32, i32
  }
  func.func @transform_20(%arg0: i32) -> (i32, i32) {
    %c0_i32 = arith.constant 0 : i32
    %c0_i32_0 = arith.constant 0 : i32
    %c0_i32_1 = arith.constant 0 : i32
    return %c0_i32, %c0_i32_0 : i32, i32
  }
  func.func @transform_21(%arg0: i32) -> (i32, i32) {
    %c0_i32 = arith.constant 0 : i32
    %c0_i32_0 = arith.constant 0 : i32
    %c0_i32_1 = arith.constant 0 : i32
    return %c0_i32, %c0_i32_0 : i32, i32
  }
  func.func @transform_22(%arg0: i32) -> (i32, i32) {
    %c0_i32 = arith.constant 0 : i32
    %c0_i32_0 = arith.constant 0 : i32
    return %arg0, %c0_i32 : i32, i32
  }
  func.func @transform_23(%arg0: i32) -> (i32, i32, i32) {
    %c0_i32 = arith.constant 0 : i32
    %c0_i32_0 = arith.constant 0 : i32
    %c0_i32_1 = arith.constant 0 : i32
    return %arg0, %c0_i32, %c0_i32_0 : i32, i32, i32
  }
}

</mosaic_0001>

<llo_original>
// kernel: structured_self_attention_forward.1
$region0: #{structured_self_attention_forward.1}
  #allocation0 [shape = 'u32[]', space=smem, size = 0x4, offset = 0x4, fixed_abs, tag = 'smem constant byte address 0x4 - core index']
  #allocation1 [shape = 'u32[144,128]{1,0:T(1,128)}', space=vmem, size = 0x12000, scoped, tag = 'internal scratch']
  #allocation2 [shape = 'f32[8,2,128]{2,1,0:T(2,128)}', space=vmem, size = 0x2000, scoped, tag = 'scratch operand']
  #allocation3 [shape = 'f32[8,2,128]{2,1,0:T(2,128)}', space=vmem, size = 0x2000, scoped, tag = 'scratch operand']
  #allocation4 [shape = 'f32[8,2,32]{2,1,0:T(2,128)}', space=vmem, size = 0x2000, scoped, tag = 'scratch operand']
  #allocation5 [shape = 'f32[8,2,32]{2,1,0:T(2,128)}', space=vmem, size = 0x2000, scoped, tag = 'scratch operand']
  #allocation6 [shape = 'f32[1,1]{1,0:T(1,128)S(1)}', space=vmem, size = 0x200, scoped, tag = 'scoped memory for structured_self_attention_forward.1']
  #allocation7 [shape = 'f32[1,1]{1,0:T(1,128)S(1)}', space=vmem, size = 0x200, scoped, tag = 'scoped memory for structured_self_attention_forward.1']
  %s0 = inlined_call_operand.hbm [shape: bf16[2,8,300], index: 0, kind: input, shape index: {}]
  %s1 = inlined_call_operand.hbm [shape: bf16[300,128], index: 1, kind: input, shape index: {}]
  %s2 = inlined_call_operand.hbm [shape: bf16[32,128], index: 2, kind: input, shape index: {}]
  %s3 = inlined_call_operand.hbm [shape: f32[1,128], index: 3, kind: input, shape index: {}]
  %s4 = inlined_call_operand.hbm [shape: bf16[300,128], index: 4, kind: input, shape index: {}]
  %s5 = inlined_call_operand.hbm [shape: bf16[32,128], index: 5, kind: input, shape index: {}]
  %s6 = inlined_call_operand.hbm [shape: f32[1,128], index: 6, kind: input, shape index: {}]
  %s7 = inlined_call_operand.hbm [shape: f32[2,32], index: 7, kind: input, shape index: {}]
  %s8 = inlined_call_operand.hbm [shape: f32[2,32], index: 8, kind: input, shape index: {}]
  %s9 = inlined_call_operand.hbm [shape: f32[2,32], index: 9, kind: input, shape index: {}]
  %s10 = inlined_call_operand.hbm [shape: f32[2,32], index: 10, kind: input, shape index: {}]
  %s11 = inlined_call_operand.hbm [shape: bf16[32,4], index: 11, kind: input, shape index: {}]
  %s12 = inlined_call_operand.hbm [shape: bf16[64,16], index: 12, kind: input, shape index: {}]
  %s13 = inlined_call_operand.hbm [shape: f32[1,16], index: 13, kind: input, shape index: {}]
  %s14 = inlined_call_operand.hbm [shape: bf16[16,4], index: 14, kind: input, shape index: {}]
  %s15 = inlined_call_operand.hbm [shape: f32[1,4], index: 15, kind: input, shape index: {}]
  %s16 = inlined_call_operand.hbm [shape: f32[1,64], index: 16, kind: input, shape index: {}]
  %s17 = inlined_call_operand.<no memory space> [shape: f32[1,1], index: 17, kind: input, shape index: {}]
  %s18 = inlined_call_operand.hbm [shape: f32[1,64], index: 18, kind: input, shape index: {}]
  %s19 = inlined_call_operand.<no memory space> [shape: f32[1,1], index: 19, kind: input, shape index: {}]
  %s20 = inlined_call_operand.hbm [shape: bf16[64,4], index: 20, kind: input, shape index: {}]
  %s21 = inlined_call_operand.hbm [shape: f32[1,4], index: 21, kind: input, shape index: {}]
  %s22 = inlined_call_operand.hbm [shape: f32[2,4], index: 22, kind: output, shape index: {0}]
  %s23 = inlined_call_operand.hbm [shape: f32[2,4,8], index: 23, kind: output, shape index: {1}]
  %24 = xla_tuple %s22, %s23
  %s25 = sld [smem:[#allocation0]]
  $region186: #{structured_self_attention_forward.1} parent=0
    _
  %s27 = ssub.s32 1, %s25
  %s28 = scalar_select 0, %s27, %s25
  %v29 = vstv %s17
  %30 = vst [vmem:[#allocation6] sm:$0x1] %v29
  %v31 = vstv %s19
  %32 = vst [vmem:[#allocation7] sm:$0x1] %v31
  $region1: #{structured_self_attention_forward.1} parent=0
    #allocation8 [shape = 'u8[12288]{0}', space=vmem, size = 0x3000, scoped, tag = 'input window, operand 0, single buffered']
    #allocation9 [shape = 's32[1]{0}', space=sflag, size = 0x4, scoped, tag = 'scoped memory for structured_self_attention_forward.1']
    #allocation10 [shape = 's32[1]{0}', space=sflag, size = 0x4, scoped, tag = 'scoped memory for structured_self_attention_forward.1']
    #allocation11 [shape = 'u8[77824]{0}', space=vmem, size = 0x13000, scoped, tag = 'input window, operand 1, single buffered']
    #allocation12 [shape = 's32[1]{0}', space=sflag, size = 0x4, scoped, tag = 'scoped memory for structured_self_attention_forward.1']
    #allocation13 [shape = 'u8[8192]{0}', space=vmem, size = 0x2000, scoped, tag = 'input window, operand 2, single buffered']
    #allocation14 [shape = 'u8[512]{0}', space=vmem, size = 0x400, scoped, tag = 'input window, operand 3, single buffered']
    #allocation15 [shape = 's32[1]{0}', space=sflag, size = 0x4, scoped, tag = 'scoped memory for structured_self_attention_forward.1']
    #allocation16 [shape = 'u8[77824]{0}', space=vmem, size = 0x13000, scoped, tag = 'input window, operand 4, single buffered']
    #allocation17 [shape = 'u8[8192]{0}', space=vmem, size = 0x2000, scoped, tag = 'input window, operand 5, single buffered']
    #allocation18 [shape = 's32[1]{0}', space=sflag, size = 0x4, scoped, tag = 'scoped memory for structured_self_attention_forward.1']
    #allocation19 [shape = 'u8[512]{0}', space=vmem, size = 0x400, scoped, tag = 'input window, operand 6, single buffered']
    #allocation20 [shape = 'u8[1024]{0}', space=vmem, size = 0x400, scoped, tag = 'input window, operand 7, single buffered']
    #allocation21 [shape = 's32[1]{0}', space=sflag, size = 0x4, scoped, tag = 'scoped memory for structured_self_attention_forward.1']
    #allocation22 [shape = 'u8[1024]{0}', space=vmem, size = 0x400, scoped, tag = 'input window, operand 8, single buffered']
    #allocation23 [shape = 'u8[1024]{0}', space=vmem, size = 0x400, scoped, tag = 'input window, operand 9, single buffered']
    #allocation24 [shape = 's32[1]{0}', space=sflag, size = 0x4, scoped, tag = 'scoped memory for structured_self_attention_forward.1']
    #allocation25 [shape = 'u8[1024]{0}', space=vmem, size = 0x400, scoped, tag = 'input window, operand 10, single buffered']
    #allocation26 [shape = 'u8[8192]{0}', space=vmem, size = 0x2000, scoped, tag = 'input window, operand 11, single buffered']
    #allocation27 [shape = 's32[1]{0}', space=sflag, size = 0x4, scoped, tag = 'scoped memory for structured_self_attention_forward.1']
    #allocation28 [shape = 'u8[16384]{0}', space=vmem, size = 0x4000, scoped, tag = 'input window, operand 12, single buffered']
    #allocation29 [shape = 'u8[512]{0}', space=vmem, size = 0x400, scoped, tag = 'input window, operand 13, single buffered']
    #allocation30 [shape = 's32[1]{0}', space=sflag, size = 0x4, scoped, tag = 'scoped memory for structured_self_attention_forward.1']
    #allocation31 [shape = 'u8[4096]{0}', space=vmem, size = 0x1000, scoped, tag = 'input window, operand 14, single buffered']
    #allocation32 [shape = 'u8[512]{0}', space=vmem, size = 0x400, scoped, tag = 'input window, operand 15, single buffered']
    #allocation33 [shape = 's32[1]{0}', space=sflag, size = 0x4, scoped, tag = 'scoped memory for structured_self_attention_forward.1']
    #allocation34 [shape = 'u8[512]{0}', space=vmem, size = 0x400, scoped, tag = 'input window, operand 16, single buffered']
    #allocation35 [shape = 'u8[512]{0}', space=vmem, size = 0x400, scoped, tag = 'input window, operand 18, single buffered']
    #allocation36 [shape = 's32[1]{0}', space=sflag, size = 0x4, scoped, tag = 'scoped memory for structured_self_attention_forward.1']
    #allocation37 [shape = 'u8[16384]{0}', space=vmem, size = 0x4000, scoped, tag = 'input window, operand 20, single buffered']
    #allocation38 [shape = 'u8[512]{0}', space=vmem, size = 0x400, scoped, tag = 'input window, operand 21, single buffered']
    #allocation39 [shape = 's32[1]{0}', space=sflag, size = 0x4, scoped, tag = 'scoped memory for structured_self_attention_forward.1']
    #allocation40 [shape = 'u8[1024]{0}', space=vmem, size = 0x400, scoped, tag = 'output window, operand 0, single buffered']
    #allocation41 [shape = 'u8[4096]{0}', space=vmem, size = 0x1000, scoped, tag = 'output window, operand 1, single buffered']
    #allocation42 [shape = 's32[1]{0}', space=sflag, size = 0x4, scoped, tag = 'scoped memory for structured_self_attention_forward.1']
    %33 = vsyncpa [#allocation9], 0
    %34 = vsyncpa [#allocation12], 0
    %35 = vsyncpa [#allocation15], 0
    %36 = vsyncpa [#allocation18], 0
    %37 = vsyncpa [#allocation21], 0
    %38 = vsyncpa [#allocation24], 0
    %39 = vsyncpa [#allocation27], 0
    %40 = vsyncpa [#allocation30], 0
    %41 = vsyncpa [#allocation33], 0
    %42 = vsyncpa [#allocation36], 0
    %43 = vsyncpa [#allocation39], 0
    %44 = vsyncpa [#allocation10], 0
    %45 = vsyncpa [#allocation42], 0
    // Predicated region
    $region2: #{structured_self_attention_forward.1} parent=1 // pred_check
      _
    $region3: #{structured_self_attention_forward.1} parent=1 // pred_check_branch
      %47 = sbr.rel (0) target = $region5
    $region4: #{structured_self_attention_forward.1} parent=1 // pred_region
      %s49 = ssub.s32 384, 384
      %50 = vsyncadd [#allocation9], %s49
      %s51 = sshll.u32 [#allocation8], 4
      %s52 = int_to_ptr.vmem [resolvable:$true] %s51
      %57 = dma.hbm_to_vmem [thread:$0]  %s0, 384, %s52, [#allocation9], 192, 192, 12
    $region5: #{structured_self_attention_forward.1} parent=1 // pred_fallthru
      _
    // Predicated region
    $region6: #{structured_self_attention_forward.1} parent=1 // pred_check
      _
    $region7: #{structured_self_attention_forward.1} parent=1 // pred_check_branch
      %59 = sbr.rel (0) target = $region9
    $region8: #{structured_self_attention_forward.1} parent=1 // pred_region
      %s61 = ssub.s32 2432, 2432
      %62 = vsyncadd [#allocation12], %s61
      %s63 = sshll.u32 [#allocation11], 4
      %s64 = int_to_ptr.vmem [resolvable:$true] %s63
      %69 = dma.hbm_to_vmem [thread:$0]  %s1, 2432, %s64, [#allocation12], 64, 64, 4
    $region9: #{structured_self_attention_forward.1} parent=1 // pred_fallthru
      _
    // Predicated region
    $region10: #{structured_self_attention_forward.1} parent=1 // pred_check
      _
    $region11: #{structured_self_attention_forward.1} parent=1 // pred_check_branch
      %71 = sbr.rel (0) target = $region13
    $region12: #{structured_self_attention_forward.1} parent=1 // pred_region
      %s73 = ssub.s32 256, 256
      %74 = vsyncadd [#allocation12], %s73
      %s75 = sshll.u32 [#allocation13], 4
      %s76 = int_to_ptr.vmem [resolvable:$true] %s75
      %81 = dma.hbm_to_vmem [thread:$0]  %s2, 256, %s76, [#allocation12], 64, 64, 4
    $region13: #{structured_self_attention_forward.1} parent=1 // pred_fallthru
      _
    // Predicated region
    $region14: #{structured_self_attention_forward.1} parent=1 // pred_check
      _
    $region15: #{structured_self_attention_forward.1} parent=1 // pred_check_branch
      %83 = sbr.rel (0) target = $region17
    $region16: #{structured_self_attention_forward.1} parent=1 // pred_region
      %s85 = ssub.s32 16, 16
      %86 = vsyncadd [#allocation15], %s85
      %s88 = sshll.u32 [#allocation14], 4
      %s89 = int_to_ptr.vmem [resolvable:$true] %s88
      %91 = dma.hbm_to_vmem [thread:$0]  %s3, 16, %s89, [#allocation15]
    $region17: #{structured_self_attention_forward.1} parent=1 // pred_fallthru
      _
    // Predicated region
    $region18: #{structured_self_attention_forward.1} parent=1 // pred_check
      _
    $region19: #{structured_self_attention_forward.1} parent=1 // pred_check_branch
      %93 = sbr.rel (0) target = $region21
    $region20: #{structured_self_attention_forward.1} parent=1 // pred_region
      %s95 = ssub.s32 2432, 2432
      %96 = vsyncadd [#allocation15], %s95
      %s97 = sshll.u32 [#allocation16], 4
      %s98 = int_to_ptr.vmem [resolvable:$true] %s97
      %103 = dma.hbm_to_vmem [thread:$0]  %s4, 2432, %s98, [#allocation15], 64, 64, 4
    $region21: #{structured_self_attention_forward.1} parent=1 // pred_fallthru
      _
    // Predicated region
    $region22: #{structured_self_attention_forward.1} parent=1 // pred_check
      _
    $region23: #{structured_self_attention_forward.1} parent=1 // pred_check_branch
      %105 = sbr.rel (0) target = $region25
    $region24: #{structured_self_attention_forward.1} parent=1 // pred_region
      %s107 = ssub.s32 256, 256
      %108 = vsyncadd [#allocation18], %s107
      %s109 = sshll.u32 [#allocation17], 4
      %s110 = int_to_ptr.vmem [resolvable:$true] %s109
      %115 = dma.hbm_to_vmem [thread:$0]  %s5, 256, %s110, [#allocation18], 64, 64, 4
    $region25: #{structured_self_attention_forward.1} parent=1 // pred_fallthru
      _
    // Predicated region
    $region26: #{structured_self_attention_forward.1} parent=1 // pred_check
      _
    $region27: #{structured_self_attention_forward.1} parent=1 // pred_check_branch
      %117 = sbr.rel (0) target = $region29
    $region28: #{structured_self_attention_forward.1} parent=1 // pred_region
      %s119 = ssub.s32 16, 16
      %120 = vsyncadd [#allocation18], %s119
      %s122 = sshll.u32 [#allocation19], 4
      %s123 = int_to_ptr.vmem [resolvable:$true] %s122
      %125 = dma.hbm_to_vmem [thread:$0]  %s6, 16, %s123, [#allocation18]
    $region29: #{structured_self_attention_forward.1} parent=1 // pred_fallthru
      _
    // Predicated region
    $region30: #{structured_self_attention_forward.1} parent=1 // pred_check
      _
    $region31: #{structured_self_attention_forward.1} parent=1 // pred_check_branch
      %127 = sbr.rel (0) target = $region33
    $region32: #{structured_self_attention_forward.1} parent=1 // pred_region
      %s129 = ssub.s32 32, 32
      %130 = vsyncadd [#allocation21], %s129
      %s132 = sshll.u32 [#allocation20], 4
      %s133 = int_to_ptr.vmem [resolvable:$true] %s132
      %135 = dma.hbm_to_vmem [thread:$0]  %s7, 32, %s133, [#allocation21]
    $region33: #{structured_self_attention_forward.1} parent=1 // pred_fallthru
      _
    // Predicated region
    $region34: #{structured_self_attention_forward.1} parent=1 // pred_check
      _
    $region35: #{structured_self_attention_forward.1} parent=1 // pred_check_branch
      %137 = sbr.rel (0) target = $region37
    $region36: #{structured_self_attention_forward.1} parent=1 // pred_region
      %s139 = ssub.s32 32, 32
      %140 = vsyncadd [#allocation21], %s139
      %s142 = sshll.u32 [#allocation22], 4
      %s143 = int_to_ptr.vmem [resolvable:$true] %s142
      %145 = dma.hbm_to_vmem [thread:$0]  %s8, 32, %s143, [#allocation21]
    $region37: #{structured_self_attention_forward.1} parent=1 // pred_fallthru
      _
    // Predicated region
    $region38: #{structured_self_attention_forward.1} parent=1 // pred_check
      _
    $region39: #{structured_self_attention_forward.1} parent=1 // pred_check_branch
      %147 = sbr.rel (0) target = $region41
    $region40: #{structured_self_attention_forward.1} parent=1 // pred_region
      %s149 = ssub.s32 32, 32
      %150 = vsyncadd [#allocation24], %s149
      %s152 = sshll.u32 [#allocation23], 4
      %s153 = int_to_ptr.vmem [resolvable:$true] %s152
      %155 = dma.hbm_to_vmem [thread:$0]  %s9, 32, %s153, [#allocation24]
    $region41: #{structured_self_attention_forward.1} parent=1 // pred_fallthru
      _
    // Predicated region
    $region42: #{structured_self_attention_forward.1} parent=1 // pred_check
      _
    $region43: #{structured_self_attention_forward.1} parent=1 // pred_check_branch
      %157 = sbr.rel (0) target = $region45
    $region44: #{structured_self_attention_forward.1} parent=1 // pred_region
      %s159 = ssub.s32 32, 32
      %160 = vsyncadd [#allocation24], %s159
      %s162 = sshll.u32 [#allocation25], 4
      %s163 = int_to_ptr.vmem [resolvable:$true] %s162
      %165 = dma.hbm_to_vmem [thread:$0]  %s10, 32, %s163, [#allocation24]
    $region45: #{structured_self_attention_forward.1} parent=1 // pred_fallthru
      _
    // Predicated region
    $region46: #{structured_self_attention_forward.1} parent=1 // pred_check
      _
    $region47: #{structured_self_attention_forward.1} parent=1 // pred_check_branch
      %167 = sbr.rel (0) target = $region49
    $region48: #{structured_self_attention_forward.1} parent=1 // pred_region
      %s169 = ssub.s32 256, 256
      %170 = vsyncadd [#allocation27], %s169
      %s171 = sshll.u32 [#allocation26], 4
      %s172 = int_to_ptr.vmem [resolvable:$true] %s171
      %177 = dma.hbm_to_vmem [thread:$0]  %s11, 256, %s172, [#allocation27], 64, 64, 4
    $region49: #{structured_self_attention_forward.1} parent=1 // pred_fallthru
      _
    // Predicated region
    $region50: #{structured_self_attention_forward.1} parent=1 // pred_check
      _
    $region51: #{structured_self_attention_forward.1} parent=1 // pred_check_branch
      %179 = sbr.rel (0) target = $region53
    $region52: #{structured_self_attention_forward.1} parent=1 // pred_region
      %s181 = ssub.s32 512, 512
      %182 = vsyncadd [#allocation27], %s181
      %s183 = sshll.u32 [#allocation28], 4
      %s184 = int_to_ptr.vmem [resolvable:$true] %s183
      %189 = dma.hbm_to_vmem [thread:$0]  %s12, 512, %s184, [#allocation27], 64, 64, 4
    $region53: #{structured_self_attention_forward.1} parent=1 // pred_fallthru
      _
    // Predicated region
    $region54: #{structured_self_attention_forward.1} parent=1 // pred_check
      _
    $region55: #{structured_self_attention_forward.1} parent=1 // pred_check_branch
      %191 = sbr.rel (0) target = $region57
    $region56: #{structured_self_attention_forward.1} parent=1 // pred_region
      %s193 = ssub.s32 16, 16
      %194 = vsyncadd [#allocation30], %s193
      %s196 = sshll.u32 [#allocation29], 4
      %s197 = int_to_ptr.vmem [resolvable:$true] %s196
      %199 = dma.hbm_to_vmem [thread:$0]  %s13, 16, %s197, [#allocation30]
    $region57: #{structured_self_attention_forward.1} parent=1 // pred_fallthru
      _
    // Predicated region
    $region58: #{structured_self_attention_forward.1} parent=1 // pred_check
      _
    $region59: #{structured_self_attention_forward.1} parent=1 // pred_check_branch
      %201 = sbr.rel (0) target = $region61
    $region60: #{structured_self_attention_forward.1} parent=1 // pred_region
      %s203 = ssub.s32 128, 128
      %204 = vsyncadd [#allocation30], %s203
      %s205 = sshll.u32 [#allocation31], 4
      %s206 = int_to_ptr.vmem [resolvable:$true] %s205
      %211 = dma.hbm_to_vmem [thread:$0]  %s14, 128, %s206, [#allocation30], 64, 64, 4
    $region61: #{structured_self_attention_forward.1} parent=1 // pred_fallthru
      _
    // Predicated region
    $region62: #{structured_self_attention_forward.1} parent=1 // pred_check
      _
    $region63: #{structured_self_attention_forward.1} parent=1 // pred_check_branch
      %213 = sbr.rel (0) target = $region65
    $region64: #{structured_self_attention_forward.1} parent=1 // pred_region
      %s215 = ssub.s32 16, 16
      %216 = vsyncadd [#allocation33], %s215
      %s218 = sshll.u32 [#allocation32], 4
      %s219 = int_to_ptr.vmem [resolvable:$true] %s218
      %221 = dma.hbm_to_vmem [thread:$0]  %s15, 16, %s219, [#allocation33]
    $region65: #{structured_self_attention_forward.1} parent=1 // pred_fallthru
      _
    // Predicated region
    $region66: #{structured_self_attention_forward.1} parent=1 // pred_check
      _
    $region67: #{structured_self_attention_forward.1} parent=1 // pred_check_branch
      %223 = sbr.rel (0) target = $region69
    $region68: #{structured_self_attention_forward.1} parent=1 // pred_region
      %s225 = ssub.s32 16, 16
      %226 = vsyncadd [#allocation33], %s225
      %s228 = sshll.u32 [#allocation34], 4
      %s229 = int_to_ptr.vmem [resolvable:$true] %s228
      %231 = dma.hbm_to_vmem [thread:$0]  %s16, 16, %s229, [#allocation33]
    $region69: #{structured_self_attention_forward.1} parent=1 // pred_fallthru
      _
    // Predicated region
    $region70: #{structured_self_attention_forward.1} parent=1 // pred_check
      _
    $region71: #{structured_self_attention_forward.1} parent=1 // pred_check_branch
      %233 = sbr.rel (0) target = $region73
    $region72: #{structured_self_attention_forward.1} parent=1 // pred_region
      _
    $region73: #{structured_self_attention_forward.1} parent=1 // pred_fallthru
      _
    // Predicated region
    $region74: #{structured_self_attention_forward.1} parent=1 // pred_check
      _
    $region75: #{structured_self_attention_forward.1} parent=1 // pred_check_branch
      %235 = sbr.rel (0) target = $region77
    $region76: #{structured_self_attention_forward.1} parent=1 // pred_region
      %s237 = ssub.s32 16, 16
      %238 = vsyncadd [#allocation36], %s237
      %s240 = sshll.u32 [#allocation35], 4
      %s241 = int_to_ptr.vmem [resolvable:$true] %s240
      %243 = dma.hbm_to_vmem [thread:$0]  %s18, 16, %s241, [#allocation36]
    $region77: #{structured_self_attention_forward.1} parent=1 // pred_fallthru
      _
    // Predicated region
    $region78: #{structured_self_attention_forward.1} parent=1 // pred_check
      _
    $region79: #{structured_self_attention_forward.1} parent=1 // pred_check_branch
      %245 = sbr.rel (0) target = $region81
    $region80: #{structured_self_attention_forward.1} parent=1 // pred_region
      _
    $region81: #{structured_self_attention_forward.1} parent=1 // pred_fallthru
      _
    // Predicated region
    $region82: #{structured_self_attention_forward.1} parent=1 // pred_check
      _
    $region83: #{structured_self_attention_forward.1} parent=1 // pred_check_branch
      %247 = sbr.rel (0) target = $region85
    $region84: #{structured_self_attention_forward.1} parent=1 // pred_region
      %s249 = ssub.s32 512, 512
      %250 = vsyncadd [#allocation36], %s249
      %s251 = sshll.u32 [#allocation37], 4
      %s252 = int_to_ptr.vmem [resolvable:$true] %s251
      %257 = dma.hbm_to_vmem [thread:$0]  %s20, 512, %s252, [#allocation36], 64, 64, 4
    $region85: #{structured_self_attention_forward.1} parent=1 // pred_fallthru
      _
    // Predicated region
    $region86: #{structured_self_attention_forward.1} parent=1 // pred_check
      _
    $region87: #{structured_self_attention_forward.1} parent=1 // pred_check_branch
      %259 = sbr.rel (0) target = $region89
    $region88: #{structured_self_attention_forward.1} parent=1 // pred_region
      %s261 = ssub.s32 16, 16
      %262 = vsyncadd [#allocation39], %s261
      %s264 = sshll.u32 [#allocation38], 4
      %s265 = int_to_ptr.vmem [resolvable:$true] %s264
      %267 = dma.hbm_to_vmem [thread:$0]  %s21, 16, %s265, [#allocation39]
    $region89: #{structured_self_attention_forward.1} parent=1 // pred_fallthru
      _
    // Predicated region
    $region90: #{structured_self_attention_forward.1} parent=1 // pred_check
      _
    $region91: #{structured_self_attention_forward.1} parent=1 // pred_check_branch
      %269 = sbr.rel (0) target = $region93
    $region92: #{structured_self_attention_forward.1} parent=1 // pred_region
      %270 = dma.done [#allocation9], 384
    $region93: #{structured_self_attention_forward.1} parent=1 // pred_fallthru
      _
    // Predicated region
    $region94: #{structured_self_attention_forward.1} parent=1 // pred_check
      _
    $region95: #{structured_self_attention_forward.1} parent=1 // pred_check_branch
      %272 = sbr.rel (0) target = $region97
    $region96: #{structured_self_attention_forward.1} parent=1 // pred_region
      %273 = dma.done [#allocation12], 2432
    $region97: #{structured_self_attention_forward.1} parent=1 // pred_fallthru
      _
    // Predicated region
    $region98: #{structured_self_attention_forward.1} parent=1 // pred_check
      _
    $region99: #{structured_self_attention_forward.1} parent=1 // pred_check_branch
      %275 = sbr.rel (0) target = $region101
    $region100: #{structured_self_attention_forward.1} parent=1 // pred_region
      %276 = dma.done [#allocation12], 256
    $region101: #{structured_self_attention_forward.1} parent=1 // pred_fallthru
      _
    // Predicated region
    $region102: #{structured_self_attention_forward.1} parent=1 // pred_check
      _
    $region103: #{structured_self_attention_forward.1} parent=1 // pred_check_branch
      %278 = sbr.rel (0) target = $region105
    $region104: #{structured_self_attention_forward.1} parent=1 // pred_region
      %279 = dma.done [#allocation15], 16
    $region105: #{structured_self_attention_forward.1} parent=1 // pred_fallthru
      _
    // Predicated region
    $region106: #{structured_self_attention_forward.1} parent=1 // pred_check
      _
    $region107: #{structured_self_attention_forward.1} parent=1 // pred_check_branch
      %281 = sbr.rel (0) target = $region109
    $region108: #{structured_self_attention_forward.1} parent=1 // pred_region
      %282 = dma.done [#allocation15], 2432
    $region109: #{structured_self_attention_forward.1} parent=1 // pred_fallthru
      _
    // Predicated region
    $region110: #{structured_self_attention_forward.1} parent=1 // pred_check
      _
    $region111: #{structured_self_attention_forward.1} parent=1 // pred_check_branch
      %284 = sbr.rel (0) target = $region113
    $region112: #{structured_self_attention_forward.1} parent=1 // pred_region
      %285 = dma.done [#allocation18], 256
    $region113: #{structured_self_attention_forward.1} parent=1 // pred_fallthru
      _
    // Predicated region
    $region114: #{structured_self_attention_forward.1} parent=1 // pred_check
      _
    $region115: #{structured_self_attention_forward.1} parent=1 // pred_check_branch
      %287 = sbr.rel (0) target = $region117
    $region116: #{structured_self_attention_forward.1} parent=1 // pred_region
      %288 = dma.done [#allocation18], 16
    $region117: #{structured_self_attention_forward.1} parent=1 // pred_fallthru
      _
    // Predicated region
    $region118: #{structured_self_attention_forward.1} parent=1 // pred_check
      _
    $region119: #{structured_self_attention_forward.1} parent=1 // pred_check_branch
      %290 = sbr.rel (0) target = $region121
    $region120: #{structured_self_attention_forward.1} parent=1 // pred_region
      %291 = dma.done [#allocation21], 32
    $region121: #{structured_self_attention_forward.1} parent=1 // pred_fallthru
      _
    // Predicated region
    $region122: #{structured_self_attention_forward.1} parent=1 // pred_check
      _
    $region123: #{structured_self_attention_forward.1} parent=1 // pred_check_branch
      %293 = sbr.rel (0) target = $region125
    $region124: #{structured_self_attention_forward.1} parent=1 // pred_region
      %294 = dma.done [#allocation21], 32
    $region125: #{structured_self_attention_forward.1} parent=1 // pred_fallthru
      _
    // Predicated region
    $region126: #{structured_self_attention_forward.1} parent=1 // pred_check
      _
    $region127: #{structured_self_attention_forward.1} parent=1 // pred_check_branch
      %296 = sbr.rel (0) target = $region129
    $region128: #{structured_self_attention_forward.1} parent=1 // pred_region
      %297 = dma.done [#allocation24], 32
    $region129: #{structured_self_attention_forward.1} parent=1 // pred_fallthru
      _
    // Predicated region
    $region130: #{structured_self_attention_forward.1} parent=1 // pred_check
      _
    $region131: #{structured_self_attention_forward.1} parent=1 // pred_check_branch
      %299 = sbr.rel (0) target = $region133
    $region132: #{structured_self_attention_forward.1} parent=1 // pred_region
      %300 = dma.done [#allocation24], 32
    $region133: #{structured_self_attention_forward.1} parent=1 // pred_fallthru
      _
    // Predicated region
    $region134: #{structured_self_attention_forward.1} parent=1 // pred_check
      _
    $region135: #{structured_self_attention_forward.1} parent=1 // pred_check_branch
      %302 = sbr.rel (0) target = $region137
    $region136: #{structured_self_attention_forward.1} parent=1 // pred_region
      %303 = dma.done [#allocation27], 256
    $region137: #{structured_self_attention_forward.1} parent=1 // pred_fallthru
      _
    // Predicated region
    $region138: #{structured_self_attention_forward.1} parent=1 // pred_check
      _
    $region139: #{structured_self_attention_forward.1} parent=1 // pred_check_branch
      %305 = sbr.rel (0) target = $region141
    $region140: #{structured_self_attention_forward.1} parent=1 // pred_region
      %306 = dma.done [#allocation27], 512
    $region141: #{structured_self_attention_forward.1} parent=1 // pred_fallthru
      _
    // Predicated region
    $region142: #{structured_self_attention_forward.1} parent=1 // pred_check
      _
    $region143: #{structured_self_attention_forward.1} parent=1 // pred_check_branch
      %308 = sbr.rel (0) target = $region145
    $region144: #{structured_self_attention_forward.1} parent=1 // pred_region
      %309 = dma.done [#allocation30], 16
    $region145: #{structured_self_attention_forward.1} parent=1 // pred_fallthru
      _
    // Predicated region
    $region146: #{structured_self_attention_forward.1} parent=1 // pred_check
      _
    $region147: #{structured_self_attention_forward.1} parent=1 // pred_check_branch
      %311 = sbr.rel (0) target = $region149
    $region148: #{structured_self_attention_forward.1} parent=1 // pred_region
      %312 = dma.done [#allocation30], 128
    $region149: #{structured_self_attention_forward.1} parent=1 // pred_fallthru
      _
    // Predicated region
    $region150: #{structured_self_attention_forward.1} parent=1 // pred_check
      _
    $region151: #{structured_self_attention_forward.1} parent=1 // pred_check_branch
      %314 = sbr.rel (0) target = $region153
    $region152: #{structured_self_attention_forward.1} parent=1 // pred_region
      %315 = dma.done [#allocation33], 16
    $region153: #{structured_self_attention_forward.1} parent=1 // pred_fallthru
      _
    // Predicated region
    $region154: #{structured_self_attention_forward.1} parent=1 // pred_check
      _
    $region155: #{structured_self_attention_forward.1} parent=1 // pred_check_branch
      %317 = sbr.rel (0) target = $region157
    $region156: #{structured_self_attention_forward.1} parent=1 // pred_region
      %318 = dma.done [#allocation33], 16
    $region157: #{structured_self_attention_forward.1} parent=1 // pred_fallthru
      _
    // Predicated region
    $region158: #{structured_self_attention_forward.1} parent=1 // pred_check
      _
    $region159: #{structured_self_attention_forward.1} parent=1 // pred_check_branch
      %320 = sbr.rel (0) target = $region161
    $region160: #{structured_self_attention_forward.1} parent=1 // pred_region
      %321 = dma.done [#allocation36], 16
    $region161: #{structured_self_attention_forward.1} parent=1 // pred_fallthru
      _
    // Predicated region
    $region162: #{structured_self_attention_forward.1} parent=1 // pred_check
      _
    $region163: #{structured_self_attention_forward.1} parent=1 // pred_check_branch
      %323 = sbr.rel (0) target = $region165
    $region164: #{structured_self_attention_forward.1} parent=1 // pred_region
      %324 = dma.done [#allocation36], 512
    $region165: #{structured_self_attention_forward.1} parent=1 // pred_fallthru
      _
    // Predicated region
    $region166: #{structured_self_attention_forward.1} parent=1 // pred_check
      _
    $region167: #{structured_self_attention_forward.1} parent=1 // pred_check_branch
      %326 = sbr.rel (0) target = $region169
    $region168: #{structured_self_attention_forward.1} parent=1 // pred_region
      %327 = dma.done [#allocation39], 16
    $region169: #{structured_self_attention_forward.1} parent=1 // pred_fallthru
      _
    %v329 = vld [vmem:[#allocation13] sm:$0xf]
    %v330 = vld [vmem:[#allocation13 + $0x4] sm:$0xf]
    %v331 = vld [vmem:[#allocation13 + $0x8] sm:$0xf]
    %v332 = vld [vmem:[#allocation13 + $0xc] sm:$0xf]
    %v333 = vld [vmem:[#allocation17] sm:$0xf]
    %v334 = vld [vmem:[#allocation17 + $0x4] sm:$0xf]
    %v335 = vld [vmem:[#allocation17 + $0x8] sm:$0xf]
    %v336 = vld [vmem:[#allocation17 + $0xc] sm:$0xf]
    %v337 = vld [vmem:[#allocation8] sm:$0xff]
    %v338 = vld [vmem:[#allocation8 + $0x8] sm:$0xf]
    %v339 = vld [vmem:[#allocation8 + $0xc] sm:$0xff]
    %v340 = vld [vmem:[#allocation8 + $0x14] sm:$0xf]
    %v343 = vpack.i.b16 %v339, %v337
    %v345 = vshrl.u32 %v337, 16
    %v346 = vshrl.u32 %v339, 16
    %v347 = vpack.i.b16 %v346, %v345
    %v350 = vpack.i.b16 0, 0
    %v352 = vshrl.u32 0, 16
    %v353 = vpack.i.b16 %v352, %v352
    %v357 = vpack.i.b16 %v340, %v338
    %v358 = vshrl.u32 %v338, 16
    %v359 = vshrl.u32 %v340, 16
    %v360 = vpack.i.b16 %v359, %v358
    %v361 = vcombine.high %v343, %v350
    %v363 = vunpack.c.l.s4 1983009808
    %v364 = vunpack.c.0.s8 %v363
    %v365 = vlaneseq
    %v366 = vshrl.u32 %v365, 7
    %v367 = vsub.s32 %v364, %v366
    %v368 = vrot.slane %v343, %v367
    %v370 = vunpack.c.l.s4 1983009808
    %v371 = vunpack.c.0.s8 %v370
    %v372 = vlaneseq
    %v373 = vshrl.u32 %v372, 7
    %v374 = vsub.s32 %v371, %v373
    %v375 = vrot.slane %v361, %v374
    %v376 = vcombine.high %v368, 0
    %v378 = vunpack.c.l.s4 1934713408
    %v379 = vunpack.c.0.s8 %v378
    %v380 = vlaneseq
    %v381 = vshrl.u32 %v380, 7
    %v382 = vsub.s32 %v379, %v381
    %v383 = vrot.slane %v368, %v382
    %v385 = vunpack.c.l.s4 1934713408
    %v386 = vunpack.c.0.s8 %v385
    %v387 = vlaneseq
    %v388 = vshrl.u32 %v387, 7
    %v389 = vsub.s32 %v386, %v388
    %v390 = vrot.slane %v376, %v389
    %v391 = vcombine.high %v375, 0
    %v393 = vunpack.c.l.s4 1934713408
    %v394 = vunpack.c.0.s8 %v393
    %v395 = vlaneseq
    %v396 = vshrl.u32 %v395, 7
    %v397 = vsub.s32 %v394, %v396
    %v398 = vrot.slane %v375, %v397
    %v400 = vunpack.c.l.s4 1934713408
    %v401 = vunpack.c.0.s8 %v400
    %v402 = vlaneseq
    %v403 = vshrl.u32 %v402, 7
    %v404 = vsub.s32 %v401, %v403
    %v405 = vrot.slane %v391, %v404
    %v406 = vcombine.low %v383, %v398
    %v407 = vcombine.high %v383, %v398
    %v408 = vcombine.low %v390, %v405
    %v409 = vcombine.high %v390, %v405
    %v410 = vcombine.high %v347, %v353
    %v412 = vunpack.c.l.s4 1983009808
    %v413 = vunpack.c.0.s8 %v412
    %v414 = vlaneseq
    %v415 = vshrl.u32 %v414, 7
    %v416 = vsub.s32 %v413, %v415
    %v417 = vrot.slane %v347, %v416
    %v419 = vunpack.c.l.s4 1983009808
    %v420 = vunpack.c.0.s8 %v419
    %v421 = vlaneseq
    %v422 = vshrl.u32 %v421, 7
    %v423 = vsub.s32 %v420, %v422
    %v424 = vrot.slane %v410, %v423
    %v425 = vcombine.high %v417, 0
    %v427 = vunpack.c.l.s4 1934713408
    %v428 = vunpack.c.0.s8 %v427
    %v429 = vlaneseq
    %v430 = vshrl.u32 %v429, 7
    %v431 = vsub.s32 %v428, %v430
    %v432 = vrot.slane %v417, %v431
    %v434 = vunpack.c.l.s4 1934713408
    %v435 = vunpack.c.0.s8 %v434
    %v436 = vlaneseq
    %v437 = vshrl.u32 %v436, 7
    %v438 = vsub.s32 %v435, %v437
    %v439 = vrot.slane %v425, %v438
    %v440 = vcombine.high %v424, 0
    %v442 = vunpack.c.l.s4 1934713408
    %v443 = vunpack.c.0.s8 %v442
    %v444 = vlaneseq
    %v445 = vshrl.u32 %v444, 7
    %v446 = vsub.s32 %v443, %v445
    %v447 = vrot.slane %v424, %v446
    %v449 = vunpack.c.l.s4 1934713408
    %v450 = vunpack.c.0.s8 %v449
    %v451 = vlaneseq
    %v452 = vshrl.u32 %v451, 7
    %v453 = vsub.s32 %v450, %v452
    %v454 = vrot.slane %v440, %v453
    %v455 = vcombine.low %v432, %v447
    %v456 = vcombine.high %v432, %v447
    %v457 = vcombine.low %v439, %v454
    %v458 = vcombine.high %v439, %v454
    %v461 = vunpack.c.l.s4 1983009808
    %v462 = vunpack.c.0.s8 %v461
    %v463 = vlaneseq
    %v464 = vshrl.u32 %v463, 7
    %v465 = vsub.s32 %v462, %v464
    %v466 = vrot.slane %v357, %v465
    %v467 = vcombine.high %v466, 0
    %v469 = vunpack.c.l.s4 1934713408
    %v470 = vunpack.c.0.s8 %v469
    %v471 = vlaneseq
    %v472 = vshrl.u32 %v471, 7
    %v473 = vsub.s32 %v470, %v472
    %v474 = vrot.slane %v466, %v473
    %v476 = vunpack.c.l.s4 1934713408
    %v477 = vunpack.c.0.s8 %v476
    %v478 = vlaneseq
    %v479 = vshrl.u32 %v478, 7
    %v480 = vsub.s32 %v477, %v479
    %v481 = vrot.slane %v467, %v480
    %v482 = vcombine.high %v474, 0
    %v483 = vcombine.high %v481, 0
    %v486 = vunpack.c.l.s4 1983009808
    %v487 = vunpack.c.0.s8 %v486
    %v488 = vlaneseq
    %v489 = vshrl.u32 %v488, 7
    %v490 = vsub.s32 %v487, %v489
    %v491 = vrot.slane %v360, %v490
    %v492 = vcombine.high %v491, 0
    %v494 = vunpack.c.l.s4 1934713408
    %v495 = vunpack.c.0.s8 %v494
    %v496 = vlaneseq
    %v497 = vshrl.u32 %v496, 7
    %v498 = vsub.s32 %v495, %v497
    %v499 = vrot.slane %v491, %v498
    %v501 = vunpack.c.l.s4 1934713408
    %v502 = vunpack.c.0.s8 %v501
    %v503 = vlaneseq
    %v504 = vshrl.u32 %v503, 7
    %v505 = vsub.s32 %v502, %v504
    %v506 = vrot.slane %v492, %v505
    %v507 = vcombine.high %v499, 0
    %v508 = vcombine.high %v506, 0
    %v526 = vunpack.c.l.s4 1966171168
    %v527 = vunpack.c.0.s8 %v526
    %v528 = vlaneseq
    %v529 = vshrl.u32 %v528, 7
    %v530 = vsub.s32 %v527, %v529
    %v531 = vrot.slane %v406, %v530
    %v533 = vunpack.c.l.s4 1966171168
    %v534 = vunpack.c.0.s8 %v533
    %v535 = vlaneseq
    %v536 = vshrl.u32 %v535, 7
    %v537 = vsub.s32 %v534, %v536
    %v538 = vrot.slane %v474, %v537
    %v539 = vcombine.low %v531, %v538
    %v541 = vunpack.c.l.s4 1966171168
    %v542 = vunpack.c.0.s8 %v541
    %v543 = vlaneseq
    %v544 = vshrl.u32 %v543, 7
    %v545 = vsub.s32 %v542, %v544
    %v546 = vrot.slane %v539, %v545
    %v548 = vunpack.c.l.s4 1966171168
    %v549 = vunpack.c.0.s8 %v548
    %v550 = vlaneseq
    %v551 = vshrl.u32 %v550, 7
    %v552 = vsub.s32 %v549, %v551
    %v553 = vrot.slane %v455, %v552
    %v555 = vunpack.c.l.s4 1966171168
    %v556 = vunpack.c.0.s8 %v555
    %v557 = vlaneseq
    %v558 = vshrl.u32 %v557, 7
    %v559 = vsub.s32 %v556, %v558
    %v560 = vrot.slane %v499, %v559
    %v561 = vcombine.low %v553, %v560
    %v563 = vunpack.c.l.s4 1966171168
    %v564 = vunpack.c.0.s8 %v563
    %v565 = vlaneseq
    %v566 = vshrl.u32 %v565, 7
    %v567 = vsub.s32 %v564, %v566
    %v568 = vrot.slane %v561, %v567
    %v570 = vunpack.c.l.s4 1966171168
    %v571 = vunpack.c.0.s8 %v570
    %v572 = vlaneseq
    %v573 = vshrl.u32 %v572, 7
    %v574 = vsub.s32 %v571, %v573
    %v575 = vrot.slane %v407, %v574
    %v577 = vunpack.c.l.s4 1966171168
    %v578 = vunpack.c.0.s8 %v577
    %v579 = vlaneseq
    %v580 = vshrl.u32 %v579, 7
    %v581 = vsub.s32 %v578, %v580
    %v582 = vrot.slane %v482, %v581
    %v583 = vcombine.low %v575, %v582
    %v585 = vunpack.c.l.s4 1966171168
    %v586 = vunpack.c.0.s8 %v585
    %v587 = vlaneseq
    %v588 = vshrl.u32 %v587, 7
    %v589 = vsub.s32 %v586, %v588
    %v590 = vrot.slane %v583, %v589
    %v592 = vunpack.c.l.s4 1966171168
    %v593 = vunpack.c.0.s8 %v592
    %v594 = vlaneseq
    %v595 = vshrl.u32 %v594, 7
    %v596 = vsub.s32 %v593, %v595
    %v597 = vrot.slane %v456, %v596
    %v599 = vunpack.c.l.s4 1966171168
    %v600 = vunpack.c.0.s8 %v599
    %v601 = vlaneseq
    %v602 = vshrl.u32 %v601, 7
    %v603 = vsub.s32 %v600, %v602
    %v604 = vrot.slane %v507, %v603
    %v605 = vcombine.low %v597, %v604
    %v607 = vunpack.c.l.s4 1966171168
    %v608 = vunpack.c.0.s8 %v607
    %v609 = vlaneseq
    %v610 = vshrl.u32 %v609, 7
    %v611 = vsub.s32 %v608, %v610
    %v612 = vrot.slane %v605, %v611
    %v614 = vunpack.c.l.s4 1966171168
    %v615 = vunpack.c.0.s8 %v614
    %v616 = vlaneseq
    %v617 = vshrl.u32 %v616, 7
    %v618 = vsub.s32 %v615, %v617
    %v619 = vrot.slane %v408, %v618
    %v621 = vunpack.c.l.s4 1966171168
    %v622 = vunpack.c.0.s8 %v621
    %v623 = vlaneseq
    %v624 = vshrl.u32 %v623, 7
    %v625 = vsub.s32 %v622, %v624
    %v626 = vrot.slane %v481, %v625
    %v627 = vcombine.low %v619, %v626
    %v629 = vunpack.c.l.s4 1966171168
    %v630 = vunpack.c.0.s8 %v629
    %v631 = vlaneseq
    %v632 = vshrl.u32 %v631, 7
    %v633 = vsub.s32 %v630, %v632
    %v634 = vrot.slane %v627, %v633
    %v636 = vunpack.c.l.s4 1966171168
    %v637 = vunpack.c.0.s8 %v636
    %v638 = vlaneseq
    %v639 = vshrl.u32 %v638, 7
    %v640 = vsub.s32 %v637, %v639
    %v641 = vrot.slane %v457, %v640
    %v643 = vunpack.c.l.s4 1966171168
    %v644 = vunpack.c.0.s8 %v643
    %v645 = vlaneseq
    %v646 = vshrl.u32 %v645, 7
    %v647 = vsub.s32 %v644, %v646
    %v648 = vrot.slane %v506, %v647
    %v649 = vcombine.low %v641, %v648
    %v651 = vunpack.c.l.s4 1966171168
    %v652 = vunpack.c.0.s8 %v651
    %v653 = vlaneseq
    %v654 = vshrl.u32 %v653, 7
    %v655 = vsub.s32 %v652, %v654
    %v656 = vrot.slane %v649, %v655
    %v658 = vunpack.c.l.s4 1966171168
    %v659 = vunpack.c.0.s8 %v658
    %v660 = vlaneseq
    %v661 = vshrl.u32 %v660, 7
    %v662 = vsub.s32 %v659, %v661
    %v663 = vrot.slane %v409, %v662
    %v665 = vunpack.c.l.s4 1966171168
    %v666 = vunpack.c.0.s8 %v665
    %v667 = vlaneseq
    %v668 = vshrl.u32 %v667, 7
    %v669 = vsub.s32 %v666, %v668
    %v670 = vrot.slane %v483, %v669
    %v671 = vcombine.low %v663, %v670
    %v673 = vunpack.c.l.s4 1966171168
    %v674 = vunpack.c.0.s8 %v673
    %v675 = vlaneseq
    %v676 = vshrl.u32 %v675, 7
    %v677 = vsub.s32 %v674, %v676
    %v678 = vrot.slane %v671, %v677
    %v680 = vunpack.c.l.s4 1966171168
    %v681 = vunpack.c.0.s8 %v680
    %v682 = vlaneseq
    %v683 = vshrl.u32 %v682, 7
    %v684 = vsub.s32 %v681, %v683
    %v685 = vrot.slane %v458, %v684
    %v687 = vunpack.c.l.s4 1966171168
    %v688 = vunpack.c.0.s8 %v687
    %v689 = vlaneseq
    %v690 = vshrl.u32 %v689, 7
    %v691 = vsub.s32 %v688, %v690
    %v692 = vrot.slane %v508, %v691
    %v693 = vcombine.low %v685, %v692
    %v695 = vunpack.c.l.s4 1966171168
    %v696 = vunpack.c.0.s8 %v695
    %v697 = vlaneseq
    %v698 = vshrl.u32 %v697, 7
    %v699 = vsub.s32 %v696, %v698
    %v700 = vrot.slane %v693, %v699
    %v701 = vld [vmem:[#allocation11] sm:$0xf]
    %v702 = vld [vmem:[#allocation11 + $0x4] sm:$0xf]
    %v703 = vld [vmem:[#allocation11 + $0x8] sm:$0xf]
    %v704 = vld [vmem:[#allocation11 + $0xc] sm:$0xf]
    %v705 = vld [vmem:[#allocation11 + $0x10] sm:$0xf]
    %v706 = vld [vmem:[#allocation11 + $0x14] sm:$0xf]
    %v707 = vld [vmem:[#allocation11 + $0x18] sm:$0xf]
    %v708 = vld [vmem:[#allocation11 + $0x1c] sm:$0xf]
    %v709 = vld [vmem:[#allocation11 + $0x20] sm:$0xf]
    %v710 = vld [vmem:[#allocation11 + $0x24] sm:$0xf]
    %v711 = vld [vmem:[#allocation11 + $0x28] sm:$0xf]
    %v712 = vld [vmem:[#allocation11 + $0x2c] sm:$0xf]
    %v713 = vld [vmem:[#allocation11 + $0x30] sm:$0xf]
    %v714 = vld [vmem:[#allocation11 + $0x34] sm:$0xf]
    %v715 = vld [vmem:[#allocation11 + $0x38] sm:$0xf]
    %v716 = vld [vmem:[#allocation11 + $0x3c] sm:$0xf]
    %v717 = vld [vmem:[#allocation11 + $0x40] sm:$0xf]
    %v718 = vld [vmem:[#allocation11 + $0x44] sm:$0xf]
    %v719 = vld [vmem:[#allocation11 + $0x48] sm:$0xf]
    %v720 = vld [vmem:[#allocation11 + $0x4c] sm:$0xf]
    %v721 = vld [vmem:[#allocation11 + $0x50] sm:$0xf]
    %v722 = vld [vmem:[#allocation11 + $0x54] sm:$0xf]
    %v723 = vld [vmem:[#allocation11 + $0x58] sm:$0xf]
    %v724 = vld [vmem:[#allocation11 + $0x5c] sm:$0xf]
    %v725 = vld [vmem:[#allocation11 + $0x60] sm:$0xf]
    %v726 = vld [vmem:[#allocation11 + $0x64] sm:$0xf]
    %v727 = vld [vmem:[#allocation11 + $0x68] sm:$0xf]
    %v728 = vld [vmem:[#allocation11 + $0x6c] sm:$0xf]
    %v729 = vld [vmem:[#allocation11 + $0x70] sm:$0xf]
    %v730 = vld [vmem:[#allocation11 + $0x74] sm:$0xf]
    %v731 = vld [vmem:[#allocation11 + $0x78] sm:$0xf]
    %v732 = vld [vmem:[#allocation11 + $0x7c] sm:$0xf]
    %v733 = vld [vmem:[#allocation11 + $0x80] sm:$0xf]
    %v734 = vld [vmem:[#allocation11 + $0x84] sm:$0xf]
    %v735 = vld [vmem:[#allocation11 + $0x88] sm:$0xf]
    %v736 = vld [vmem:[#allocation11 + $0x8c] sm:$0xf]
    %v737 = vld [vmem:[#allocation11 + $0x90] sm:$0xf]
    %v738 = vld [vmem:[#allocation11 + $0x94] sm:$0x3]
    %v739 = vcombine.low %v546, %v568
    %v740 = vcombine.low %v590, %v612
    %v741 = vcombine.low %v634, %v656
    %v742 = vcombine.low %v678, %v700
    %v744 = vunpack.c.l.s4 1966171168
    %v745 = vunpack.c.0.s8 %v744
    %v746 = vlaneseq
    %v747 = vshrl.u32 %v746, 7
    %v748 = vsub.s32 %v745, %v747
    %v749 = vrot.slane %v739, %v748
    %v751 = vunpack.c.l.s4 1966171168
    %v752 = vunpack.c.0.s8 %v751
    %v753 = vlaneseq
    %v754 = vshrl.u32 %v753, 7
    %v755 = vsub.s32 %v752, %v754
    %v756 = vrot.slane %v740, %v755
    %v758 = vunpack.c.l.s4 1966171168
    %v759 = vunpack.c.0.s8 %v758
    %v760 = vlaneseq
    %v761 = vshrl.u32 %v760, 7
    %v762 = vsub.s32 %v759, %v761
    %v763 = vrot.slane %v741, %v762
    %v765 = vunpack.c.l.s4 1966171168
    %v766 = vunpack.c.0.s8 %v765
    %v767 = vlaneseq
    %v768 = vshrl.u32 %v767, 7
    %v769 = vsub.s32 %v766, %v768
    %v770 = vrot.slane %v742, %v769
    %v771 = vcombine.low %v749, %v756
    %v772 = vcombine.high %v749, %v756
    %v773 = vcombine.low %v763, %v770
    %v774 = vcombine.high %v763, %v770
    %v776 = vunpack.c.l.s4 1966171168
    %v777 = vunpack.c.0.s8 %v776
    %v778 = vlaneseq
    %v779 = vshrl.u32 %v778, 7
    %v780 = vsub.s32 %v777, %v779
    %v781 = vrot.slane %v771, %v780
    %v783 = vunpack.c.l.s4 1966171168
    %v784 = vunpack.c.0.s8 %v783
    %v785 = vlaneseq
    %v786 = vshrl.u32 %v785, 7
    %v787 = vsub.s32 %v784, %v786
    %v788 = vrot.slane %v772, %v787
    %v790 = vunpack.c.l.s4 1966171168
    %v791 = vunpack.c.0.s8 %v790
    %v792 = vlaneseq
    %v793 = vshrl.u32 %v792, 7
    %v794 = vsub.s32 %v791, %v793
    %v795 = vrot.slane %v773, %v794
    %v797 = vunpack.c.l.s4 1966171168
    %v798 = vunpack.c.0.s8 %v797
    %v799 = vlaneseq
    %v800 = vshrl.u32 %v799, 7
    %v801 = vsub.s32 %v798, %v800
    %v802 = vrot.slane %v774, %v801
    %v803 = vcombine.low %v781, %v795
    %v804 = vcombine.high %v781, %v795
    %v805 = vcombine.low %v788, %v802
    %v846 = vunpack.c.l.b16 %v701
    %v847 = vunpack.c.l.b16 %v702
    %v848 = vunpack.c.l.b16 %v703
    %v849 = vunpack.c.l.b16 %v704
    %v850 = vunpack.c.l.b16 %v705
    %v851 = vunpack.c.l.b16 %v706
    %v852 = vunpack.c.l.b16 %v707
    %v853 = vunpack.c.l.b16 %v708
    %v854 = vunpack.c.l.b16 %v709
    %v855 = vunpack.c.l.b16 %v710
    %v856 = vunpack.c.l.b16 %v711
    %v857 = vunpack.c.l.b16 %v712
    %v858 = vunpack.c.l.b16 %v713
    %v859 = vunpack.c.l.b16 %v714
    %v860 = vunpack.c.l.b16 %v715
    %v861 = vunpack.c.l.b16 %v716
    %v862 = vunpack.c.l.b16 %v717
    %v863 = vunpack.c.l.b16 %v718
    %v864 = vunpack.c.l.b16 %v719
    %v865 = vunpack.c.l.b16 %v720
    %v866 = vunpack.c.l.b16 %v721
    %v867 = vunpack.c.l.b16 %v722
    %v868 = vunpack.c.l.b16 %v723
    %v869 = vunpack.c.l.b16 %v724
    %v870 = vunpack.c.l.b16 %v725
    %v871 = vunpack.c.l.b16 %v726
    %v872 = vunpack.c.l.b16 %v727
    %v873 = vunpack.c.l.b16 %v728
    %v874 = vunpack.c.l.b16 %v729
    %v875 = vunpack.c.l.b16 %v730
    %v876 = vunpack.c.l.b16 %v731
    %v877 = vunpack.c.l.b16 %v732
    %v878 = vunpack.c.l.b16 %v733
    %v879 = vunpack.c.l.b16 %v734
    %v880 = vunpack.c.l.b16 %v735
    %v881 = vunpack.c.l.b16 %v736
    %v882 = vunpack.c.l.b16 %v737
    %v883 = vunpack.c.l.b16 %v738
    %v884 = vpack.c.b16 %v847, %v846
    %v885 = vpack.c.b16 %v849, %v848
    %v886 = vpack.c.b16 %v851, %v850
    %v887 = vpack.c.b16 %v853, %v852
    %v888 = vpack.c.b16 %v855, %v854
    %v889 = vpack.c.b16 %v857, %v856
    %v890 = vpack.c.b16 %v859, %v858
    %v891 = vpack.c.b16 %v861, %v860
    %v892 = vpack.c.b16 %v863, %v862
    %v893 = vpack.c.b16 %v865, %v864
    %v894 = vpack.c.b16 %v867, %v866
    %v895 = vpack.c.b16 %v869, %v868
    %v896 = vpack.c.b16 %v871, %v870
    %v897 = vpack.c.b16 %v873, %v872
    %v898 = vpack.c.b16 %v875, %v874
    %v899 = vpack.c.b16 %v877, %v876
    %v900 = vpack.c.b16 %v879, %v878
    %v901 = vpack.c.b16 %v881, %v880
    %v902 = vpack.c.b16 %v883, %v882
    %vm921 = vcmask 359424
    %v923 = vsel %vm921, %v804, 0
    %vm925 = vcmask 1045504
    %v927 = vsel %vm925, %v902, 0
    %929 = vmatprep.subr.bf16.mxu0 0
    %930 = vmatpush1.bf16.msra.mxu0 %v884
    %931 = vmatprep.subr.bf16.mxu0 0
    %932 = vmatpush1.bf16.msra.mxu0 %v885
    %933 = vmatprep.subr.bf16.mxu0 0
    %934 = vmatpush1.bf16.msra.mxu0 %v886
    %935 = vmatprep.subr.bf16.mxu0 0
    %936 = vmatpush1.bf16.msra.mxu0 %v887
    %937 = vmatprep.subr.bf16.mxu0 0
    %938 = vmatpush1.bf16.msra.mxu0 %v888
    %939 = vmatprep.subr.bf16.mxu0 0
    %940 = vmatpush1.bf16.msra.mxu0 %v889
    %941 = vmatprep.subr.bf16.mxu0 0
    %942 = vmatpush1.bf16.msra.mxu0 %v890
    %943 = vmatprep.subr.bf16.mxu0 0
    %944 = vmatpush1.bf16.msra.mxu0 %v891
    %945 = vmatprep.subr.bf16.mxu0 0
    %946 = vmatpush1.bf16.msra.mxu0 %v892
    %947 = vmatprep.subr.bf16.mxu0 0
    %948 = vmatpush1.bf16.msra.mxu0 %v893
    %949 = vmatprep.subr.bf16.mxu0 0
    %950 = vmatpush1.bf16.msra.mxu0 %v894
    %951 = vmatprep.subr.bf16.mxu0 0
    %952 = vmatpush1.bf16.msra.mxu0 %v895
    %953 = vmatprep.subr.bf16.mxu0 0
    %954 = vmatpush1.bf16.msra.mxu0 %v896
    %955 = vmatprep.subr.bf16.mxu0 0
    %956 = vmatpush1.bf16.msra.mxu0 %v897
    %957 = vmatprep.subr.bf16.mxu0 0
    %958 = vmatpush1.bf16.msra.mxu0 %v898
    %959 = vmatprep.subr.bf16.mxu0 0
    %960 = vmatpush1.bf16.msra.mxu0 %v899
    %961 = vmatprep.mubr.bf16.mxu0 %v805
    %962 = vmatmul.mubr.bf16.gmra.mrb[0].mxu0 %v803
    %v963 = vpop.f32.mrb[0].mxu0
    %v964 = vadd.f32 0.0, %v963
    %v965 = vpop.f32.mrb[0].mxu0
    %v966 = vpop.f32.mrb[0].mxu0
    %v967 = vadd.f32 0.0, %v966
    %v968 = vpop.f32.mrb[0].mxu0
    %969 = vdwg.mxu0
    %970 = vmatprep.subr.bf16.mxu0 0
    %971 = vmatpush1.bf16.msra.mxu0 %v900
    %972 = vmatprep.subr.bf16.mxu0 0
    %973 = vmatpush1.bf16.msra.mxu0 %v901
    %974 = vmatprep.subr.bf16.mxu0 0
    %975 = vmatpush1.bf16.msra.mxu0 %v927
    %976 = vmatprep.subr.bf16.mxu0 0
    %977 = vmatpush1.bf16.msra.mxu0 0
    %978 = vmatprep.subr.bf16.mxu0 0
    %979 = vmatpush1.bf16.msra.mxu0 0
    %980 = vmatprep.subr.bf16.mxu0 0
    %981 = vmatpush1.bf16.msra.mxu0 0
    %982 = vmatprep.subr.bf16.mxu0 0
    %983 = vmatpush1.bf16.msra.mxu0 0
    %984 = vmatprep.subr.bf16.mxu0 0
    %985 = vmatpush1.bf16.msra.mxu0 0
    %986 = vmatprep.subr.bf16.mxu0 0
    %987 = vmatpush1.bf16.msra.mxu0 0
    %988 = vmatprep.subr.bf16.mxu0 0
    %989 = vmatpush1.bf16.msra.mxu0 0
    %990 = vmatprep.subr.bf16.mxu0 0
    %991 = vmatpush1.bf16.msra.mxu0 0
    %992 = vmatprep.subr.bf16.mxu0 0
    %993 = vmatpush1.bf16.msra.mxu0 0
    %994 = vmatprep.subr.bf16.mxu0 0
    %995 = vmatpush1.bf16.msra.mxu0 0
    %996 = vmatprep.subr.bf16.mxu0 0
    %997 = vmatpush1.bf16.msra.mxu0 0
    %998 = vmatprep.subr.bf16.mxu0 0
    %999 = vmatpush1.bf16.msra.mxu0 0
    %1000 = vmatprep.subr.bf16.mxu0 0
    %1001 = vmatpush1.bf16.msra.mxu0 0
    %1002 = vmatprep.mubr.bf16.mxu0 0
    %1003 = vmatmul.mubr.bf16.gmra.mrb[0].mxu0 %v923
    %v1004 = vpop.f32.mrb[0].mxu0
    %v1005 = vadd.f32 %v964, %v1004
    %v1006 = vpop.f32.mrb[0].mxu0
    %v1007 = vpop.f32.mrb[0].mxu0
    %v1008 = vadd.f32 %v967, %v1007
    %v1009 = vpop.f32.mrb[0].mxu0
    %1010 = vdwg.mxu0
    %v1013 = vcombine.high %v1005, %v1005
    %v1015 = vunpack.c.l.s4 1983009808
    %v1016 = vunpack.c.0.s8 %v1015
    %v1017 = vlaneseq
    %v1018 = vshrl.u32 %v1017, 7
    %v1019 = vsub.s32 %v1016, %v1018
    %v1020 = vrot.slane %v1005, %v1019
    %v1022 = vunpack.c.l.s4 1983009808
    %v1023 = vunpack.c.0.s8 %v1022
    %v1024 = vlaneseq
    %v1025 = vshrl.u32 %v1024, 7
    %v1026 = vsub.s32 %v1023, %v1025
    %v1027 = vrot.slane %v1013, %v1026
    %v1028 = vcombine.high %v1020, %v1020
    %v1029 = vcombine.high %v1027, %v1027
    %v1030 = vcombine.high %v1008, %v1008
    %v1032 = vunpack.c.l.s4 1983009808
    %v1033 = vunpack.c.0.s8 %v1032
    %v1034 = vlaneseq
    %v1035 = vshrl.u32 %v1034, 7
    %v1036 = vsub.s32 %v1033, %v1035
    %v1037 = vrot.slane %v1008, %v1036
    %v1039 = vunpack.c.l.s4 1983009808
    %v1040 = vunpack.c.0.s8 %v1039
    %v1041 = vlaneseq
    %v1042 = vshrl.u32 %v1041, 7
    %v1043 = vsub.s32 %v1040, %v1042
    %v1044 = vrot.slane %v1030, %v1043
    %v1045 = vcombine.high %v1037, %v1037
    %v1046 = vcombine.high %v1044, %v1044
    %v1055 = vld [vmem:[#allocation14] sm:$0x1]
    %v1057 = vlaneseq
    %v1058 = vshrl.u32 %v1057, 7
    %v1059 = vsub.s32 0, %v1058
    %v1060 = vrot.slane %v1055, %v1059
    %v1062 = vadd.f32 %v1020, %v1060
    %v1063 = vadd.f32 %v1028, %v1060
    %v1064 = vadd.f32 %v1027, %v1060
    %v1065 = vadd.f32 %v1029, %v1060
    %v1066 = vadd.f32 %v1037, %v1060
    %v1067 = vadd.f32 %v1045, %v1060
    %v1068 = vadd.f32 %v1044, %v1060
    %v1069 = vadd.f32 %v1046, %v1060
    %1070 = vst [vmem:[#allocation2] sm:$0x3] %v1062
    %1071 = vst [vmem:[#allocation2 + $0x2] sm:$0x3] %v1063
    %1072 = vst [vmem:[#allocation2 + $0x4] sm:$0x3] %v1064
    %1073 = vst [vmem:[#allocation2 + $0x6] sm:$0x3] %v1065
    %1074 = vst [vmem:[#allocation2 + $0x8] sm:$0x3] %v1066
    %1075 = vst [vmem:[#allocation2 + $0xa] sm:$0x3] %v1067
    %1076 = vst [vmem:[#allocation2 + $0xc] sm:$0x3] %v1068
    %1077 = vst [vmem:[#allocation2 + $0xe] sm:$0x3] %v1069
    %v1078 = vld [vmem:[#allocation16] sm:$0xf]
    %v1079 = vld [vmem:[#allocation16 + $0x4] sm:$0xf]
    %v1080 = vld [vmem:[#allocation16 + $0x8] sm:$0xf]
    %v1081 = vld [vmem:[#allocation16 + $0xc] sm:$0xf]
    %v1082 = vld [vmem:[#allocation16 + $0x10] sm:$0xf]
    %v1083 = vld [vmem:[#allocation16 + $0x14] sm:$0xf]
    %v1084 = vld [vmem:[#allocation16 + $0x18] sm:$0xf]
    %v1085 = vld [vmem:[#allocation16 + $0x1c] sm:$0xf]
    %v1086 = vld [vmem:[#allocation16 + $0x20] sm:$0xf]
    %v1087 = vld [vmem:[#allocation16 + $0x24] sm:$0xf]
    %v1088 = vld [vmem:[#allocation16 + $0x28] sm:$0xf]
    %v1089 = vld [vmem:[#allocation16 + $0x2c] sm:$0xf]
    %v1090 = vld [vmem:[#allocation16 + $0x30] sm:$0xf]
    %v1091 = vld [vmem:[#allocation16 + $0x34] sm:$0xf]
    %v1092 = vld [vmem:[#allocation16 + $0x38] sm:$0xf]
    %v1093 = vld [vmem:[#allocation16 + $0x3c] sm:$0xf]
    %v1094 = vld [vmem:[#allocation16 + $0x40] sm:$0xf]
    %v1095 = vld [vmem:[#allocation16 + $0x44] sm:$0xf]
    %v1096 = vld [vmem:[#allocation16 + $0x48] sm:$0xf]
    %v1097 = vld [vmem:[#allocation16 + $0x4c] sm:$0xf]
    %v1098 = vld [vmem:[#allocation16 + $0x50] sm:$0xf]
    %v1099 = vld [vmem:[#allocation16 + $0x54] sm:$0xf]
    %v1100 = vld [vmem:[#allocation16 + $0x58] sm:$0xf]
    %v1101 = vld [vmem:[#allocation16 + $0x5c] sm:$0xf]
    %v1102 = vld [vmem:[#allocation16 + $0x60] sm:$0xf]
    %v1103 = vld [vmem:[#allocation16 + $0x64] sm:$0xf]
    %v1104 = vld [vmem:[#allocation16 + $0x68] sm:$0xf]
    %v1105 = vld [vmem:[#allocation16 + $0x6c] sm:$0xf]
    %v1106 = vld [vmem:[#allocation16 + $0x70] sm:$0xf]
    %v1107 = vld [vmem:[#allocation16 + $0x74] sm:$0xf]
    %v1108 = vld [vmem:[#allocation16 + $0x78] sm:$0xf]
    %v1109 = vld [vmem:[#allocation16 + $0x7c] sm:$0xf]
    %v1110 = vld [vmem:[#allocation16 + $0x80] sm:$0xf]
    %v1111 = vld [vmem:[#allocation16 + $0x84] sm:$0xf]
    %v1112 = vld [vmem:[#allocation16 + $0x88] sm:$0xf]
    %v1113 = vld [vmem:[#allocation16 + $0x8c] sm:$0xf]
    %v1114 = vld [vmem:[#allocation16 + $0x90] sm:$0xf]
    %v1115 = vld [vmem:[#allocation16 + $0x94] sm:$0x3]
    %v1154 = vunpack.c.l.b16 %v1078
    %v1155 = vunpack.c.l.b16 %v1079
    %v1156 = vunpack.c.l.b16 %v1080
    %v1157 = vunpack.c.l.b16 %v1081
    %v1158 = vunpack.c.l.b16 %v1082
    %v1159 = vunpack.c.l.b16 %v1083
    %v1160 = vunpack.c.l.b16 %v1084
    %v1161 = vunpack.c.l.b16 %v1085
    %v1162 = vunpack.c.l.b16 %v1086
    %v1163 = vunpack.c.l.b16 %v1087
    %v1164 = vunpack.c.l.b16 %v1088
    %v1165 = vunpack.c.l.b16 %v1089
    %v1166 = vunpack.c.l.b16 %v1090
    %v1167 = vunpack.c.l.b16 %v1091
    %v1168 = vunpack.c.l.b16 %v1092
    %v1169 = vunpack.c.l.b16 %v1093
    %v1170 = vunpack.c.l.b16 %v1094
    %v1171 = vunpack.c.l.b16 %v1095
    %v1172 = vunpack.c.l.b16 %v1096
    %v1173 = vunpack.c.l.b16 %v1097
    %v1174 = vunpack.c.l.b16 %v1098
    %v1175 = vunpack.c.l.b16 %v1099
    %v1176 = vunpack.c.l.b16 %v1100
    %v1177 = vunpack.c.l.b16 %v1101
    %v1178 = vunpack.c.l.b16 %v1102
    %v1179 = vunpack.c.l.b16 %v1103
    %v1180 = vunpack.c.l.b16 %v1104
    %v1181 = vunpack.c.l.b16 %v1105
    %v1182 = vunpack.c.l.b16 %v1106
    %v1183 = vunpack.c.l.b16 %v1107
    %v1184 = vunpack.c.l.b16 %v1108
    %v1185 = vunpack.c.l.b16 %v1109
    %v1186 = vunpack.c.l.b16 %v1110
    %v1187 = vunpack.c.l.b16 %v1111
    %v1188 = vunpack.c.l.b16 %v1112
    %v1189 = vunpack.c.l.b16 %v1113
    %v1190 = vunpack.c.l.b16 %v1114
    %v1191 = vunpack.c.l.b16 %v1115
    %v1192 = vpack.c.b16 %v1155, %v1154
    %v1193 = vpack.c.b16 %v1157, %v1156
    %v1194 = vpack.c.b16 %v1159, %v1158
    %v1195 = vpack.c.b16 %v1161, %v1160
    %v1196 = vpack.c.b16 %v1163, %v1162
    %v1197 = vpack.c.b16 %v1165, %v1164
    %v1198 = vpack.c.b16 %v1167, %v1166
    %v1199 = vpack.c.b16 %v1169, %v1168
    %v1200 = vpack.c.b16 %v1171, %v1170
    %v1201 = vpack.c.b16 %v1173, %v1172
    %v1202 = vpack.c.b16 %v1175, %v1174
    %v1203 = vpack.c.b16 %v1177, %v1176
    %v1204 = vpack.c.b16 %v1179, %v1178
    %v1205 = vpack.c.b16 %v1181, %v1180
    %v1206 = vpack.c.b16 %v1183, %v1182
    %v1207 = vpack.c.b16 %v1185, %v1184
    %v1208 = vpack.c.b16 %v1187, %v1186
    %v1209 = vpack.c.b16 %v1189, %v1188
    %v1210 = vpack.c.b16 %v1191, %v1190
    %v1230 = vsel %vm925, %v1210, 0
    %1232 = vmatprep.subr.bf16.mxu0 0
    %1233 = vmatpush1.bf16.msra.mxu0 %v1192
    %1234 = vmatprep.subr.bf16.mxu0 0
    %1235 = vmatpush1.bf16.msra.mxu0 %v1193
    %1236 = vmatprep.subr.bf16.mxu0 0
    %1237 = vmatpush1.bf16.msra.mxu0 %v1194
    %1238 = vmatprep.subr.bf16.mxu0 0
    %1239 = vmatpush1.bf16.msra.mxu0 %v1195
    %1240 = vmatprep.subr.bf16.mxu0 0
    %1241 = vmatpush1.bf16.msra.mxu0 %v1196
    %1242 = vmatprep.subr.bf16.mxu0 0
    %1243 = vmatpush1.bf16.msra.mxu0 %v1197
    %1244 = vmatprep.subr.bf16.mxu0 0
    %1245 = vmatpush1.bf16.msra.mxu0 %v1198
    %1246 = vmatprep.subr.bf16.mxu0 0
    %1247 = vmatpush1.bf16.msra.mxu0 %v1199
    %1248 = vmatprep.subr.bf16.mxu0 0
    %1249 = vmatpush1.bf16.msra.mxu0 %v1200
    %1250 = vmatprep.subr.bf16.mxu0 0
    %1251 = vmatpush1.bf16.msra.mxu0 %v1201
    %1252 = vmatprep.subr.bf16.mxu0 0
    %1253 = vmatpush1.bf16.msra.mxu0 %v1202
    %1254 = vmatprep.subr.bf16.mxu0 0
    %1255 = vmatpush1.bf16.msra.mxu0 %v1203
    %1256 = vmatprep.subr.bf16.mxu0 0
    %1257 = vmatpush1.bf16.msra.mxu0 %v1204
    %1258 = vmatprep.subr.bf16.mxu0 0
    %1259 = vmatpush1.bf16.msra.mxu0 %v1205
    %1260 = vmatprep.subr.bf16.mxu0 0
    %1261 = vmatpush1.bf16.msra.mxu0 %v1206
    %1262 = vmatprep.subr.bf16.mxu0 0
    %1263 = vmatpush1.bf16.msra.mxu0 %v1207
    %1264 = vmatprep.mubr.bf16.mxu0 %v805
    %1265 = vmatmul.mubr.bf16.gmra.mrb[0].mxu0 %v803
    %v1266 = vpop.f32.mrb[0].mxu0
    %v1267 = vadd.f32 0.0, %v1266
    %v1268 = vpop.f32.mrb[0].mxu0
    %v1269 = vpop.f32.mrb[0].mxu0
    %v1270 = vadd.f32 0.0, %v1269
    %v1271 = vpop.f32.mrb[0].mxu0
    %1272 = vdwg.mxu0
    %1273 = vmatprep.subr.bf16.mxu0 0
    %1274 = vmatpush1.bf16.msra.mxu0 %v1208
    %1275 = vmatprep.subr.bf16.mxu0 0
    %1276 = vmatpush1.bf16.msra.mxu0 %v1209
    %1277 = vmatprep.subr.bf16.mxu0 0
    %1278 = vmatpush1.bf16.msra.mxu0 %v1230
    %1279 = vmatprep.subr.bf16.mxu0 0
    %1280 = vmatpush1.bf16.msra.mxu0 0
    %1281 = vmatprep.subr.bf16.mxu0 0
    %1282 = vmatpush1.bf16.msra.mxu0 0
    %1283 = vmatprep.subr.bf16.mxu0 0
    %1284 = vmatpush1.bf16.msra.mxu0 0
    %1285 = vmatprep.subr.bf16.mxu0 0
    %1286 = vmatpush1.bf16.msra.mxu0 0
    %1287 = vmatprep.subr.bf16.mxu0 0
    %1288 = vmatpush1.bf16.msra.mxu0 0
    %1289 = vmatprep.subr.bf16.mxu0 0
    %1290 = vmatpush1.bf16.msra.mxu0 0
    %1291 = vmatprep.subr.bf16.mxu0 0
    %1292 = vmatpush1.bf16.msra.mxu0 0
    %1293 = vmatprep.subr.bf16.mxu0 0
    %1294 = vmatpush1.bf16.msra.mxu0 0
    %1295 = vmatprep.subr.bf16.mxu0 0
    %1296 = vmatpush1.bf16.msra.mxu0 0
    %1297 = vmatprep.subr.bf16.mxu0 0
    %1298 = vmatpush1.bf16.msra.mxu0 0
    %1299 = vmatprep.subr.bf16.mxu0 0
    %1300 = vmatpush1.bf16.msra.mxu0 0
    %1301 = vmatprep.subr.bf16.mxu0 0
    %1302 = vmatpush1.bf16.msra.mxu0 0
    %1303 = vmatprep.subr.bf16.mxu0 0
    %1304 = vmatpush1.bf16.msra.mxu0 0
    %1305 = vmatprep.mubr.bf16.mxu0 0
    %1306 = vmatmul.mubr.bf16.gmra.mrb[0].mxu0 %v923
    %v1307 = vpop.f32.mrb[0].mxu0
    %v1308 = vadd.f32 %v1267, %v1307
    %v1309 = vpop.f32.mrb[0].mxu0
    %v1310 = vpop.f32.mrb[0].mxu0
    %v1311 = vadd.f32 %v1270, %v1310
    %v1312 = vpop.f32.mrb[0].mxu0
    %1313 = vdwg.mxu0
    %v1316 = vcombine.high %v1308, %v1308
    %v1318 = vunpack.c.l.s4 1983009808
    %v1319 = vunpack.c.0.s8 %v1318
    %v1320 = vlaneseq
    %v1321 = vshrl.u32 %v1320, 7
    %v1322 = vsub.s32 %v1319, %v1321
    %v1323 = vrot.slane %v1308, %v1322
    %v1325 = vunpack.c.l.s4 1983009808
    %v1326 = vunpack.c.0.s8 %v1325
    %v1327 = vlaneseq
    %v1328 = vshrl.u32 %v1327, 7
    %v1329 = vsub.s32 %v1326, %v1328
    %v1330 = vrot.slane %v1316, %v1329
    %v1331 = vcombine.high %v1323, %v1323
    %v1332 = vcombine.high %v1330, %v1330
    %v1333 = vcombine.high %v1311, %v1311
    %v1335 = vunpack.c.l.s4 1983009808
    %v1336 = vunpack.c.0.s8 %v1335
    %v1337 = vlaneseq
    %v1338 = vshrl.u32 %v1337, 7
    %v1339 = vsub.s32 %v1336, %v1338
    %v1340 = vrot.slane %v1311, %v1339
    %v1342 = vunpack.c.l.s4 1983009808
    %v1343 = vunpack.c.0.s8 %v1342
    %v1344 = vlaneseq
    %v1345 = vshrl.u32 %v1344, 7
    %v1346 = vsub.s32 %v1343, %v1345
    %v1347 = vrot.slane %v1333, %v1346
    %v1348 = vcombine.high %v1340, %v1340
    %v1349 = vcombine.high %v1347, %v1347
    %v1358 = vld [vmem:[#allocation19] sm:$0x1]
    %v1360 = vlaneseq
    %v1361 = vshrl.u32 %v1360, 7
    %v1362 = vsub.s32 0, %v1361
    %v1363 = vrot.slane %v1358, %v1362
    %v1365 = vadd.f32 %v1323, %v1363
    %v1366 = vadd.f32 %v1331, %v1363
    %v1367 = vadd.f32 %v1330, %v1363
    %v1368 = vadd.f32 %v1332, %v1363
    %v1369 = vadd.f32 %v1340, %v1363
    %v1370 = vadd.f32 %v1348, %v1363
    %v1371 = vadd.f32 %v1347, %v1363
    %v1372 = vadd.f32 %v1349, %v1363
    %1373 = vst [vmem:[#allocation3] sm:$0x3] %v1365
    %1374 = vst [vmem:[#allocation3 + $0x2] sm:$0x3] %v1366
    %1375 = vst [vmem:[#allocation3 + $0x4] sm:$0x3] %v1367
    %1376 = vst [vmem:[#allocation3 + $0x6] sm:$0x3] %v1368
    %1377 = vst [vmem:[#allocation3 + $0x8] sm:$0x3] %v1369
    %1378 = vst [vmem:[#allocation3 + $0xa] sm:$0x3] %v1370
    %1379 = vst [vmem:[#allocation3 + $0xc] sm:$0x3] %v1371
    %1380 = vst [vmem:[#allocation3 + $0xe] sm:$0x3] %v1372
    %v1381 = vld [vmem:[#allocation20] sm:$0x3]
    %v1382 = vld [vmem:[#allocation22] sm:$0x3]
    %v1383 = vld [vmem:[#allocation23] sm:$0x3]
    %v1384 = vld [vmem:[#allocation25] sm:$0x3]
    %v1385 = vld [vmem:[#allocation2] sm:$0x3]
    %v1386 = vpack.c.bf16 %v1381, %v1381
    %v1391 = vunpack.c.l.b16 %v329
    %v1392 = vunpack.c.l.b16 %v330
    %v1393 = vunpack.c.l.b16 %v331
    %v1394 = vunpack.c.l.b16 %v332
    %v1395 = vpack.c.b16 %v1392, %v1391
    %v1396 = vpack.c.b16 %v1394, %v1393
    %vm1399 = vcmask 261120
    %v1401 = vsel %vm1399, %v1386, 0
    %1403 = vmatprep.subr.bf16.mxu0 0
    %1404 = vmatpush1.bf16.msra.mxu0 %v1395
    %1405 = vmatprep.subr.bf16.mxu0 0
    %1406 = vmatpush1.bf16.msra.mxu0 %v1396
    %1407 = vmatprep.subr.bf16.mxu0 0
    %1408 = vmatpush1.bf16.msra.mxu0 0
    %1409 = vmatprep.subr.bf16.mxu0 0
    %1410 = vmatpush1.bf16.msra.mxu0 0
    %1411 = vmatprep.subr.bf16.mxu0 0
    %1412 = vmatpush1.bf16.msra.mxu0 0
    %1413 = vmatprep.subr.bf16.mxu0 0
    %1414 = vmatpush1.bf16.msra.mxu0 0
    %1415 = vmatprep.subr.bf16.mxu0 0
    %1416 = vmatpush1.bf16.msra.mxu0 0
    %1417 = vmatprep.subr.bf16.mxu0 0
    %1418 = vmatpush1.bf16.msra.mxu0 0
    %1419 = vmatprep.subr.bf16.mxu0 0
    %1420 = vmatpush1.bf16.msra.mxu0 0
    %1421 = vmatprep.subr.bf16.mxu0 0
    %1422 = vmatpush1.bf16.msra.mxu0 0
    %1423 = vmatprep.subr.bf16.mxu0 0
    %1424 = vmatpush1.bf16.msra.mxu0 0
    %1425 = vmatprep.subr.bf16.mxu0 0
    %1426 = vmatpush1.bf16.msra.mxu0 0
    %1427 = vmatprep.subr.bf16.mxu0 0
    %1428 = vmatpush1.bf16.msra.mxu0 0
    %1429 = vmatprep.subr.bf16.mxu0 0
    %1430 = vmatpush1.bf16.msra.mxu0 0
    %1431 = vmatprep.subr.bf16.mxu0 0
    %1432 = vmatpush1.bf16.msra.mxu0 0
    %1433 = vmatprep.subr.bf16.mxu0 0
    %1434 = vmatpush1.bf16.msra.mxu0 0
    %1435 = vmatprep.mubr.bf16.mxu0 0
    %1436 = vmatmul.mubr.bf16.gmra.mrb[0].mxu0 %v1401
    %v1437 = vpop.f32.mrb[0].mxu0
    %v1438 = vadd.f32 0.0, %v1437
    %v1439 = vpop.f32.mrb[0].mxu0
    %v1440 = vpop.f32.mrb[0].mxu0
    %v1441 = vpop.f32.mrb[0].mxu0
    %1442 = vdwg.mxu0
    %v1443 = vadd.f32 %v1385, %v1438
    %s1444 = scalar_lea.vmem [#allocation3], 14
    %v1445 = vld [vmem:[%s1444] sm:$0x3]
    %v1446 = vpack.c.bf16 %v1383, %v1383
    %v1451 = vunpack.c.l.b16 %v333
    %v1452 = vunpack.c.l.b16 %v334
    %v1453 = vunpack.c.l.b16 %v335
    %v1454 = vunpack.c.l.b16 %v336
    %v1455 = vpack.c.b16 %v1452, %v1451
    %v1456 = vpack.c.b16 %v1454, %v1453
    %v1460 = vsel %vm1399, %v1446, 0
    %1462 = vmatprep.subr.bf16.mxu0 0
    %1463 = vmatpush1.bf16.msra.mxu0 %v1455
    %1464 = vmatprep.subr.bf16.mxu0 0
    %1465 = vmatpush1.bf16.msra.mxu0 %v1456
    %1466 = vmatprep.subr.bf16.mxu0 0
    %1467 = vmatpush1.bf16.msra.mxu0 0
    %1468 = vmatprep.subr.bf16.mxu0 0
    %1469 = vmatpush1.bf16.msra.mxu0 0
    %1470 = vmatprep.subr.bf16.mxu0 0
    %1471 = vmatpush1.bf16.msra.mxu0 0
    %1472 = vmatprep.subr.bf16.mxu0 0
    %1473 = vmatpush1.bf16.msra.mxu0 0
    %1474 = vmatprep.subr.bf16.mxu0 0
    %1475 = vmatpush1.bf16.msra.mxu0 0
    %1476 = vmatprep.subr.bf16.mxu0 0
    %1477 = vmatpush1.bf16.msra.mxu0 0
    %1478 = vmatprep.subr.bf16.mxu0 0
    %1479 = vmatpush1.bf16.msra.mxu0 0
    %1480 = vmatprep.subr.bf16.mxu0 0
    %1481 = vmatpush1.bf16.msra.mxu0 0
    %1482 = vmatprep.subr.bf16.mxu0 0
    %1483 = vmatpush1.bf16.msra.mxu0 0
    %1484 = vmatprep.subr.bf16.mxu0 0
    %1485 = vmatpush1.bf16.msra.mxu0 0
    %1486 = vmatprep.subr.bf16.mxu0 0
    %1487 = vmatpush1.bf16.msra.mxu0 0
    %1488 = vmatprep.subr.bf16.mxu0 0
    %1489 = vmatpush1.bf16.msra.mxu0 0
    %1490 = vmatprep.subr.bf16.mxu0 0
    %1491 = vmatpush1.bf16.msra.mxu0 0
    %1492 = vmatprep.subr.bf16.mxu0 0
    %1493 = vmatpush1.bf16.msra.mxu0 0
    %1494 = vmatprep.mubr.bf16.mxu0 0
    %1495 = vmatmul.mubr.bf16.gmra.mrb[0].mxu0 %v1460
    %v1496 = vpop.f32.mrb[0].mxu0
    %v1497 = vadd.f32 0.0, %v1496
    %v1498 = vpop.f32.mrb[0].mxu0
    %v1499 = vpop.f32.mrb[0].mxu0
    %v1500 = vpop.f32.mrb[0].mxu0
    %1501 = vdwg.mxu0
    %v1502 = vadd.f32 %v1445, %v1497
    %v1503 = vxor.u32 %v1443, 2147483648
    %v1504 = vmul.f32 %v1503, 1.442695
    %v1505 = vpow.pop %v1504
    %v1506 = vadd.f32 %v1505, 1.0
    %v1507 = vrcp.pop %v1506
    %v1508 = vmul.f32 1.0, %v1507
    %v1509 = vtanh.pop %v1443
    %1511 = vrot.lane.b32.xlu0 %v1382, 32
    %v1512 = vpop.permute.xlu0 %1511
    %v1514 = vmul.f32 %v1508, %v1512
    %1516 = vrot.lane.b32.xlu0 %v1509, 64
    %v1517 = vpop.permute.xlu0 %1516
    %v1519 = vmul.f32 %v1508, %v1517
    %1521 = vrot.lane.b32.xlu0 %v1519, 32
    %v1522 = vpop.permute.xlu0 %1521
    %v1524 = vadd.f32 %v1514, %v1522
    %v1525 = vtanh.pop %v1524
    %1527 = vrot.lane.b32.xlu0 %v1525, 64
    %v1528 = vpop.permute.xlu0 %1527
    %v1530 = vmul.f32 %v1508, %v1528
    %v1531 = vxor.u32 %v1502, 2147483648
    %v1532 = vmul.f32 %v1531, 1.442695
    %v1533 = vpow.pop %v1532
    %v1534 = vadd.f32 %v1533, 1.0
    %v1535 = vrcp.pop %v1534
    %v1536 = vmul.f32 1.0, %v1535
    %v1537 = vtanh.pop %v1502
    %1539 = vrot.lane.b32.xlu0 %v1384, 32
    %v1540 = vpop.permute.xlu0 %1539
    %v1542 = vmul.f32 %v1536, %v1540
    %1544 = vrot.lane.b32.xlu0 %v1537, 64
    %v1545 = vpop.permute.xlu0 %1544
    %v1547 = vmul.f32 %v1536, %v1545
    %1549 = vrot.lane.b32.xlu0 %v1547, 32
    %v1550 = vpop.permute.xlu0 %1549
    %v1552 = vadd.f32 %v1542, %v1550
    %v1553 = vtanh.pop %v1552
    %1555 = vrot.lane.b32.xlu0 %v1553, 64
    %v1556 = vpop.permute.xlu0 %1555
    %v1558 = vmul.f32 %v1536, %v1556
    %1560 = vrot.lane.b32.xlu0 %v1530, 32
    %v1561 = vpop.permute.xlu0 %1560
    %vm1563 = vcmask 254976
    %1564 = vst.msk [vmem:[#allocation4] sm:$0x3] %vm1563, %v1561
    %1566 = vrot.lane.b32.xlu0 %v1558, 32
    %v1567 = vpop.permute.xlu0 %1566
    %s1569 = scalar_lea.vmem [#allocation5], 14
    %1570 = vst.msk [vmem:[%s1569] sm:$0x3] %vm1563, %v1567
    %s1571 = scalar_lea.vmem [#allocation2], 2
    %v1572 = vld [vmem:[%s1571] sm:$0x3]
    %v1573 = vpack.c.bf16 %v1530, %v1530
    %1575 = vrot.lane.b32.xlu0 %v1573, 32
    %v1576 = vpop.permute.xlu0 %1575
    %v1578 = vsel %vm1399, %v1576, 0
    %1580 = vmatprep.subr.bf16.mxu0 0
    %1581 = vmatpush1.bf16.msra.mxu0 %v1395
    %1582 = vmatprep.subr.bf16.mxu0 0
    %1583 = vmatpush1.bf16.msra.mxu0 %v1396
    %1584 = vmatprep.subr.bf16.mxu0 0
    %1585 = vmatpush1.bf16.msra.mxu0 0
    %1586 = vmatprep.subr.bf16.mxu0 0
    %1587 = vmatpush1.bf16.msra.mxu0 0
    %1588 = vmatprep.subr.bf16.mxu0 0
    %1589 = vmatpush1.bf16.msra.mxu0 0
    %1590 = vmatprep.subr.bf16.mxu0 0
    %1591 = vmatpush1.bf16.msra.mxu0 0
    %1592 = vmatprep.subr.bf16.mxu0 0
    %1593 = vmatpush1.bf16.msra.mxu0 0
    %1594 = vmatprep.subr.bf16.mxu0 0
    %1595 = vmatpush1.bf16.msra.mxu0 0
    %1596 = vmatprep.subr.bf16.mxu0 0
    %1597 = vmatpush1.bf16.msra.mxu0 0
    %1598 = vmatprep.subr.bf16.mxu0 0
    %1599 = vmatpush1.bf16.msra.mxu0 0
    %1600 = vmatprep.subr.bf16.mxu0 0
    %1601 = vmatpush1.bf16.msra.mxu0 0
    %1602 = vmatprep.subr.bf16.mxu0 0
    %1603 = vmatpush1.bf16.msra.mxu0 0
    %1604 = vmatprep.subr.bf16.mxu0 0
    %1605 = vmatpush1.bf16.msra.mxu0 0
    %1606 = vmatprep.subr.bf16.mxu0 0
    %1607 = vmatpush1.bf16.msra.mxu0 0
    %1608 = vmatprep.subr.bf16.mxu0 0
    %1609 = vmatpush1.bf16.msra.mxu0 0
    %1610 = vmatprep.subr.bf16.mxu0 0
    %1611 = vmatpush1.bf16.msra.mxu0 0
    %1612 = vmatprep.mubr.bf16.mxu0 0
    %1613 = vmatmul.mubr.bf16.gmra.mrb[0].mxu0 %v1578
    %v1614 = vpop.f32.mrb[0].mxu0
    %v1615 = vadd.f32 0.0, %v1614
    %v1616 = vpop.f32.mrb[0].mxu0
    %v1617 = vpop.f32.mrb[0].mxu0
    %v1618 = vpop.f32.mrb[0].mxu0
    %1619 = vdwg.mxu0
    %v1620 = vadd.f32 %v1572, %v1615
    %s1621 = scalar_lea.vmem [#allocation3], 12
    %v1622 = vld [vmem:[%s1621] sm:$0x3]
    %v1623 = vpack.c.bf16 %v1558, %v1558
    %1625 = vrot.lane.b32.xlu0 %v1623, 32
    %v1626 = vpop.permute.xlu0 %1625
    %v1628 = vsel %vm1399, %v1626, 0
    %1630 = vmatprep.subr.bf16.mxu0 0
    %1631 = vmatpush1.bf16.msra.mxu0 %v1455
    %1632 = vmatprep.subr.bf16.mxu0 0
    %1633 = vmatpush1.bf16.msra.mxu0 %v1456
    %1634 = vmatprep.subr.bf16.mxu0 0
    %1635 = vmatpush1.bf16.msra.mxu0 0
    %1636 = vmatprep.subr.bf16.mxu0 0
    %1637 = vmatpush1.bf16.msra.mxu0 0
    %1638 = vmatprep.subr.bf16.mxu0 0
    %1639 = vmatpush1.bf16.msra.mxu0 0
    %1640 = vmatprep.subr.bf16.mxu0 0
    %1641 = vmatpush1.bf16.msra.mxu0 0
    %1642 = vmatprep.subr.bf16.mxu0 0
    %1643 = vmatpush1.bf16.msra.mxu0 0
    %1644 = vmatprep.subr.bf16.mxu0 0
    %1645 = vmatpush1.bf16.msra.mxu0 0
    %1646 = vmatprep.subr.bf16.mxu0 0
    %1647 = vmatpush1.bf16.msra.mxu0 0
    %1648 = vmatprep.subr.bf16.mxu0 0
    %1649 = vmatpush1.bf16.msra.mxu0 0
    %1650 = vmatprep.subr.bf16.mxu0 0
    %1651 = vmatpush1.bf16.msra.mxu0 0
    %1652 = vmatprep.subr.bf16.mxu0 0
    %1653 = vmatpush1.bf16.msra.mxu0 0
    %1654 = vmatprep.subr.bf16.mxu0 0
    %1655 = vmatpush1.bf16.msra.mxu0 0
    %1656 = vmatprep.subr.bf16.mxu0 0
    %1657 = vmatpush1.bf16.msra.mxu0 0
    %1658 = vmatprep.subr.bf16.mxu0 0
    %1659 = vmatpush1.bf16.msra.mxu0 0
    %1660 = vmatprep.subr.bf16.mxu0 0
    %1661 = vmatpush1.bf16.msra.mxu0 0
    %1662 = vmatprep.mubr.bf16.mxu0 0
    %1663 = vmatmul.mubr.bf16.gmra.mrb[0].mxu0 %v1628
    %v1664 = vpop.f32.mrb[0].mxu0
    %v1665 = vadd.f32 0.0, %v1664
    %v1666 = vpop.f32.mrb[0].mxu0
    %v1667 = vpop.f32.mrb[0].mxu0
    %v1668 = vpop.f32.mrb[0].mxu0
    %1669 = vdwg.mxu0
    %v1670 = vadd.f32 %v1622, %v1665
    %v1671 = vxor.u32 %v1620, 2147483648
    %v1672 = vmul.f32 %v1671, 1.442695
    %v1673 = vpow.pop %v1672
    %v1674 = vadd.f32 %v1673, 1.0
    %v1675 = vrcp.pop %v1674
    %v1676 = vmul.f32 1.0, %v1675
    %v1677 = vtanh.pop %v1620
    %v1678 = vmul.f32 %v1676, %v1524
    %1680 = vrot.lane.b32.xlu0 %v1677, 64
    %v1681 = vpop.permute.xlu0 %1680
    %v1683 = vmul.f32 %v1676, %v1681
    %1685 = vrot.lane.b32.xlu0 %v1683, 32
    %v1686 = vpop.permute.xlu0 %1685
    %v1688 = vadd.f32 %v1678, %v1686
    %v1689 = vtanh.pop %v1688
    %1691 = vrot.lane.b32.xlu0 %v1689, 64
    %v1692 = vpop.permute.xlu0 %1691
    %v1694 = vmul.f32 %v1676, %v1692
    %v1695 = vxor.u32 %v1670, 2147483648
    %v1696 = vmul.f32 %v1695, 1.442695
    %v1697 = vpow.pop %v1696
    %v1698 = vadd.f32 %v1697, 1.0
    %v1699 = vrcp.pop %v1698
    %v1700 = vmul.f32 1.0, %v1699
    %v1701 = vtanh.pop %v1670
    %v1702 = vmul.f32 %v1700, %v1552
    %1704 = vrot.lane.b32.xlu0 %v1701, 64
    %v1705 = vpop.permute.xlu0 %1704
    %v1707 = vmul.f32 %v1700, %v1705
    %1709 = vrot.lane.b32.xlu0 %v1707, 32
    %v1710 = vpop.permute.xlu0 %1709
    %v1712 = vadd.f32 %v1702, %v1710
    %v1713 = vtanh.pop %v1712
    %1715 = vrot.lane.b32.xlu0 %v1713, 64
    %v1716 = vpop.permute.xlu0 %1715
    %v1718 = vmul.f32 %v1700, %v1716
    %1720 = vrot.lane.b32.xlu0 %v1694, 32
    %v1721 = vpop.permute.xlu0 %1720
    %s1723 = scalar_lea.vmem [#allocation4], 2
    %1724 = vst.msk [vmem:[%s1723] sm:$0x3] %vm1563, %v1721
    %1726 = vrot.lane.b32.xlu0 %v1718, 32
    %v1727 = vpop.permute.xlu0 %1726
    %s1729 = scalar_lea.vmem [#allocation5], 12
    %1730 = vst.msk [vmem:[%s1729] sm:$0x3] %vm1563, %v1727
    %s1731 = scalar_lea.vmem [#allocation2], 4
    %v1732 = vld [vmem:[%s1731] sm:$0x3]
    %v1733 = vpack.c.bf16 %v1694, %v1694
    %1735 = vrot.lane.b32.xlu0 %v1733, 32
    %v1736 = vpop.permute.xlu0 %1735
    %v1738 = vsel %vm1399, %v1736, 0
    %1740 = vmatprep.subr.bf16.mxu0 0
    %1741 = vmatpush1.bf16.msra.mxu0 %v1395
    %1742 = vmatprep.subr.bf16.mxu0 0
    %1743 = vmatpush1.bf16.msra.mxu0 %v1396
    %1744 = vmatprep.subr.bf16.mxu0 0
    %1745 = vmatpush1.bf16.msra.mxu0 0
    %1746 = vmatprep.subr.bf16.mxu0 0
    %1747 = vmatpush1.bf16.msra.mxu0 0
    %1748 = vmatprep.subr.bf16.mxu0 0
    %1749 = vmatpush1.bf16.msra.mxu0 0
    %1750 = vmatprep.subr.bf16.mxu0 0
    %1751 = vmatpush1.bf16.msra.mxu0 0
    %1752 = vmatprep.subr.bf16.mxu0 0
    %1753 = vmatpush1.bf16.msra.mxu0 0
    %1754 = vmatprep.subr.bf16.mxu0 0
    %1755 = vmatpush1.bf16.msra.mxu0 0
    %1756 = vmatprep.subr.bf16.mxu0 0
    %1757 = vmatpush1.bf16.msra.mxu0 0
    %1758 = vmatprep.subr.bf16.mxu0 0
    %1759 = vmatpush1.bf16.msra.mxu0 0
    %1760 = vmatprep.subr.bf16.mxu0 0
    %1761 = vmatpush1.bf16.msra.mxu0 0
    %1762 = vmatprep.subr.bf16.mxu0 0
    %1763 = vmatpush1.bf16.msra.mxu0 0
    %1764 = vmatprep.subr.bf16.mxu0 0
    %1765 = vmatpush1.bf16.msra.mxu0 0
    %1766 = vmatprep.subr.bf16.mxu0 0
    %1767 = vmatpush1.bf16.msra.mxu0 0
    %1768 = vmatprep.subr.bf16.mxu0 0
    %1769 = vmatpush1.bf16.msra.mxu0 0
    %1770 = vmatprep.subr.bf16.mxu0 0
    %1771 = vmatpush1.bf16.msra.mxu0 0
    %1772 = vmatprep.mubr.bf16.mxu0 0
    %1773 = vmatmul.mubr.bf16.gmra.mrb[0].mxu0 %v1738
    %v1774 = vpop.f32.mrb[0].mxu0
    %v1775 = vadd.f32 0.0, %v1774
    %v1776 = vpop.f32.mrb[0].mxu0
    %v1777 = vpop.f32.mrb[0].mxu0
    %v1778 = vpop.f32.mrb[0].mxu0
    %1779 = vdwg.mxu0
    %v1780 = vadd.f32 %v1732, %v1775
    %s1781 = scalar_lea.vmem [#allocation3], 10
    %v1782 = vld [vmem:[%s1781] sm:$0x3]
    %v1783 = vpack.c.bf16 %v1718, %v1718
    %1785 = vrot.lane.b32.xlu0 %v1783, 32
    %v1786 = vpop.permute.xlu0 %1785
    %v1788 = vsel %vm1399, %v1786, 0
    %1790 = vmatprep.subr.bf16.mxu0 0
    %1791 = vmatpush1.bf16.msra.mxu0 %v1455
    %1792 = vmatprep.subr.bf16.mxu0 0
    %1793 = vmatpush1.bf16.msra.mxu0 %v1456
    %1794 = vmatprep.subr.bf16.mxu0 0
    %1795 = vmatpush1.bf16.msra.mxu0 0
    %1796 = vmatprep.subr.bf16.mxu0 0
    %1797 = vmatpush1.bf16.msra.mxu0 0
    %1798 = vmatprep.subr.bf16.mxu0 0
    %1799 = vmatpush1.bf16.msra.mxu0 0
    %1800 = vmatprep.subr.bf16.mxu0 0
    %1801 = vmatpush1.bf16.msra.mxu0 0
    %1802 = vmatprep.subr.bf16.mxu0 0
    %1803 = vmatpush1.bf16.msra.mxu0 0
    %1804 = vmatprep.subr.bf16.mxu0 0
    %1805 = vmatpush1.bf16.msra.mxu0 0
    %1806 = vmatprep.subr.bf16.mxu0 0
    %1807 = vmatpush1.bf16.msra.mxu0 0
    %1808 = vmatprep.subr.bf16.mxu0 0
    %1809 = vmatpush1.bf16.msra.mxu0 0
    %1810 = vmatprep.subr.bf16.mxu0 0
    %1811 = vmatpush1.bf16.msra.mxu0 0
    %1812 = vmatprep.subr.bf16.mxu0 0
    %1813 = vmatpush1.bf16.msra.mxu0 0
    %1814 = vmatprep.subr.bf16.mxu0 0
    %1815 = vmatpush1.bf16.msra.mxu0 0
    %1816 = vmatprep.subr.bf16.mxu0 0
    %1817 = vmatpush1.bf16.msra.mxu0 0
    %1818 = vmatprep.subr.bf16.mxu0 0
    %1819 = vmatpush1.bf16.msra.mxu0 0
    %1820 = vmatprep.subr.bf16.mxu0 0
    %1821 = vmatpush1.bf16.msra.mxu0 0
    %1822 = vmatprep.mubr.bf16.mxu0 0
    %1823 = vmatmul.mubr.bf16.gmra.mrb[0].mxu0 %v1788
    %v1824 = vpop.f32.mrb[0].mxu0
    %v1825 = vadd.f32 0.0, %v1824
    %v1826 = vpop.f32.mrb[0].mxu0
    %v1827 = vpop.f32.mrb[0].mxu0
    %v1828 = vpop.f32.mrb[0].mxu0
    %1829 = vdwg.mxu0
    %v1830 = vadd.f32 %v1782, %v1825
    %v1831 = vxor.u32 %v1780, 2147483648
    %v1832 = vmul.f32 %v1831, 1.442695
    %v1833 = vpow.pop %v1832
    %v1834 = vadd.f32 %v1833, 1.0
    %v1835 = vrcp.pop %v1834
    %v1836 = vmul.f32 1.0, %v1835
    %v1837 = vtanh.pop %v1780
    %v1838 = vmul.f32 %v1836, %v1688
    %1840 = vrot.lane.b32.xlu0 %v1837, 64
    %v1841 = vpop.permute.xlu0 %1840
    %v1843 = vmul.f32 %v1836, %v1841
    %1845 = vrot.lane.b32.xlu0 %v1843, 32
    %v1846 = vpop.permute.xlu0 %1845
    %v1848 = vadd.f32 %v1838, %v1846
    %v1849 = vtanh.pop %v1848
    %1851 = vrot.lane.b32.xlu0 %v1849, 64
    %v1852 = vpop.permute.xlu0 %1851
    %v1854 = vmul.f32 %v1836, %v1852
    %v1855 = vxor.u32 %v1830, 2147483648
    %v1856 = vmul.f32 %v1855, 1.442695
    %v1857 = vpow.pop %v1856
    %v1858 = vadd.f32 %v1857, 1.0
    %v1859 = vrcp.pop %v1858
    %v1860 = vmul.f32 1.0, %v1859
    %v1861 = vtanh.pop %v1830
    %v1862 = vmul.f32 %v1860, %v1712
    %1864 = vrot.lane.b32.xlu0 %v1861, 64
    %v1865 = vpop.permute.xlu0 %1864
    %v1867 = vmul.f32 %v1860, %v1865
    %1869 = vrot.lane.b32.xlu0 %v1867, 32
    %v1870 = vpop.permute.xlu0 %1869
    %v1872 = vadd.f32 %v1862, %v1870
    %v1873 = vtanh.pop %v1872
    %1875 = vrot.lane.b32.xlu0 %v1873, 64
    %v1876 = vpop.permute.xlu0 %1875
    %v1878 = vmul.f32 %v1860, %v1876
    %1880 = vrot.lane.b32.xlu0 %v1854, 32
    %v1881 = vpop.permute.xlu0 %1880
    %s1883 = scalar_lea.vmem [#allocation4], 4
    %1884 = vst.msk [vmem:[%s1883] sm:$0x3] %vm1563, %v1881
    %1886 = vrot.lane.b32.xlu0 %v1878, 32
    %v1887 = vpop.permute.xlu0 %1886
    %s1889 = scalar_lea.vmem [#allocation5], 10
    %1890 = vst.msk [vmem:[%s1889] sm:$0x3] %vm1563, %v1887
    %s1891 = scalar_lea.vmem [#allocation2], 6
    %v1892 = vld [vmem:[%s1891] sm:$0x3]
    %v1893 = vpack.c.bf16 %v1854, %v1854
    %1895 = vrot.lane.b32.xlu0 %v1893, 32
    %v1896 = vpop.permute.xlu0 %1895
    %v1898 = vsel %vm1399, %v1896, 0
    %1900 = vmatprep.subr.bf16.mxu0 0
    %1901 = vmatpush1.bf16.msra.mxu0 %v1395
    %1902 = vmatprep.subr.bf16.mxu0 0
    %1903 = vmatpush1.bf16.msra.mxu0 %v1396
    %1904 = vmatprep.subr.bf16.mxu0 0
    %1905 = vmatpush1.bf16.msra.mxu0 0
    %1906 = vmatprep.subr.bf16.mxu0 0
    %1907 = vmatpush1.bf16.msra.mxu0 0
    %1908 = vmatprep.subr.bf16.mxu0 0
    %1909 = vmatpush1.bf16.msra.mxu0 0
    %1910 = vmatprep.subr.bf16.mxu0 0
    %1911 = vmatpush1.bf16.msra.mxu0 0
    %1912 = vmatprep.subr.bf16.mxu0 0
    %1913 = vmatpush1.bf16.msra.mxu0 0
    %1914 = vmatprep.subr.bf16.mxu0 0
    %1915 = vmatpush1.bf16.msra.mxu0 0
    %1916 = vmatprep.subr.bf16.mxu0 0
    %1917 = vmatpush1.bf16.msra.mxu0 0
    %1918 = vmatprep.subr.bf16.mxu0 0
    %1919 = vmatpush1.bf16.msra.mxu0 0
    %1920 = vmatprep.subr.bf16.mxu0 0
    %1921 = vmatpush1.bf16.msra.mxu0 0
    %1922 = vmatprep.subr.bf16.mxu0 0
    %1923 = vmatpush1.bf16.msra.mxu0 0
    %1924 = vmatprep.subr.bf16.mxu0 0
    %1925 = vmatpush1.bf16.msra.mxu0 0
    %1926 = vmatprep.subr.bf16.mxu0 0
    %1927 = vmatpush1.bf16.msra.mxu0 0
    %1928 = vmatprep.subr.bf16.mxu0 0
    %1929 = vmatpush1.bf16.msra.mxu0 0
    %1930 = vmatprep.subr.bf16.mxu0 0
    %1931 = vmatpush1.bf16.msra.mxu0 0
    %1932 = vmatprep.mubr.bf16.mxu0 0
    %1933 = vmatmul.mubr.bf16.gmra.mrb[0].mxu0 %v1898
    %v1934 = vpop.f32.mrb[0].mxu0
    %v1935 = vadd.f32 0.0, %v1934
    %v1936 = vpop.f32.mrb[0].mxu0
    %v1937 = vpop.f32.mrb[0].mxu0
    %v1938 = vpop.f32.mrb[0].mxu0
    %1939 = vdwg.mxu0
    %v1940 = vadd.f32 %v1892, %v1935
    %s1941 = scalar_lea.vmem [#allocation3], 8
    %v1942 = vld [vmem:[%s1941] sm:$0x3]
    %v1943 = vpack.c.bf16 %v1878, %v1878
    %1945 = vrot.lane.b32.xlu0 %v1943, 32
    %v1946 = vpop.permute.xlu0 %1945
    %v1948 = vsel %vm1399, %v1946, 0
    %1950 = vmatprep.subr.bf16.mxu0 0
    %1951 = vmatpush1.bf16.msra.mxu0 %v1455
    %1952 = vmatprep.subr.bf16.mxu0 0
    %1953 = vmatpush1.bf16.msra.mxu0 %v1456
    %1954 = vmatprep.subr.bf16.mxu0 0
    %1955 = vmatpush1.bf16.msra.mxu0 0
    %1956 = vmatprep.subr.bf16.mxu0 0
    %1957 = vmatpush1.bf16.msra.mxu0 0
    %1958 = vmatprep.subr.bf16.mxu0 0
    %1959 = vmatpush1.bf16.msra.mxu0 0
    %1960 = vmatprep.subr.bf16.mxu0 0
    %1961 = vmatpush1.bf16.msra.mxu0 0
    %1962 = vmatprep.subr.bf16.mxu0 0
    %1963 = vmatpush1.bf16.msra.mxu0 0
    %1964 = vmatprep.subr.bf16.mxu0 0
    %1965 = vmatpush1.bf16.msra.mxu0 0
    %1966 = vmatprep.subr.bf16.mxu0 0
    %1967 = vmatpush1.bf16.msra.mxu0 0
    %1968 = vmatprep.subr.bf16.mxu0 0
    %1969 = vmatpush1.bf16.msra.mxu0 0
    %1970 = vmatprep.subr.bf16.mxu0 0
    %1971 = vmatpush1.bf16.msra.mxu0 0
    %1972 = vmatprep.subr.bf16.mxu0 0
    %1973 = vmatpush1.bf16.msra.mxu0 0
    %1974 = vmatprep.subr.bf16.mxu0 0
    %1975 = vmatpush1.bf16.msra.mxu0 0
    %1976 = vmatprep.subr.bf16.mxu0 0
    %1977 = vmatpush1.bf16.msra.mxu0 0
    %1978 = vmatprep.subr.bf16.mxu0 0
    %1979 = vmatpush1.bf16.msra.mxu0 0
    %1980 = vmatprep.subr.bf16.mxu0 0
    %1981 = vmatpush1.bf16.msra.mxu0 0
    %1982 = vmatprep.mubr.bf16.mxu0 0
    %1983 = vmatmul.mubr.bf16.gmra.mrb[0].mxu0 %v1948
    %v1984 = vpop.f32.mrb[0].mxu0
    %v1985 = vadd.f32 0.0, %v1984
    %v1986 = vpop.f32.mrb[0].mxu0
    %v1987 = vpop.f32.mrb[0].mxu0
    %v1988 = vpop.f32.mrb[0].mxu0
    %1989 = vdwg.mxu0
    %v1990 = vadd.f32 %v1942, %v1985
    %v1991 = vxor.u32 %v1940, 2147483648
    %v1992 = vmul.f32 %v1991, 1.442695
    %v1993 = vpow.pop %v1992
    %v1994 = vadd.f32 %v1993, 1.0
    %v1995 = vrcp.pop %v1994
    %v1996 = vmul.f32 1.0, %v1995
    %v1997 = vtanh.pop %v1940
    %v1998 = vmul.f32 %v1996, %v1848
    %2000 = vrot.lane.b32.xlu0 %v1997, 64
    %v2001 = vpop.permute.xlu0 %2000
    %v2003 = vmul.f32 %v1996, %v2001
    %2005 = vrot.lane.b32.xlu0 %v2003, 32
    %v2006 = vpop.permute.xlu0 %2005
    %v2008 = vadd.f32 %v1998, %v2006
    %v2009 = vtanh.pop %v2008
    %2011 = vrot.lane.b32.xlu0 %v2009, 64
    %v2012 = vpop.permute.xlu0 %2011
    %v2014 = vmul.f32 %v1996, %v2012
    %v2015 = vxor.u32 %v1990, 2147483648
    %v2016 = vmul.f32 %v2015, 1.442695
    %v2017 = vpow.pop %v2016
    %v2018 = vadd.f32 %v2017, 1.0
    %v2019 = vrcp.pop %v2018
    %v2020 = vmul.f32 1.0, %v2019
    %v2021 = vtanh.pop %v1990
    %v2022 = vmul.f32 %v2020, %v1872
    %2024 = vrot.lane.b32.xlu0 %v2021, 64
    %v2025 = vpop.permute.xlu0 %2024
    %v2027 = vmul.f32 %v2020, %v2025
    %2029 = vrot.lane.b32.xlu0 %v2027, 32
    %v2030 = vpop.permute.xlu0 %2029
    %v2032 = vadd.f32 %v2022, %v2030
    %v2033 = vtanh.pop %v2032
    %2035 = vrot.lane.b32.xlu0 %v2033, 64
    %v2036 = vpop.permute.xlu0 %2035
    %v2038 = vmul.f32 %v2020, %v2036
    %2040 = vrot.lane.b32.xlu0 %v2014, 32
    %v2041 = vpop.permute.xlu0 %2040
    %s2043 = scalar_lea.vmem [#allocation4], 6
    %2044 = vst.msk [vmem:[%s2043] sm:$0x3] %vm1563, %v2041
    %2046 = vrot.lane.b32.xlu0 %v2038, 32
    %v2047 = vpop.permute.xlu0 %2046
    %s2049 = scalar_lea.vmem [#allocation5], 8
    %2050 = vst.msk [vmem:[%s2049] sm:$0x3] %vm1563, %v2047
    %s2051 = scalar_lea.vmem [#allocation2], 8
    %v2052 = vld [vmem:[%s2051] sm:$0x3]
    %v2053 = vpack.c.bf16 %v2014, %v2014
    %2055 = vrot.lane.b32.xlu0 %v2053, 32
    %v2056 = vpop.permute.xlu0 %2055
    %v2058 = vsel %vm1399, %v2056, 0
    %2060 = vmatprep.subr.bf16.mxu0 0
    %2061 = vmatpush1.bf16.msra.mxu0 %v1395
    %2062 = vmatprep.subr.bf16.mxu0 0
    %2063 = vmatpush1.bf16.msra.mxu0 %v1396
    %2064 = vmatprep.subr.bf16.mxu0 0
    %2065 = vmatpush1.bf16.msra.mxu0 0
    %2066 = vmatprep.subr.bf16.mxu0 0
    %2067 = vmatpush1.bf16.msra.mxu0 0
    %2068 = vmatprep.subr.bf16.mxu0 0
    %2069 = vmatpush1.bf16.msra.mxu0 0
    %2070 = vmatprep.subr.bf16.mxu0 0
    %2071 = vmatpush1.bf16.msra.mxu0 0
    %2072 = vmatprep.subr.bf16.mxu0 0
    %2073 = vmatpush1.bf16.msra.mxu0 0
    %2074 = vmatprep.subr.bf16.mxu0 0
    %2075 = vmatpush1.bf16.msra.mxu0 0
    %2076 = vmatprep.subr.bf16.mxu0 0
    %2077 = vmatpush1.bf16.msra.mxu0 0
    %2078 = vmatprep.subr.bf16.mxu0 0
    %2079 = vmatpush1.bf16.msra.mxu0 0
    %2080 = vmatprep.subr.bf16.mxu0 0
    %2081 = vmatpush1.bf16.msra.mxu0 0
    %2082 = vmatprep.subr.bf16.mxu0 0
    %2083 = vmatpush1.bf16.msra.mxu0 0
    %2084 = vmatprep.subr.bf16.mxu0 0
    %2085 = vmatpush1.bf16.msra.mxu0 0
    %2086 = vmatprep.subr.bf16.mxu0 0
    %2087 = vmatpush1.bf16.msra.mxu0 0
    %2088 = vmatprep.subr.bf16.mxu0 0
    %2089 = vmatpush1.bf16.msra.mxu0 0
    %2090 = vmatprep.subr.bf16.mxu0 0
    %2091 = vmatpush1.bf16.msra.mxu0 0
    %2092 = vmatprep.mubr.bf16.mxu0 0
    %2093 = vmatmul.mubr.bf16.gmra.mrb[0].mxu0 %v2058
    %v2094 = vpop.f32.mrb[0].mxu0
    %v2095 = vadd.f32 0.0, %v2094
    %v2096 = vpop.f32.mrb[0].mxu0
    %v2097 = vpop.f32.mrb[0].mxu0
    %v2098 = vpop.f32.mrb[0].mxu0
    %2099 = vdwg.mxu0
    %v2100 = vadd.f32 %v2052, %v2095
    %s2101 = scalar_lea.vmem [#allocation3], 6
    %v2102 = vld [vmem:[%s2101] sm:$0x3]
    %v2103 = vpack.c.bf16 %v2038, %v2038
    %2105 = vrot.lane.b32.xlu0 %v2103, 32
    %v2106 = vpop.permute.xlu0 %2105
    %v2108 = vsel %vm1399, %v2106, 0
    %2110 = vmatprep.subr.bf16.mxu0 0
    %2111 = vmatpush1.bf16.msra.mxu0 %v1455
    %2112 = vmatprep.subr.bf16.mxu0 0
    %2113 = vmatpush1.bf16.msra.mxu0 %v1456
    %2114 = vmatprep.subr.bf16.mxu0 0
    %2115 = vmatpush1.bf16.msra.mxu0 0
    %2116 = vmatprep.subr.bf16.mxu0 0
    %2117 = vmatpush1.bf16.msra.mxu0 0
    %2118 = vmatprep.subr.bf16.mxu0 0
    %2119 = vmatpush1.bf16.msra.mxu0 0
    %2120 = vmatprep.subr.bf16.mxu0 0
    %2121 = vmatpush1.bf16.msra.mxu0 0
    %2122 = vmatprep.subr.bf16.mxu0 0
    %2123 = vmatpush1.bf16.msra.mxu0 0
    %2124 = vmatprep.subr.bf16.mxu0 0
    %2125 = vmatpush1.bf16.msra.mxu0 0
    %2126 = vmatprep.subr.bf16.mxu0 0
    %2127 = vmatpush1.bf16.msra.mxu0 0
    %2128 = vmatprep.subr.bf16.mxu0 0
    %2129 = vmatpush1.bf16.msra.mxu0 0
    %2130 = vmatprep.subr.bf16.mxu0 0
    %2131 = vmatpush1.bf16.msra.mxu0 0
    %2132 = vmatprep.subr.bf16.mxu0 0
    %2133 = vmatpush1.bf16.msra.mxu0 0
    %2134 = vmatprep.subr.bf16.mxu0 0
    %2135 = vmatpush1.bf16.msra.mxu0 0
    %2136 = vmatprep.subr.bf16.mxu0 0
    %2137 = vmatpush1.bf16.msra.mxu0 0
    %2138 = vmatprep.subr.bf16.mxu0 0
    %2139 = vmatpush1.bf16.msra.mxu0 0
    %2140 = vmatprep.subr.bf16.mxu0 0
    %2141 = vmatpush1.bf16.msra.mxu0 0
    %2142 = vmatprep.mubr.bf16.mxu0 0
    %2143 = vmatmul.mubr.bf16.gmra.mrb[0].mxu0 %v2108
    %v2144 = vpop.f32.mrb[0].mxu0
    %v2145 = vadd.f32 0.0, %v2144
    %v2146 = vpop.f32.mrb[0].mxu0
    %v2147 = vpop.f32.mrb[0].mxu0
    %v2148 = vpop.f32.mrb[0].mxu0
    %2149 = vdwg.mxu0
    %v2150 = vadd.f32 %v2102, %v2145
    %v2151 = vxor.u32 %v2100, 2147483648
    %v2152 = vmul.f32 %v2151, 1.442695
    %v2153 = vpow.pop %v2152
    %v2154 = vadd.f32 %v2153, 1.0
    %v2155 = vrcp.pop %v2154
    %v2156 = vmul.f32 1.0, %v2155
    %v2157 = vtanh.pop %v2100
    %v2158 = vmul.f32 %v2156, %v2008
    %2160 = vrot.lane.b32.xlu0 %v2157, 64
    %v2161 = vpop.permute.xlu0 %2160
    %v2163 = vmul.f32 %v2156, %v2161
    %2165 = vrot.lane.b32.xlu0 %v2163, 32
    %v2166 = vpop.permute.xlu0 %2165
    %v2168 = vadd.f32 %v2158, %v2166
    %v2169 = vtanh.pop %v2168
    %2171 = vrot.lane.b32.xlu0 %v2169, 64
    %v2172 = vpop.permute.xlu0 %2171
    %v2174 = vmul.f32 %v2156, %v2172
    %v2175 = vxor.u32 %v2150, 2147483648
    %v2176 = vmul.f32 %v2175, 1.442695
    %v2177 = vpow.pop %v2176
    %v2178 = vadd.f32 %v2177, 1.0
    %v2179 = vrcp.pop %v2178
    %v2180 = vmul.f32 1.0, %v2179
    %v2181 = vtanh.pop %v2150
    %v2182 = vmul.f32 %v2180, %v2032
    %2184 = vrot.lane.b32.xlu0 %v2181, 64
    %v2185 = vpop.permute.xlu0 %2184
    %v2187 = vmul.f32 %v2180, %v2185
    %2189 = vrot.lane.b32.xlu0 %v2187, 32
    %v2190 = vpop.permute.xlu0 %2189
    %v2192 = vadd.f32 %v2182, %v2190
    %v2193 = vtanh.pop %v2192
    %2195 = vrot.lane.b32.xlu0 %v2193, 64
    %v2196 = vpop.permute.xlu0 %2195
    %v2198 = vmul.f32 %v2180, %v2196
    %2200 = vrot.lane.b32.xlu0 %v2174, 32
    %v2201 = vpop.permute.xlu0 %2200
    %s2203 = scalar_lea.vmem [#allocation4], 8
    %2204 = vst.msk [vmem:[%s2203] sm:$0x3] %vm1563, %v2201
    %2206 = vrot.lane.b32.xlu0 %v2198, 32
    %v2207 = vpop.permute.xlu0 %2206
    %s2209 = scalar_lea.vmem [#allocation5], 6
    %2210 = vst.msk [vmem:[%s2209] sm:$0x3] %vm1563, %v2207
    %s2211 = scalar_lea.vmem [#allocation2], 10
    %v2212 = vld [vmem:[%s2211] sm:$0x3]
    %v2213 = vpack.c.bf16 %v2174, %v2174
    %2215 = vrot.lane.b32.xlu0 %v2213, 32
    %v2216 = vpop.permute.xlu0 %2215
    %v2218 = vsel %vm1399, %v2216, 0
    %2220 = vmatprep.subr.bf16.mxu0 0
    %2221 = vmatpush1.bf16.msra.mxu0 %v1395
    %2222 = vmatprep.subr.bf16.mxu0 0
    %2223 = vmatpush1.bf16.msra.mxu0 %v1396
    %2224 = vmatprep.subr.bf16.mxu0 0
    %2225 = vmatpush1.bf16.msra.mxu0 0
    %2226 = vmatprep.subr.bf16.mxu0 0
    %2227 = vmatpush1.bf16.msra.mxu0 0
    %2228 = vmatprep.subr.bf16.mxu0 0
    %2229 = vmatpush1.bf16.msra.mxu0 0
    %2230 = vmatprep.subr.bf16.mxu0 0
    %2231 = vmatpush1.bf16.msra.mxu0 0
    %2232 = vmatprep.subr.bf16.mxu0 0
    %2233 = vmatpush1.bf16.msra.mxu0 0
    %2234 = vmatprep.subr.bf16.mxu0 0
    %2235 = vmatpush1.bf16.msra.mxu0 0
    %2236 = vmatprep.subr.bf16.mxu0 0
    %2237 = vmatpush1.bf16.msra.mxu0 0
    %2238 = vmatprep.subr.bf16.mxu0 0
    %2239 = vmatpush1.bf16.msra.mxu0 0
    %2240 = vmatprep.subr.bf16.mxu0 0
    %2241 = vmatpush1.bf16.msra.mxu0 0
    %2242 = vmatprep.subr.bf16.mxu0 0
    %2243 = vmatpush1.bf16.msra.mxu0 0
    %2244 = vmatprep.subr.bf16.mxu0 0
    %2245 = vmatpush1.bf16.msra.mxu0 0
    %2246 = vmatprep.subr.bf16.mxu0 0
    %2247 = vmatpush1.bf16.msra.mxu0 0
    %2248 = vmatprep.subr.bf16.mxu0 0
    %2249 = vmatpush1.bf16.msra.mxu0 0
    %2250 = vmatprep.subr.bf16.mxu0 0
    %2251 = vmatpush1.bf16.msra.mxu0 0
    %2252 = vmatprep.mubr.bf16.mxu0 0
    %2253 = vmatmul.mubr.bf16.gmra.mrb[0].mxu0 %v2218
    %v2254 = vpop.f32.mrb[0].mxu0
    %v2255 = vadd.f32 0.0, %v2254
    %v2256 = vpop.f32.mrb[0].mxu0
    %v2257 = vpop.f32.mrb[0].mxu0
    %v2258 = vpop.f32.mrb[0].mxu0
    %2259 = vdwg.mxu0
    %v2260 = vadd.f32 %v2212, %v2255
    %s2261 = scalar_lea.vmem [#allocation3], 4
    %v2262 = vld [vmem:[%s2261] sm:$0x3]
    %v2263 = vpack.c.bf16 %v2198, %v2198
    %2265 = vrot.lane.b32.xlu0 %v2263, 32
    %v2266 = vpop.permute.xlu0 %2265
    %v2268 = vsel %vm1399, %v2266, 0
    %2270 = vmatprep.subr.bf16.mxu0 0
    %2271 = vmatpush1.bf16.msra.mxu0 %v1455
    %2272 = vmatprep.subr.bf16.mxu0 0
    %2273 = vmatpush1.bf16.msra.mxu0 %v1456
    %2274 = vmatprep.subr.bf16.mxu0 0
    %2275 = vmatpush1.bf16.msra.mxu0 0
    %2276 = vmatprep.subr.bf16.mxu0 0
    %2277 = vmatpush1.bf16.msra.mxu0 0
    %2278 = vmatprep.subr.bf16.mxu0 0
    %2279 = vmatpush1.bf16.msra.mxu0 0
    %2280 = vmatprep.subr.bf16.mxu0 0
    %2281 = vmatpush1.bf16.msra.mxu0 0
    %2282 = vmatprep.subr.bf16.mxu0 0
    %2283 = vmatpush1.bf16.msra.mxu0 0
    %2284 = vmatprep.subr.bf16.mxu0 0
    %2285 = vmatpush1.bf16.msra.mxu0 0
    %2286 = vmatprep.subr.bf16.mxu0 0
    %2287 = vmatpush1.bf16.msra.mxu0 0
    %2288 = vmatprep.subr.bf16.mxu0 0
    %2289 = vmatpush1.bf16.msra.mxu0 0
    %2290 = vmatprep.subr.bf16.mxu0 0
    %2291 = vmatpush1.bf16.msra.mxu0 0
    %2292 = vmatprep.subr.bf16.mxu0 0
    %2293 = vmatpush1.bf16.msra.mxu0 0
    %2294 = vmatprep.subr.bf16.mxu0 0
    %2295 = vmatpush1.bf16.msra.mxu0 0
    %2296 = vmatprep.subr.bf16.mxu0 0
    %2297 = vmatpush1.bf16.msra.mxu0 0
    %2298 = vmatprep.subr.bf16.mxu0 0
    %2299 = vmatpush1.bf16.msra.mxu0 0
    %2300 = vmatprep.subr.bf16.mxu0 0
    %2301 = vmatpush1.bf16.msra.mxu0 0
    %2302 = vmatprep.mubr.bf16.mxu0 0
    %2303 = vmatmul.mubr.bf16.gmra.mrb[0].mxu0 %v2268
    %v2304 = vpop.f32.mrb[0].mxu0
    %v2305 = vadd.f32 0.0, %v2304
    %v2306 = vpop.f32.mrb[0].mxu0
    %v2307 = vpop.f32.mrb[0].mxu0
    %v2308 = vpop.f32.mrb[0].mxu0
    %2309 = vdwg.mxu0
    %v2310 = vadd.f32 %v2262, %v2305
    %v2311 = vxor.u32 %v2260, 2147483648
    %v2312 = vmul.f32 %v2311, 1.442695
    %v2313 = vpow.pop %v2312
    %v2314 = vadd.f32 %v2313, 1.0
    %v2315 = vrcp.pop %v2314
    %v2316 = vmul.f32 1.0, %v2315
    %v2317 = vtanh.pop %v2260
    %v2318 = vmul.f32 %v2316, %v2168
    %2320 = vrot.lane.b32.xlu0 %v2317, 64
    %v2321 = vpop.permute.xlu0 %2320
    %v2323 = vmul.f32 %v2316, %v2321
    %2325 = vrot.lane.b32.xlu0 %v2323, 32
    %v2326 = vpop.permute.xlu0 %2325
    %v2328 = vadd.f32 %v2318, %v2326
    %v2329 = vtanh.pop %v2328
    %2331 = vrot.lane.b32.xlu0 %v2329, 64
    %v2332 = vpop.permute.xlu0 %2331
    %v2334 = vmul.f32 %v2316, %v2332
    %v2335 = vxor.u32 %v2310, 2147483648
    %v2336 = vmul.f32 %v2335, 1.442695
    %v2337 = vpow.pop %v2336
    %v2338 = vadd.f32 %v2337, 1.0
    %v2339 = vrcp.pop %v2338
    %v2340 = vmul.f32 1.0, %v2339
    %v2341 = vtanh.pop %v2310
    %v2342 = vmul.f32 %v2340, %v2192
    %2344 = vrot.lane.b32.xlu0 %v2341, 64
    %v2345 = vpop.permute.xlu0 %2344
    %v2347 = vmul.f32 %v2340, %v2345
    %2349 = vrot.lane.b32.xlu0 %v2347, 32
    %v2350 = vpop.permute.xlu0 %2349
    %v2352 = vadd.f32 %v2342, %v2350
    %v2353 = vtanh.pop %v2352
    %2355 = vrot.lane.b32.xlu0 %v2353, 64
    %v2356 = vpop.permute.xlu0 %2355
    %v2358 = vmul.f32 %v2340, %v2356
    %2360 = vrot.lane.b32.xlu0 %v2334, 32
    %v2361 = vpop.permute.xlu0 %2360
    %s2363 = scalar_lea.vmem [#allocation4], 10
    %2364 = vst.msk [vmem:[%s2363] sm:$0x3] %vm1563, %v2361
    %2366 = vrot.lane.b32.xlu0 %v2358, 32
    %v2367 = vpop.permute.xlu0 %2366
    %s2369 = scalar_lea.vmem [#allocation5], 4
    %2370 = vst.msk [vmem:[%s2369] sm:$0x3] %vm1563, %v2367
    %s2371 = scalar_lea.vmem [#allocation2], 12
    %v2372 = vld [vmem:[%s2371] sm:$0x3]
    %v2373 = vpack.c.bf16 %v2334, %v2334
    %2375 = vrot.lane.b32.xlu0 %v2373, 32
    %v2376 = vpop.permute.xlu0 %2375
    %v2378 = vsel %vm1399, %v2376, 0
    %2380 = vmatprep.subr.bf16.mxu0 0
    %2381 = vmatpush1.bf16.msra.mxu0 %v1395
    %2382 = vmatprep.subr.bf16.mxu0 0
    %2383 = vmatpush1.bf16.msra.mxu0 %v1396
    %2384 = vmatprep.subr.bf16.mxu0 0
    %2385 = vmatpush1.bf16.msra.mxu0 0
    %2386 = vmatprep.subr.bf16.mxu0 0
    %2387 = vmatpush1.bf16.msra.mxu0 0
    %2388 = vmatprep.subr.bf16.mxu0 0
    %2389 = vmatpush1.bf16.msra.mxu0 0
    %2390 = vmatprep.subr.bf16.mxu0 0
    %2391 = vmatpush1.bf16.msra.mxu0 0
    %2392 = vmatprep.subr.bf16.mxu0 0
    %2393 = vmatpush1.bf16.msra.mxu0 0
    %2394 = vmatprep.subr.bf16.mxu0 0
    %2395 = vmatpush1.bf16.msra.mxu0 0
    %2396 = vmatprep.subr.bf16.mxu0 0
    %2397 = vmatpush1.bf16.msra.mxu0 0
    %2398 = vmatprep.subr.bf16.mxu0 0
    %2399 = vmatpush1.bf16.msra.mxu0 0
    %2400 = vmatprep.subr.bf16.mxu0 0
    %2401 = vmatpush1.bf16.msra.mxu0 0
    %2402 = vmatprep.subr.bf16.mxu0 0
    %2403 = vmatpush1.bf16.msra.mxu0 0
    %2404 = vmatprep.subr.bf16.mxu0 0
    %2405 = vmatpush1.bf16.msra.mxu0 0
    %2406 = vmatprep.subr.bf16.mxu0 0
    %2407 = vmatpush1.bf16.msra.mxu0 0
    %2408 = vmatprep.subr.bf16.mxu0 0
    %2409 = vmatpush1.bf16.msra.mxu0 0
    %2410 = vmatprep.subr.bf16.mxu0 0
    %2411 = vmatpush1.bf16.msra.mxu0 0
    %2412 = vmatprep.mubr.bf16.mxu0 0
    %2413 = vmatmul.mubr.bf16.gmra.mrb[0].mxu0 %v2378
    %v2414 = vpop.f32.mrb[0].mxu0
    %v2415 = vadd.f32 0.0, %v2414
    %v2416 = vpop.f32.mrb[0].mxu0
    %v2417 = vpop.f32.mrb[0].mxu0
    %v2418 = vpop.f32.mrb[0].mxu0
    %2419 = vdwg.mxu0
    %v2420 = vadd.f32 %v2372, %v2415
    %s2421 = scalar_lea.vmem [#allocation3], 2
    %v2422 = vld [vmem:[%s2421] sm:$0x3]
    %v2423 = vpack.c.bf16 %v2358, %v2358
    %2425 = vrot.lane.b32.xlu0 %v2423, 32
    %v2426 = vpop.permute.xlu0 %2425
    %v2428 = vsel %vm1399, %v2426, 0
    %2430 = vmatprep.subr.bf16.mxu0 0
    %2431 = vmatpush1.bf16.msra.mxu0 %v1455
    %2432 = vmatprep.subr.bf16.mxu0 0
    %2433 = vmatpush1.bf16.msra.mxu0 %v1456
    %2434 = vmatprep.subr.bf16.mxu0 0
    %2435 = vmatpush1.bf16.msra.mxu0 0
    %2436 = vmatprep.subr.bf16.mxu0 0
    %2437 = vmatpush1.bf16.msra.mxu0 0
    %2438 = vmatprep.subr.bf16.mxu0 0
    %2439 = vmatpush1.bf16.msra.mxu0 0
    %2440 = vmatprep.subr.bf16.mxu0 0
    %2441 = vmatpush1.bf16.msra.mxu0 0
    %2442 = vmatprep.subr.bf16.mxu0 0
    %2443 = vmatpush1.bf16.msra.mxu0 0
    %2444 = vmatprep.subr.bf16.mxu0 0
    %2445 = vmatpush1.bf16.msra.mxu0 0
    %2446 = vmatprep.subr.bf16.mxu0 0
    %2447 = vmatpush1.bf16.msra.mxu0 0
    %2448 = vmatprep.subr.bf16.mxu0 0
    %2449 = vmatpush1.bf16.msra.mxu0 0
    %2450 = vmatprep.subr.bf16.mxu0 0
    %2451 = vmatpush1.bf16.msra.mxu0 0
    %2452 = vmatprep.subr.bf16.mxu0 0
    %2453 = vmatpush1.bf16.msra.mxu0 0
    %2454 = vmatprep.subr.bf16.mxu0 0
    %2455 = vmatpush1.bf16.msra.mxu0 0
    %2456 = vmatprep.subr.bf16.mxu0 0
    %2457 = vmatpush1.bf16.msra.mxu0 0
    %2458 = vmatprep.subr.bf16.mxu0 0
    %2459 = vmatpush1.bf16.msra.mxu0 0
    %2460 = vmatprep.subr.bf16.mxu0 0
    %2461 = vmatpush1.bf16.msra.mxu0 0
    %2462 = vmatprep.mubr.bf16.mxu0 0
    %2463 = vmatmul.mubr.bf16.gmra.mrb[0].mxu0 %v2428
    %v2464 = vpop.f32.mrb[0].mxu0
    %v2465 = vadd.f32 0.0, %v2464
    %v2466 = vpop.f32.mrb[0].mxu0
    %v2467 = vpop.f32.mrb[0].mxu0
    %v2468 = vpop.f32.mrb[0].mxu0
    %2469 = vdwg.mxu0
    %v2470 = vadd.f32 %v2422, %v2465
    %v2471 = vxor.u32 %v2420, 2147483648
    %v2472 = vmul.f32 %v2471, 1.442695
    %v2473 = vpow.pop %v2472
    %v2474 = vadd.f32 %v2473, 1.0
    %v2475 = vrcp.pop %v2474
    %v2476 = vmul.f32 1.0, %v2475
    %v2477 = vtanh.pop %v2420
    %v2478 = vmul.f32 %v2476, %v2328
    %2480 = vrot.lane.b32.xlu0 %v2477, 64
    %v2481 = vpop.permute.xlu0 %2480
    %v2483 = vmul.f32 %v2476, %v2481
    %2485 = vrot.lane.b32.xlu0 %v2483, 32
    %v2486 = vpop.permute.xlu0 %2485
    %v2488 = vadd.f32 %v2478, %v2486
    %v2489 = vtanh.pop %v2488
    %2491 = vrot.lane.b32.xlu0 %v2489, 64
    %v2492 = vpop.permute.xlu0 %2491
    %v2494 = vmul.f32 %v2476, %v2492
    %v2495 = vxor.u32 %v2470, 2147483648
    %v2496 = vmul.f32 %v2495, 1.442695
    %v2497 = vpow.pop %v2496
    %v2498 = vadd.f32 %v2497, 1.0
    %v2499 = vrcp.pop %v2498
    %v2500 = vmul.f32 1.0, %v2499
    %v2501 = vtanh.pop %v2470
    %v2502 = vmul.f32 %v2500, %v2352
    %2504 = vrot.lane.b32.xlu0 %v2501, 64
    %v2505 = vpop.permute.xlu0 %2504
    %v2507 = vmul.f32 %v2500, %v2505
    %2509 = vrot.lane.b32.xlu0 %v2507, 32
    %v2510 = vpop.permute.xlu0 %2509
    %v2512 = vadd.f32 %v2502, %v2510
    %v2513 = vtanh.pop %v2512
    %2515 = vrot.lane.b32.xlu0 %v2513, 64
    %v2516 = vpop.permute.xlu0 %2515
    %v2518 = vmul.f32 %v2500, %v2516
    %2520 = vrot.lane.b32.xlu0 %v2494, 32
    %v2521 = vpop.permute.xlu0 %2520
    %s2523 = scalar_lea.vmem [#allocation4], 12
    %2524 = vst.msk [vmem:[%s2523] sm:$0x3] %vm1563, %v2521
    %2526 = vrot.lane.b32.xlu0 %v2518, 32
    %v2527 = vpop.permute.xlu0 %2526
    %s2529 = scalar_lea.vmem [#allocation5], 2
    %2530 = vst.msk [vmem:[%s2529] sm:$0x3] %vm1563, %v2527
    %s2531 = scalar_lea.vmem [#allocation2], 14
    %v2532 = vld [vmem:[%s2531] sm:$0x3]
    %v2533 = vpack.c.bf16 %v2494, %v2494
    %2535 = vrot.lane.b32.xlu0 %v2533, 32
    %v2536 = vpop.permute.xlu0 %2535
    %v2538 = vsel %vm1399, %v2536, 0
    %2540 = vmatprep.subr.bf16.mxu0 0
    %2541 = vmatpush1.bf16.msra.mxu0 %v1395
    %2542 = vmatprep.subr.bf16.mxu0 0
    %2543 = vmatpush1.bf16.msra.mxu0 %v1396
    %2544 = vmatprep.subr.bf16.mxu0 0
    %2545 = vmatpush1.bf16.msra.mxu0 0
    %2546 = vmatprep.subr.bf16.mxu0 0
    %2547 = vmatpush1.bf16.msra.mxu0 0
    %2548 = vmatprep.subr.bf16.mxu0 0
    %2549 = vmatpush1.bf16.msra.mxu0 0
    %2550 = vmatprep.subr.bf16.mxu0 0
    %2551 = vmatpush1.bf16.msra.mxu0 0
    %2552 = vmatprep.subr.bf16.mxu0 0
    %2553 = vmatpush1.bf16.msra.mxu0 0
    %2554 = vmatprep.subr.bf16.mxu0 0
    %2555 = vmatpush1.bf16.msra.mxu0 0
    %2556 = vmatprep.subr.bf16.mxu0 0
    %2557 = vmatpush1.bf16.msra.mxu0 0
    %2558 = vmatprep.subr.bf16.mxu0 0
    %2559 = vmatpush1.bf16.msra.mxu0 0
    %2560 = vmatprep.subr.bf16.mxu0 0
    %2561 = vmatpush1.bf16.msra.mxu0 0
    %2562 = vmatprep.subr.bf16.mxu0 0
    %2563 = vmatpush1.bf16.msra.mxu0 0
    %2564 = vmatprep.subr.bf16.mxu0 0
    %2565 = vmatpush1.bf16.msra.mxu0 0
    %2566 = vmatprep.subr.bf16.mxu0 0
    %2567 = vmatpush1.bf16.msra.mxu0 0
    %2568 = vmatprep.subr.bf16.mxu0 0
    %2569 = vmatpush1.bf16.msra.mxu0 0
    %2570 = vmatprep.subr.bf16.mxu0 0
    %2571 = vmatpush1.bf16.msra.mxu0 0
    %2572 = vmatprep.mubr.bf16.mxu0 0
    %2573 = vmatmul.mubr.bf16.gmra.mrb[0].mxu0 %v2538
    %v2574 = vpop.f32.mrb[0].mxu0
    %v2575 = vadd.f32 0.0, %v2574
    %v2576 = vpop.f32.mrb[0].mxu0
    %v2577 = vpop.f32.mrb[0].mxu0
    %v2578 = vpop.f32.mrb[0].mxu0
    %2579 = vdwg.mxu0
    %v2580 = vadd.f32 %v2532, %v2575
    %v2581 = vld [vmem:[#allocation3] sm:$0x3]
    %v2582 = vpack.c.bf16 %v2518, %v2518
    %2584 = vrot.lane.b32.xlu0 %v2582, 32
    %v2585 = vpop.permute.xlu0 %2584
    %v2587 = vsel %vm1399, %v2585, 0
    %2589 = vmatprep.subr.bf16.mxu0 0
    %2590 = vmatpush1.bf16.msra.mxu0 %v1455
    %2591 = vmatprep.subr.bf16.mxu0 0
    %2592 = vmatpush1.bf16.msra.mxu0 %v1456
    %2593 = vmatprep.subr.bf16.mxu0 0
    %2594 = vmatpush1.bf16.msra.mxu0 0
    %2595 = vmatprep.subr.bf16.mxu0 0
    %2596 = vmatpush1.bf16.msra.mxu0 0
    %2597 = vmatprep.subr.bf16.mxu0 0
    %2598 = vmatpush1.bf16.msra.mxu0 0
    %2599 = vmatprep.subr.bf16.mxu0 0
    %2600 = vmatpush1.bf16.msra.mxu0 0
    %2601 = vmatprep.subr.bf16.mxu0 0
    %2602 = vmatpush1.bf16.msra.mxu0 0
    %2603 = vmatprep.subr.bf16.mxu0 0
    %2604 = vmatpush1.bf16.msra.mxu0 0
    %2605 = vmatprep.subr.bf16.mxu0 0
    %2606 = vmatpush1.bf16.msra.mxu0 0
    %2607 = vmatprep.subr.bf16.mxu0 0
    %2608 = vmatpush1.bf16.msra.mxu0 0
    %2609 = vmatprep.subr.bf16.mxu0 0
    %2610 = vmatpush1.bf16.msra.mxu0 0
    %2611 = vmatprep.subr.bf16.mxu0 0
    %2612 = vmatpush1.bf16.msra.mxu0 0
    %2613 = vmatprep.subr.bf16.mxu0 0
    %2614 = vmatpush1.bf16.msra.mxu0 0
    %2615 = vmatprep.subr.bf16.mxu0 0
    %2616 = vmatpush1.bf16.msra.mxu0 0
    %2617 = vmatprep.subr.bf16.mxu0 0
    %2618 = vmatpush1.bf16.msra.mxu0 0
    %2619 = vmatprep.subr.bf16.mxu0 0
    %2620 = vmatpush1.bf16.msra.mxu0 0
    %2621 = vmatprep.mubr.bf16.mxu0 0
    %2622 = vmatmul.mubr.bf16.gmra.mrb[0].mxu0 %v2587
    %v2623 = vpop.f32.mrb[0].mxu0
    %v2624 = vadd.f32 0.0, %v2623
    %v2625 = vpop.f32.mrb[0].mxu0
    %v2626 = vpop.f32.mrb[0].mxu0
    %v2627 = vpop.f32.mrb[0].mxu0
    %2628 = vdwg.mxu0
    %v2629 = vadd.f32 %v2581, %v2624
    %v2630 = vxor.u32 %v2580, 2147483648
    %v2631 = vmul.f32 %v2630, 1.442695
    %v2632 = vpow.pop %v2631
    %v2633 = vadd.f32 %v2632, 1.0
    %v2634 = vrcp.pop %v2633
    %v2635 = vmul.f32 1.0, %v2634
    %v2636 = vtanh.pop %v2580
    %v2637 = vmul.f32 %v2635, %v2488
    %2639 = vrot.lane.b32.xlu0 %v2636, 64
    %v2640 = vpop.permute.xlu0 %2639
    %v2642 = vmul.f32 %v2635, %v2640
    %2644 = vrot.lane.b32.xlu0 %v2642, 32
    %v2645 = vpop.permute.xlu0 %2644
    %v2647 = vadd.f32 %v2637, %v2645
    %v2648 = vtanh.pop %v2647
    %2650 = vrot.lane.b32.xlu0 %v2648, 64
    %v2651 = vpop.permute.xlu0 %2650
    %v2653 = vmul.f32 %v2635, %v2651
    %v2654 = vxor.u32 %v2629, 2147483648
    %v2655 = vmul.f32 %v2654, 1.442695
    %v2656 = vpow.pop %v2655
    %v2657 = vadd.f32 %v2656, 1.0
    %v2658 = vrcp.pop %v2657
    %v2659 = vmul.f32 1.0, %v2658
    %v2660 = vtanh.pop %v2629
    %v2661 = vmul.f32 %v2659, %v2512
    %2663 = vrot.lane.b32.xlu0 %v2660, 64
    %v2664 = vpop.permute.xlu0 %2663
    %v2666 = vmul.f32 %v2659, %v2664
    %2668 = vrot.lane.b32.xlu0 %v2666, 32
    %v2669 = vpop.permute.xlu0 %2668
    %v2671 = vadd.f32 %v2661, %v2669
    %v2672 = vtanh.pop %v2671
    %2674 = vrot.lane.b32.xlu0 %v2672, 64
    %v2675 = vpop.permute.xlu0 %2674
    %v2677 = vmul.f32 %v2659, %v2675
    %2679 = vrot.lane.b32.xlu0 %v2653, 32
    %v2680 = vpop.permute.xlu0 %2679
    %s2682 = scalar_lea.vmem [#allocation4], 14
    %2683 = vst.msk [vmem:[%s2682] sm:$0x3] %vm1563, %v2680
    %2685 = vrot.lane.b32.xlu0 %v2677, 32
    %v2686 = vpop.permute.xlu0 %2685
    %2688 = vst.msk [vmem:[#allocation5] sm:$0x3] %vm1563, %v2686
    %v2689 = vld [vmem:[#allocation4] sm:$0x3]
    %v2690 = vld [vmem:[#allocation4 + $0x2] sm:$0x3]
    %v2691 = vld [vmem:[#allocation4 + $0x4] sm:$0x3]
    %v2692 = vld [vmem:[#allocation4 + $0x6] sm:$0x3]
    %v2693 = vld [vmem:[#allocation4 + $0x8] sm:$0x3]
    %v2694 = vld [vmem:[#allocation4 + $0xa] sm:$0x3]
    %v2695 = vld [vmem:[#allocation4 + $0xc] sm:$0x3]
    %v2696 = vld [vmem:[#allocation4 + $0xe] sm:$0x3]
    %v2697 = vcombine.low %v2689, %v2691
    %v2699 = vunpack.c.l.s4 1983009808
    %v2700 = vunpack.c.0.s8 %v2699
    %v2701 = vlaneseq
    %v2702 = vshrl.u32 %v2701, 7
    %v2703 = vsub.s32 %v2700, %v2702
    %v2704 = vrot.slane %v2697, %v2703
    %v2705 = vcombine.low %v2690, %v2692
    %v2707 = vunpack.c.l.s4 1983009808
    %v2708 = vunpack.c.0.s8 %v2707
    %v2709 = vlaneseq
    %v2710 = vshrl.u32 %v2709, 7
    %v2711 = vsub.s32 %v2708, %v2710
    %v2712 = vrot.slane %v2705, %v2711
    %v2713 = vcombine.low %v2693, %v2695
    %v2715 = vunpack.c.l.s4 1983009808
    %v2716 = vunpack.c.0.s8 %v2715
    %v2717 = vlaneseq
    %v2718 = vshrl.u32 %v2717, 7
    %v2719 = vsub.s32 %v2716, %v2718
    %v2720 = vrot.slane %v2713, %v2719
    %v2721 = vcombine.low %v2694, %v2696
    %v2723 = vunpack.c.l.s4 1983009808
    %v2724 = vunpack.c.0.s8 %v2723
    %v2725 = vlaneseq
    %v2726 = vshrl.u32 %v2725, 7
    %v2727 = vsub.s32 %v2724, %v2726
    %v2728 = vrot.slane %v2721, %v2727
    %v2729 = vcombine.low %v2704, %v2712
    %v2731 = vunpack.c.l.s4 1934713408
    %v2732 = vunpack.c.0.s8 %v2731
    %v2733 = vlaneseq
    %v2734 = vshrl.u32 %v2733, 7
    %v2735 = vsub.s32 %v2732, %v2734
    %v2736 = vrot.slane %v2729, %v2735
    %v2737 = vcombine.low %v2720, %v2728
    %v2739 = vunpack.c.l.s4 1934713408
    %v2740 = vunpack.c.0.s8 %v2739
    %v2741 = vlaneseq
    %v2742 = vshrl.u32 %v2741, 7
    %v2743 = vsub.s32 %v2740, %v2742
    %v2744 = vrot.slane %v2737, %v2743
    %v2745 = vcombine.low %v2736, %v2744
    %v2746 = vcombine.high %v2736, %v2744
    %v2747 = vpack.c.bf16 %v2745, %v2745
    %v2748 = vpack.c.bf16 %v2746, %v2746
    %v2749 = vld [vmem:[#allocation5] sm:$0x3]
    %v2750 = vld [vmem:[#allocation5 + $0x2] sm:$0x3]
    %v2751 = vld [vmem:[#allocation5 + $0x4] sm:$0x3]
    %v2752 = vld [vmem:[#allocation5 + $0x6] sm:$0x3]
    %v2753 = vld [vmem:[#allocation5 + $0x8] sm:$0x3]
    %v2754 = vld [vmem:[#allocation5 + $0xa] sm:$0x3]
    %v2755 = vld [vmem:[#allocation5 + $0xc] sm:$0x3]
    %v2756 = vld [vmem:[#allocation5 + $0xe] sm:$0x3]
    %v2757 = vcombine.low %v2749, %v2751
    %v2759 = vunpack.c.l.s4 1983009808
    %v2760 = vunpack.c.0.s8 %v2759
    %v2761 = vlaneseq
    %v2762 = vshrl.u32 %v2761, 7
    %v2763 = vsub.s32 %v2760, %v2762
    %v2764 = vrot.slane %v2757, %v2763
    %v2765 = vcombine.low %v2750, %v2752
    %v2767 = vunpack.c.l.s4 1983009808
    %v2768 = vunpack.c.0.s8 %v2767
    %v2769 = vlaneseq
    %v2770 = vshrl.u32 %v2769, 7
    %v2771 = vsub.s32 %v2768, %v2770
    %v2772 = vrot.slane %v2765, %v2771
    %v2773 = vcombine.low %v2753, %v2755
    %v2775 = vunpack.c.l.s4 1983009808
    %v2776 = vunpack.c.0.s8 %v2775
    %v2777 = vlaneseq
    %v2778 = vshrl.u32 %v2777, 7
    %v2779 = vsub.s32 %v2776, %v2778
    %v2780 = vrot.slane %v2773, %v2779
    %v2781 = vcombine.low %v2754, %v2756
    %v2783 = vunpack.c.l.s4 1983009808
    %v2784 = vunpack.c.0.s8 %v2783
    %v2785 = vlaneseq
    %v2786 = vshrl.u32 %v2785, 7
    %v2787 = vsub.s32 %v2784, %v2786
    %v2788 = vrot.slane %v2781, %v2787
    %v2789 = vcombine.low %v2764, %v2772
    %v2791 = vunpack.c.l.s4 1934713408
    %v2792 = vunpack.c.0.s8 %v2791
    %v2793 = vlaneseq
    %v2794 = vshrl.u32 %v2793, 7
    %v2795 = vsub.s32 %v2792, %v2794
    %v2796 = vrot.slane %v2789, %v2795
    %v2797 = vcombine.low %v2780, %v2788
    %v2799 = vunpack.c.l.s4 1934713408
    %v2800 = vunpack.c.0.s8 %v2799
    %v2801 = vlaneseq
    %v2802 = vshrl.u32 %v2801, 7
    %v2803 = vsub.s32 %v2800, %v2802
    %v2804 = vrot.slane %v2797, %v2803
    %v2805 = vcombine.low %v2796, %v2804
    %v2806 = vcombine.high %v2796, %v2804
    %v2807 = vpack.c.bf16 %v2805, %v2805
    %v2808 = vpack.c.bf16 %v2806, %v2806
    %2811 = vrot.lane.b32.xlu0 %v2807, 32
    %v2812 = vpop.permute.xlu0 %2811
    %2813 = vrot.lane.b32.xlu0 %v2808, 32
    %v2814 = vpop.permute.xlu0 %2813
    %v2817 = vsel %vm1399, %v2747, %v2812
    %v2820 = vsel %vm1399, %v2748, %v2814
    %v2821 = vld [vmem:[#allocation28] sm:$0xf]
    %v2822 = vld [vmem:[#allocation28 + $0x4] sm:$0xf]
    %v2823 = vld [vmem:[#allocation28 + $0x8] sm:$0xf]
    %v2824 = vld [vmem:[#allocation28 + $0xc] sm:$0xf]
    %v2825 = vld [vmem:[#allocation28 + $0x10] sm:$0xf]
    %v2826 = vld [vmem:[#allocation28 + $0x14] sm:$0xf]
    %v2827 = vld [vmem:[#allocation28 + $0x18] sm:$0xf]
    %v2828 = vld [vmem:[#allocation28 + $0x1c] sm:$0xf]
    %v2829 = vld [vmem:[#allocation29] sm:$0x1]
    %v2831 = vlaneseq
    %v2832 = vshrl.u32 %v2831, 7
    %v2833 = vsub.s32 0, %v2832
    %v2834 = vrot.slane %v2829, %v2833
    %v2838 = vunpack.c.l.b16 %v2817
    %v2839 = vunpack.c.l.b16 %v2820
    %v2840 = vpack.c.b16 %v2839, %v2838
    %v2849 = vunpack.c.l.b16 %v2821
    %v2850 = vunpack.c.l.b16 %v2822
    %v2851 = vunpack.c.l.b16 %v2823
    %v2852 = vunpack.c.l.b16 %v2824
    %v2853 = vunpack.c.l.b16 %v2825
    %v2854 = vunpack.c.l.b16 %v2826
    %v2855 = vunpack.c.l.b16 %v2827
    %v2856 = vunpack.c.l.b16 %v2828
    %v2857 = vpack.c.b16 %v2850, %v2849
    %v2858 = vpack.c.b16 %v2852, %v2851
    %v2859 = vpack.c.b16 %v2854, %v2853
    %v2860 = vpack.c.b16 %v2856, %v2855
    %vm2865 = vcmask 523264
    %v2867 = vsel %vm2865, %v2840, 0
    %2869 = vmatprep.subr.bf16.mxu0 0
    %2870 = vmatpush1.bf16.msra.mxu0 %v2857
    %2871 = vmatprep.subr.bf16.mxu0 0
    %2872 = vmatpush1.bf16.msra.mxu0 %v2858
    %2873 = vmatprep.subr.bf16.mxu0 0
    %2874 = vmatpush1.bf16.msra.mxu0 %v2859
    %2875 = vmatprep.subr.bf16.mxu0 0
    %2876 = vmatpush1.bf16.msra.mxu0 %v2860
    %2877 = vmatprep.subr.bf16.mxu0 0
    %2878 = vmatpush1.bf16.msra.mxu0 0
    %2879 = vmatprep.subr.bf16.mxu0 0
    %2880 = vmatpush1.bf16.msra.mxu0 0
    %2881 = vmatprep.subr.bf16.mxu0 0
    %2882 = vmatpush1.bf16.msra.mxu0 0
    %2883 = vmatprep.subr.bf16.mxu0 0
    %2884 = vmatpush1.bf16.msra.mxu0 0
    %2885 = vmatprep.subr.bf16.mxu0 0
    %2886 = vmatpush1.bf16.msra.mxu0 0
    %2887 = vmatprep.subr.bf16.mxu0 0
    %2888 = vmatpush1.bf16.msra.mxu0 0
    %2889 = vmatprep.subr.bf16.mxu0 0
    %2890 = vmatpush1.bf16.msra.mxu0 0
    %2891 = vmatprep.subr.bf16.mxu0 0
    %2892 = vmatpush1.bf16.msra.mxu0 0
    %2893 = vmatprep.subr.bf16.mxu0 0
    %2894 = vmatpush1.bf16.msra.mxu0 0
    %2895 = vmatprep.subr.bf16.mxu0 0
    %2896 = vmatpush1.bf16.msra.mxu0 0
    %2897 = vmatprep.subr.bf16.mxu0 0
    %2898 = vmatpush1.bf16.msra.mxu0 0
    %2899 = vmatprep.subr.bf16.mxu0 0
    %2900 = vmatpush1.bf16.msra.mxu0 0
    %2901 = vmatprep.mubr.bf16.mxu0 0
    %2902 = vmatmul.mubr.bf16.gmra.mrb[0].mxu0 %v2867
    %v2903 = vpop.f32.mrb[0].mxu0
    %v2904 = vadd.f32 %v2834, %v2903
    %v2905 = vpop.f32.mrb[0].mxu0
    %v2906 = vpop.f32.mrb[0].mxu0
    %v2907 = vadd.f32 %v2834, %v2906
    %v2908 = vpop.f32.mrb[0].mxu0
    %2909 = vdwg.mxu0
    %v2910 = vtanh.pop %v2904
    %v2911 = vtanh.pop %v2907
    %v2912 = vpack.c.bf16 %v2911, %v2910
    %v2913 = vld [vmem:[#allocation31] sm:$0xf]
    %v2914 = vld [vmem:[#allocation31 + $0x4] sm:$0xf]
    %v2915 = vld [vmem:[#allocation32] sm:$0x1]
    %v2917 = vlaneseq
    %v2918 = vshrl.u32 %v2917, 7
    %v2919 = vsub.s32 0, %v2918
    %v2920 = vrot.slane %v2915, %v2919
    %v2924 = vunpack.c.l.b16 %v2913
    %v2925 = vunpack.c.l.b16 %v2914
    %v2926 = vpack.c.b16 %v2925, %v2924
    %vm2928 = vcmask 130048
    %v2930 = vsel %vm2928, %v2912, 0
    %2932 = vmatprep.subr.bf16.mxu0 0
    %2933 = vmatpush1.bf16.msra.mxu0 %v2926
    %2934 = vmatprep.subr.bf16.mxu0 0
    %2935 = vmatpush1.bf16.msra.mxu0 0
    %2936 = vmatprep.subr.bf16.mxu0 0
    %2937 = vmatpush1.bf16.msra.mxu0 0
    %2938 = vmatprep.subr.bf16.mxu0 0
    %2939 = vmatpush1.bf16.msra.mxu0 0
    %2940 = vmatprep.subr.bf16.mxu0 0
    %2941 = vmatpush1.bf16.msra.mxu0 0
    %2942 = vmatprep.subr.bf16.mxu0 0
    %2943 = vmatpush1.bf16.msra.mxu0 0
    %2944 = vmatprep.subr.bf16.mxu0 0
    %2945 = vmatpush1.bf16.msra.mxu0 0
    %2946 = vmatprep.subr.bf16.mxu0 0
    %2947 = vmatpush1.bf16.msra.mxu0 0
    %2948 = vmatprep.subr.bf16.mxu0 0
    %2949 = vmatpush1.bf16.msra.mxu0 0
    %2950 = vmatprep.subr.bf16.mxu0 0
    %2951 = vmatpush1.bf16.msra.mxu0 0
    %2952 = vmatprep.subr.bf16.mxu0 0
    %2953 = vmatpush1.bf16.msra.mxu0 0
    %2954 = vmatprep.subr.bf16.mxu0 0
    %2955 = vmatpush1.bf16.msra.mxu0 0
    %2956 = vmatprep.subr.bf16.mxu0 0
    %2957 = vmatpush1.bf16.msra.mxu0 0
    %2958 = vmatprep.subr.bf16.mxu0 0
    %2959 = vmatpush1.bf16.msra.mxu0 0
    %2960 = vmatprep.subr.bf16.mxu0 0
    %2961 = vmatpush1.bf16.msra.mxu0 0
    %2962 = vmatprep.subr.bf16.mxu0 0
    %2963 = vmatpush1.bf16.msra.mxu0 0
    %2964 = vmatprep.mubr.bf16.mxu0 0
    %2965 = vmatmul.mubr.bf16.gmra.mrb[0].mxu0 %v2930
    %v2966 = vpop.f32.mrb[0].mxu0
    %v2967 = vadd.f32 %v2920, %v2966
    %v2968 = vpop.f32.mrb[0].mxu0
    %v2969 = vpop.f32.mrb[0].mxu0
    %v2970 = vadd.f32 %v2920, %v2969
    %v2971 = vpop.f32.mrb[0].mxu0
    %2972 = vdwg.mxu0
    %2973 = vxpose.xlu0.b32.start [1/16] %v2967, 128
    %2974 = vxpose.xlu0.b32.cont [2/16] 0.0, 128
    %2975 = vxpose.xlu0.b32.cont [3/16] 0.0, 128
    %2976 = vxpose.xlu0.b32.cont [4/16] 0.0, 128
    %2977 = vxpose.xlu0.b32.cont [5/16] 0.0, 128
    %2978 = vxpose.xlu0.b32.cont [6/16] 0.0, 128
    %2979 = vxpose.xlu0.b32.cont [7/16] 0.0, 128
    %2980 = vxpose.xlu0.b32.cont [8/16] 0.0, 128
    %2981 = vxpose.xlu0.b32.cont [9/16] 0.0, 128
    %2982 = vxpose.xlu0.b32.cont [10/16] 0.0, 128
    %2983 = vxpose.xlu0.b32.cont [11/16] 0.0, 128
    %2984 = vxpose.xlu0.b32.cont [12/16] 0.0, 128
    %2985 = vxpose.xlu0.b32.cont [13/16] 0.0, 128
    %2986 = vxpose.xlu0.b32.cont [14/16] 0.0, 128
    %2987 = vxpose.xlu0.b32.cont [15/16] 0.0, 128
    %2988 = vxpose.xlu0.b32.end [16/16] 0.0, 128
    %v2989 = vpop.trf.xlu0
    %v2990 = vpop.trf.xlu0
    %v2991 = vpop.trf.xlu0
    %v2992 = vpop.trf.xlu0
    %v2993 = vpop.trf.xlu0
    %v2994 = vpop.trf.xlu0
    %v2995 = vpop.trf.xlu0
    %v2996 = vpop.trf.xlu0
    %v2997 = vpop.trf.xlu0
    %v2998 = vpop.trf.xlu0
    %v2999 = vpop.trf.xlu0
    %v3000 = vpop.trf.xlu0
    %v3001 = vpop.trf.xlu0
    %v3002 = vpop.trf.xlu0
    %v3003 = vpop.trf.xlu0
    %v3004 = vpop.trf.xlu0
    %3005 = vxpose.xlu0.b32.start [1/16] %v2970, 128
    %3006 = vxpose.xlu0.b32.cont [2/16] 0.0, 128
    %3007 = vxpose.xlu0.b32.cont [3/16] 0.0, 128
    %3008 = vxpose.xlu0.b32.cont [4/16] 0.0, 128
    %3009 = vxpose.xlu0.b32.cont [5/16] 0.0, 128
    %3010 = vxpose.xlu0.b32.cont [6/16] 0.0, 128
    %3011 = vxpose.xlu0.b32.cont [7/16] 0.0, 128
    %3012 = vxpose.xlu0.b32.cont [8/16] 0.0, 128
    %3013 = vxpose.xlu0.b32.cont [9/16] 0.0, 128
    %3014 = vxpose.xlu0.b32.cont [10/16] 0.0, 128
    %3015 = vxpose.xlu0.b32.cont [11/16] 0.0, 128
    %3016 = vxpose.xlu0.b32.cont [12/16] 0.0, 128
    %3017 = vxpose.xlu0.b32.cont [13/16] 0.0, 128
    %3018 = vxpose.xlu0.b32.cont [14/16] 0.0, 128
    %3019 = vxpose.xlu0.b32.cont [15/16] 0.0, 128
    %3020 = vxpose.xlu0.b32.end [16/16] 0.0, 128
    %v3021 = vpop.trf.xlu0
    %v3022 = vpop.trf.xlu0
    %v3023 = vpop.trf.xlu0
    %v3024 = vpop.trf.xlu0
    %v3025 = vpop.trf.xlu0
    %v3026 = vpop.trf.xlu0
    %v3027 = vpop.trf.xlu0
    %v3028 = vpop.trf.xlu0
    %v3029 = vpop.trf.xlu0
    %v3030 = vpop.trf.xlu0
    %v3031 = vpop.trf.xlu0
    %v3032 = vpop.trf.xlu0
    %v3033 = vpop.trf.xlu0
    %v3034 = vpop.trf.xlu0
    %v3035 = vpop.trf.xlu0
    %v3036 = vpop.trf.xlu0
    %vm3037 = vcmask 60416
    %v3038 = vsel %vm3037, %v2989, -inf
    %3039 = vmax.xlane.f32.xlu0 %v3038
    %v3040 = vpop.xlane.xlu0 %3039
    %v3041 = vsel %vm3037, %v3021, -inf
    %3042 = vmax.xlane.f32.xlu0 %v3041
    %v3043 = vpop.xlane.xlu0 %3042
    %v3044 = vsub.f32 %v2989, %v3040
    %v3045 = vsub.f32 %v3021, %v3043
    %v3046 = vmul.f32 %v3044, 1.442695
    %v3047 = vpow.pop %v3046
    %v3048 = vmul.f32 %v3045, 1.442695
    %v3049 = vpow.pop %v3048
    %v3050 = vsel %vm3037, %v3047, 0.0
    %3051 = vadd.xlane.f32.xlu0 %v3050
    %v3052 = vpop.xlane.xlu0 %3051
    %v3053 = vsel %vm3037, %v3049, 0.0
    %3054 = vadd.xlane.f32.xlu0 %v3053
    %v3055 = vpop.xlane.xlu0 %3054
    %v3056 = vrcp.pop %v3052
    %v3057 = vrcp.pop %v3055
    %v3058 = vmul.f32 %v3047, %v3056
    %v3059 = vmul.f32 %v3049, %v3057
    %v3060 = vpack.c.bf16 %v3058, %v3058
    %v3061 = vpack.c.bf16 %v3059, %v3059
    %vm3062 = vcmask 64512
    %v3064 = vsel %vm3062, %v3060, 0
    %vm3066 = vcmask 1043456
    %v3067 = vsel %vm3066, %v2817, 0
    %3069 = vmatprep.subr.bf16.mxu0 0
    %3070 = vmatpush1.bf16.msra.mxu0 %v3067
    %3071 = vmatprep.subr.bf16.mxu0 0
    %3072 = vmatpush1.bf16.msra.mxu0 0
    %3073 = vmatprep.subr.bf16.mxu0 0
    %3074 = vmatpush1.bf16.msra.mxu0 0
    %3075 = vmatprep.subr.bf16.mxu0 0
    %3076 = vmatpush1.bf16.msra.mxu0 0
    %3077 = vmatprep.subr.bf16.mxu0 0
    %3078 = vmatpush1.bf16.msra.mxu0 0
    %3079 = vmatprep.subr.bf16.mxu0 0
    %3080 = vmatpush1.bf16.msra.mxu0 0
    %3081 = vmatprep.subr.bf16.mxu0 0
    %3082 = vmatpush1.bf16.msra.mxu0 0
    %3083 = vmatprep.subr.bf16.mxu0 0
    %3084 = vmatpush1.bf16.msra.mxu0 0
    %3085 = vmatprep.subr.bf16.mxu0 0
    %3086 = vmatpush1.bf16.msra.mxu0 0
    %3087 = vmatprep.subr.bf16.mxu0 0
    %3088 = vmatpush1.bf16.msra.mxu0 0
    %3089 = vmatprep.subr.bf16.mxu0 0
    %3090 = vmatpush1.bf16.msra.mxu0 0
    %3091 = vmatprep.subr.bf16.mxu0 0
    %3092 = vmatpush1.bf16.msra.mxu0 0
    %3093 = vmatprep.subr.bf16.mxu0 0
    %3094 = vmatpush1.bf16.msra.mxu0 0
    %3095 = vmatprep.subr.bf16.mxu0 0
    %3096 = vmatpush1.bf16.msra.mxu0 0
    %3097 = vmatprep.subr.bf16.mxu0 0
    %3098 = vmatpush1.bf16.msra.mxu0 0
    %3099 = vmatprep.subr.bf16.mxu0 0
    %3100 = vmatpush1.bf16.msra.mxu0 0
    %3101 = vmatprep.mubr.bf16.mxu0 0
    %3102 = vmatmul.mubr.bf16.gmra.mrb[0].mxu0 %v3064
    %v3103 = vpop.f32.mrb[0].mxu0
    %v3104 = vadd.f32 0.0, %v3103
    %v3105 = vpop.f32.mrb[0].mxu0
    %v3106 = vpop.f32.mrb[0].mxu0
    %v3107 = vpop.f32.mrb[0].mxu0
    %3108 = vdwg.mxu0
    %v3110 = vsel %vm3062, %v3061, 0
    %v3112 = vsel %vm3066, %v2820, 0
    %3114 = vmatprep.subr.bf16.mxu0 0
    %3115 = vmatpush1.bf16.msra.mxu0 %v3112
    %3116 = vmatprep.subr.bf16.mxu0 0
    %3117 = vmatpush1.bf16.msra.mxu0 0
    %3118 = vmatprep.subr.bf16.mxu0 0
    %3119 = vmatpush1.bf16.msra.mxu0 0
    %3120 = vmatprep.subr.bf16.mxu0 0
    %3121 = vmatpush1.bf16.msra.mxu0 0
    %3122 = vmatprep.subr.bf16.mxu0 0
    %3123 = vmatpush1.bf16.msra.mxu0 0
    %3124 = vmatprep.subr.bf16.mxu0 0
    %3125 = vmatpush1.bf16.msra.mxu0 0
    %3126 = vmatprep.subr.bf16.mxu0 0
    %3127 = vmatpush1.bf16.msra.mxu0 0
    %3128 = vmatprep.subr.bf16.mxu0 0
    %3129 = vmatpush1.bf16.msra.mxu0 0
    %3130 = vmatprep.subr.bf16.mxu0 0
    %3131 = vmatpush1.bf16.msra.mxu0 0
    %3132 = vmatprep.subr.bf16.mxu0 0
    %3133 = vmatpush1.bf16.msra.mxu0 0
    %3134 = vmatprep.subr.bf16.mxu0 0
    %3135 = vmatpush1.bf16.msra.mxu0 0
    %3136 = vmatprep.subr.bf16.mxu0 0
    %3137 = vmatpush1.bf16.msra.mxu0 0
    %3138 = vmatprep.subr.bf16.mxu0 0
    %3139 = vmatpush1.bf16.msra.mxu0 0
    %3140 = vmatprep.subr.bf16.mxu0 0
    %3141 = vmatpush1.bf16.msra.mxu0 0
    %3142 = vmatprep.subr.bf16.mxu0 0
    %3143 = vmatpush1.bf16.msra.mxu0 0
    %3144 = vmatprep.subr.bf16.mxu0 0
    %3145 = vmatpush1.bf16.msra.mxu0 0
    %3146 = vmatprep.mubr.bf16.mxu0 0
    %3147 = vmatmul.mubr.bf16.gmra.mrb[0].mxu0 %v3110
    %v3148 = vpop.f32.mrb[0].mxu0
    %v3149 = vadd.f32 0.0, %v3148
    %v3150 = vpop.f32.mrb[0].mxu0
    %v3151 = vpop.f32.mrb[0].mxu0
    %v3152 = vpop.f32.mrb[0].mxu0
    %3153 = vdwg.mxu0
    %v3154 = vld [vmem:[#allocation26] sm:$0xf]
    %v3155 = vld [vmem:[#allocation26 + $0x4] sm:$0xf]
    %v3156 = vld [vmem:[#allocation26 + $0x8] sm:$0xf]
    %v3157 = vld [vmem:[#allocation26 + $0xc] sm:$0xf]
    %v3160 = vunpack.c.l.b16 %v2747
    %v3161 = vunpack.c.l.b16 %v2748
    %v3162 = vpack.c.b16 %v3161, %v3160
    %v3167 = vunpack.c.l.b16 %v3154
    %v3168 = vunpack.c.l.b16 %v3155
    %v3169 = vunpack.c.l.b16 %v3156
    %v3170 = vunpack.c.l.b16 %v3157
    %v3171 = vpack.c.b16 %v3168, %v3167
    %v3172 = vpack.c.b16 %v3170, %v3169
    %v3176 = vsel %vm1399, %v3162, 0
    %3178 = vmatprep.subr.bf16.mxu0 0
    %3179 = vmatpush1.bf16.msra.mxu0 %v3171
    %3180 = vmatprep.subr.bf16.mxu0 0
    %3181 = vmatpush1.bf16.msra.mxu0 %v3172
    %3182 = vmatprep.subr.bf16.mxu0 0
    %3183 = vmatpush1.bf16.msra.mxu0 0
    %3184 = vmatprep.subr.bf16.mxu0 0
    %3185 = vmatpush1.bf16.msra.mxu0 0
    %3186 = vmatprep.subr.bf16.mxu0 0
    %3187 = vmatpush1.bf16.msra.mxu0 0
    %3188 = vmatprep.subr.bf16.mxu0 0
    %3189 = vmatpush1.bf16.msra.mxu0 0
    %3190 = vmatprep.subr.bf16.mxu0 0
    %3191 = vmatpush1.bf16.msra.mxu0 0
    %3192 = vmatprep.subr.bf16.mxu0 0
    %3193 = vmatpush1.bf16.msra.mxu0 0
    %3194 = vmatprep.subr.bf16.mxu0 0
    %3195 = vmatpush1.bf16.msra.mxu0 0
    %3196 = vmatprep.subr.bf16.mxu0 0
    %3197 = vmatpush1.bf16.msra.mxu0 0
    %3198 = vmatprep.subr.bf16.mxu0 0
    %3199 = vmatpush1.bf16.msra.mxu0 0
    %3200 = vmatprep.subr.bf16.mxu0 0
    %3201 = vmatpush1.bf16.msra.mxu0 0
    %3202 = vmatprep.subr.bf16.mxu0 0
    %3203 = vmatpush1.bf16.msra.mxu0 0
    %3204 = vmatprep.subr.bf16.mxu0 0
    %3205 = vmatpush1.bf16.msra.mxu0 0
    %3206 = vmatprep.subr.bf16.mxu0 0
    %3207 = vmatpush1.bf16.msra.mxu0 0
    %3208 = vmatprep.subr.bf16.mxu0 0
    %3209 = vmatpush1.bf16.msra.mxu0 0
    %3210 = vmatprep.mubr.bf16.mxu0 0
    %3211 = vmatmul.mubr.bf16.gmra.mrb[0].mxu0 %v3176
    %v3212 = vpop.f32.mrb[0].mxu0
    %v3213 = vadd.f32 0.0, %v3212
    %v3214 = vpop.f32.mrb[0].mxu0
    %v3215 = vpop.f32.mrb[0].mxu0
    %v3216 = vadd.f32 0.0, %v3215
    %v3217 = vpop.f32.mrb[0].mxu0
    %3218 = vdwg.mxu0
    %v3219 = vunpack.c.l.b16 %v2807
    %v3220 = vunpack.c.l.b16 %v2808
    %v3221 = vpack.c.b16 %v3220, %v3219
    %v3223 = vsel %vm1399, %v3221, 0
    %3225 = vmatprep.subr.bf16.mxu0 0
    %3226 = vmatpush1.bf16.msra.mxu0 %v3171
    %3227 = vmatprep.subr.bf16.mxu0 0
    %3228 = vmatpush1.bf16.msra.mxu0 %v3172
    %3229 = vmatprep.subr.bf16.mxu0 0
    %3230 = vmatpush1.bf16.msra.mxu0 0
    %3231 = vmatprep.subr.bf16.mxu0 0
    %3232 = vmatpush1.bf16.msra.mxu0 0
    %3233 = vmatprep.subr.bf16.mxu0 0
    %3234 = vmatpush1.bf16.msra.mxu0 0
    %3235 = vmatprep.subr.bf16.mxu0 0
    %3236 = vmatpush1.bf16.msra.mxu0 0
    %3237 = vmatprep.subr.bf16.mxu0 0
    %3238 = vmatpush1.bf16.msra.mxu0 0
    %3239 = vmatprep.subr.bf16.mxu0 0
    %3240 = vmatpush1.bf16.msra.mxu0 0
    %3241 = vmatprep.subr.bf16.mxu0 0
    %3242 = vmatpush1.bf16.msra.mxu0 0
    %3243 = vmatprep.subr.bf16.mxu0 0
    %3244 = vmatpush1.bf16.msra.mxu0 0
    %3245 = vmatprep.subr.bf16.mxu0 0
    %3246 = vmatpush1.bf16.msra.mxu0 0
    %3247 = vmatprep.subr.bf16.mxu0 0
    %3248 = vmatpush1.bf16.msra.mxu0 0
    %3249 = vmatprep.subr.bf16.mxu0 0
    %3250 = vmatpush1.bf16.msra.mxu0 0
    %3251 = vmatprep.subr.bf16.mxu0 0
    %3252 = vmatpush1.bf16.msra.mxu0 0
    %3253 = vmatprep.subr.bf16.mxu0 0
    %3254 = vmatpush1.bf16.msra.mxu0 0
    %3255 = vmatprep.subr.bf16.mxu0 0
    %3256 = vmatpush1.bf16.msra.mxu0 0
    %3257 = vmatprep.mubr.bf16.mxu0 0
    %3258 = vmatmul.mubr.bf16.gmra.mrb[0].mxu0 %v3223
    %v3259 = vpop.f32.mrb[0].mxu0
    %v3260 = vadd.f32 0.0, %v3259
    %v3261 = vpop.f32.mrb[0].mxu0
    %v3262 = vpop.f32.mrb[0].mxu0
    %v3263 = vadd.f32 0.0, %v3262
    %v3264 = vpop.f32.mrb[0].mxu0
    %3265 = vdwg.mxu0
    %3266 = vxpose.xlu0.b32.start [1/16] %v3213, 128
    %3267 = vxpose.xlu0.b32.cont [2/16] 0.0, 128
    %3268 = vxpose.xlu0.b32.cont [3/16] 0.0, 128
    %3269 = vxpose.xlu0.b32.cont [4/16] 0.0, 128
    %3270 = vxpose.xlu0.b32.cont [5/16] 0.0, 128
    %3271 = vxpose.xlu0.b32.cont [6/16] 0.0, 128
    %3272 = vxpose.xlu0.b32.cont [7/16] 0.0, 128
    %3273 = vxpose.xlu0.b32.cont [8/16] 0.0, 128
    %3274 = vxpose.xlu0.b32.cont [9/16] 0.0, 128
    %3275 = vxpose.xlu0.b32.cont [10/16] 0.0, 128
    %3276 = vxpose.xlu0.b32.cont [11/16] 0.0, 128
    %3277 = vxpose.xlu0.b32.cont [12/16] 0.0, 128
    %3278 = vxpose.xlu0.b32.cont [13/16] 0.0, 128
    %3279 = vxpose.xlu0.b32.cont [14/16] 0.0, 128
    %3280 = vxpose.xlu0.b32.cont [15/16] 0.0, 128
    %3281 = vxpose.xlu0.b32.end [16/16] 0.0, 128
    %v3282 = vpop.trf.xlu0
    %v3283 = vpop.trf.xlu0
    %v3284 = vpop.trf.xlu0
    %v3285 = vpop.trf.xlu0
    %v3286 = vpop.trf.xlu0
    %v3287 = vpop.trf.xlu0
    %v3288 = vpop.trf.xlu0
    %v3289 = vpop.trf.xlu0
    %v3290 = vpop.trf.xlu0
    %v3291 = vpop.trf.xlu0
    %v3292 = vpop.trf.xlu0
    %v3293 = vpop.trf.xlu0
    %v3294 = vpop.trf.xlu0
    %v3295 = vpop.trf.xlu0
    %v3296 = vpop.trf.xlu0
    %v3297 = vpop.trf.xlu0
    %3298 = vxpose.xlu0.b32.start [1/16] %v3216, 128
    %3299 = vxpose.xlu0.b32.cont [2/16] 0.0, 128
    %3300 = vxpose.xlu0.b32.cont [3/16] 0.0, 128
    %3301 = vxpose.xlu0.b32.cont [4/16] 0.0, 128
    %3302 = vxpose.xlu0.b32.cont [5/16] 0.0, 128
    %3303 = vxpose.xlu0.b32.cont [6/16] 0.0, 128
    %3304 = vxpose.xlu0.b32.cont [7/16] 0.0, 128
    %3305 = vxpose.xlu0.b32.cont [8/16] 0.0, 128
    %3306 = vxpose.xlu0.b32.cont [9/16] 0.0, 128
    %3307 = vxpose.xlu0.b32.cont [10/16] 0.0, 128
    %3308 = vxpose.xlu0.b32.cont [11/16] 0.0, 128
    %3309 = vxpose.xlu0.b32.cont [12/16] 0.0, 128
    %3310 = vxpose.xlu0.b32.cont [13/16] 0.0, 128
    %3311 = vxpose.xlu0.b32.cont [14/16] 0.0, 128
    %3312 = vxpose.xlu0.b32.cont [15/16] 0.0, 128
    %3313 = vxpose.xlu0.b32.end [16/16] 0.0, 128
    %v3314 = vpop.trf.xlu0
    %v3315 = vpop.trf.xlu0
    %v3316 = vpop.trf.xlu0
    %v3317 = vpop.trf.xlu0
    %v3318 = vpop.trf.xlu0
    %v3319 = vpop.trf.xlu0
    %v3320 = vpop.trf.xlu0
    %v3321 = vpop.trf.xlu0
    %v3322 = vpop.trf.xlu0
    %v3323 = vpop.trf.xlu0
    %v3324 = vpop.trf.xlu0
    %v3325 = vpop.trf.xlu0
    %v3326 = vpop.trf.xlu0
    %v3327 = vpop.trf.xlu0
    %v3328 = vpop.trf.xlu0
    %v3329 = vpop.trf.xlu0
    %3330 = vxpose.xlu0.b32.start [1/16] %v3260, 128
    %3331 = vxpose.xlu0.b32.cont [2/16] 0.0, 128
    %3332 = vxpose.xlu0.b32.cont [3/16] 0.0, 128
    %3333 = vxpose.xlu0.b32.cont [4/16] 0.0, 128
    %3334 = vxpose.xlu0.b32.cont [5/16] 0.0, 128
    %3335 = vxpose.xlu0.b32.cont [6/16] 0.0, 128
    %3336 = vxpose.xlu0.b32.cont [7/16] 0.0, 128
    %3337 = vxpose.xlu0.b32.cont [8/16] 0.0, 128
    %3338 = vxpose.xlu0.b32.cont [9/16] 0.0, 128
    %3339 = vxpose.xlu0.b32.cont [10/16] 0.0, 128
    %3340 = vxpose.xlu0.b32.cont [11/16] 0.0, 128
    %3341 = vxpose.xlu0.b32.cont [12/16] 0.0, 128
    %3342 = vxpose.xlu0.b32.cont [13/16] 0.0, 128
    %3343 = vxpose.xlu0.b32.cont [14/16] 0.0, 128
    %3344 = vxpose.xlu0.b32.cont [15/16] 0.0, 128
    %3345 = vxpose.xlu0.b32.end [16/16] 0.0, 128
    %v3346 = vpop.trf.xlu0
    %v3347 = vpop.trf.xlu0
    %v3348 = vpop.trf.xlu0
    %v3349 = vpop.trf.xlu0
    %v3350 = vpop.trf.xlu0
    %v3351 = vpop.trf.xlu0
    %v3352 = vpop.trf.xlu0
    %v3353 = vpop.trf.xlu0
    %v3354 = vpop.trf.xlu0
    %v3355 = vpop.trf.xlu0
    %v3356 = vpop.trf.xlu0
    %v3357 = vpop.trf.xlu0
    %v3358 = vpop.trf.xlu0
    %v3359 = vpop.trf.xlu0
    %v3360 = vpop.trf.xlu0
    %v3361 = vpop.trf.xlu0
    %3362 = vxpose.xlu0.b32.start [1/16] %v3263, 128
    %3363 = vxpose.xlu0.b32.cont [2/16] 0.0, 128
    %3364 = vxpose.xlu0.b32.cont [3/16] 0.0, 128
    %3365 = vxpose.xlu0.b32.cont [4/16] 0.0, 128
    %3366 = vxpose.xlu0.b32.cont [5/16] 0.0, 128
    %3367 = vxpose.xlu0.b32.cont [6/16] 0.0, 128
    %3368 = vxpose.xlu0.b32.cont [7/16] 0.0, 128
    %3369 = vxpose.xlu0.b32.cont [8/16] 0.0, 128
    %3370 = vxpose.xlu0.b32.cont [9/16] 0.0, 128
    %3371 = vxpose.xlu0.b32.cont [10/16] 0.0, 128
    %3372 = vxpose.xlu0.b32.cont [11/16] 0.0, 128
    %3373 = vxpose.xlu0.b32.cont [12/16] 0.0, 128
    %3374 = vxpose.xlu0.b32.cont [13/16] 0.0, 128
    %3375 = vxpose.xlu0.b32.cont [14/16] 0.0, 128
    %3376 = vxpose.xlu0.b32.cont [15/16] 0.0, 128
    %3377 = vxpose.xlu0.b32.end [16/16] 0.0, 128
    %v3378 = vpop.trf.xlu0
    %v3379 = vpop.trf.xlu0
    %v3380 = vpop.trf.xlu0
    %v3381 = vpop.trf.xlu0
    %v3382 = vpop.trf.xlu0
    %v3383 = vpop.trf.xlu0
    %v3384 = vpop.trf.xlu0
    %v3385 = vpop.trf.xlu0
    %v3386 = vpop.trf.xlu0
    %v3387 = vpop.trf.xlu0
    %v3388 = vpop.trf.xlu0
    %v3389 = vpop.trf.xlu0
    %v3390 = vpop.trf.xlu0
    %v3391 = vpop.trf.xlu0
    %v3392 = vpop.trf.xlu0
    %v3393 = vpop.trf.xlu0
    %v3394 = vpack.c.bf16 %v3282, %v3282
    %v3395 = vpack.c.bf16 %v3314, %v3314
    %v3397 = vsel %vm3062, %v3394, 0
    %v3399 = vsel %vm3066, %v2747, 0
    %3401 = vmatprep.subr.bf16.mxu0 0
    %3402 = vmatpush1.bf16.msra.mxu0 %v3399
    %3403 = vmatprep.subr.bf16.mxu0 0
    %3404 = vmatpush1.bf16.msra.mxu0 0
    %3405 = vmatprep.subr.bf16.mxu0 0
    %3406 = vmatpush1.bf16.msra.mxu0 0
    %3407 = vmatprep.subr.bf16.mxu0 0
    %3408 = vmatpush1.bf16.msra.mxu0 0
    %3409 = vmatprep.subr.bf16.mxu0 0
    %3410 = vmatpush1.bf16.msra.mxu0 0
    %3411 = vmatprep.subr.bf16.mxu0 0
    %3412 = vmatpush1.bf16.msra.mxu0 0
    %3413 = vmatprep.subr.bf16.mxu0 0
    %3414 = vmatpush1.bf16.msra.mxu0 0
    %3415 = vmatprep.subr.bf16.mxu0 0
    %3416 = vmatpush1.bf16.msra.mxu0 0
    %3417 = vmatprep.subr.bf16.mxu0 0
    %3418 = vmatpush1.bf16.msra.mxu0 0
    %3419 = vmatprep.subr.bf16.mxu0 0
    %3420 = vmatpush1.bf16.msra.mxu0 0
    %3421 = vmatprep.subr.bf16.mxu0 0
    %3422 = vmatpush1.bf16.msra.mxu0 0
    %3423 = vmatprep.subr.bf16.mxu0 0
    %3424 = vmatpush1.bf16.msra.mxu0 0
    %3425 = vmatprep.subr.bf16.mxu0 0
    %3426 = vmatpush1.bf16.msra.mxu0 0
    %3427 = vmatprep.subr.bf16.mxu0 0
    %3428 = vmatpush1.bf16.msra.mxu0 0
    %3429 = vmatprep.subr.bf16.mxu0 0
    %3430 = vmatpush1.bf16.msra.mxu0 0
    %3431 = vmatprep.subr.bf16.mxu0 0
    %3432 = vmatpush1.bf16.msra.mxu0 0
    %3433 = vmatprep.mubr.bf16.mxu0 0
    %3434 = vmatmul.mubr.bf16.gmra.mrb[0].mxu0 %v3397
    %v3435 = vpop.f32.mrb[0].mxu0
    %v3436 = vadd.f32 0.0, %v3435
    %v3437 = vpop.f32.mrb[0].mxu0
    %v3438 = vpop.f32.mrb[0].mxu0
    %v3439 = vpop.f32.mrb[0].mxu0
    %3440 = vdwg.mxu0
    %v3442 = vsel %vm3062, %v3395, 0
    %v3444 = vsel %vm3066, %v2748, 0
    %3446 = vmatprep.subr.bf16.mxu0 0
    %3447 = vmatpush1.bf16.msra.mxu0 %v3444
    %3448 = vmatprep.subr.bf16.mxu0 0
    %3449 = vmatpush1.bf16.msra.mxu0 0
    %3450 = vmatprep.subr.bf16.mxu0 0
    %3451 = vmatpush1.bf16.msra.mxu0 0
    %3452 = vmatprep.subr.bf16.mxu0 0
    %3453 = vmatpush1.bf16.msra.mxu0 0
    %3454 = vmatprep.subr.bf16.mxu0 0
    %3455 = vmatpush1.bf16.msra.mxu0 0
    %3456 = vmatprep.subr.bf16.mxu0 0
    %3457 = vmatpush1.bf16.msra.mxu0 0
    %3458 = vmatprep.subr.bf16.mxu0 0
    %3459 = vmatpush1.bf16.msra.mxu0 0
    %3460 = vmatprep.subr.bf16.mxu0 0
    %3461 = vmatpush1.bf16.msra.mxu0 0
    %3462 = vmatprep.subr.bf16.mxu0 0
    %3463 = vmatpush1.bf16.msra.mxu0 0
    %3464 = vmatprep.subr.bf16.mxu0 0
    %3465 = vmatpush1.bf16.msra.mxu0 0
    %3466 = vmatprep.subr.bf16.mxu0 0
    %3467 = vmatpush1.bf16.msra.mxu0 0
    %3468 = vmatprep.subr.bf16.mxu0 0
    %3469 = vmatpush1.bf16.msra.mxu0 0
    %3470 = vmatprep.subr.bf16.mxu0 0
    %3471 = vmatpush1.bf16.msra.mxu0 0
    %3472 = vmatprep.subr.bf16.mxu0 0
    %3473 = vmatpush1.bf16.msra.mxu0 0
    %3474 = vmatprep.subr.bf16.mxu0 0
    %3475 = vmatpush1.bf16.msra.mxu0 0
    %3476 = vmatprep.subr.bf16.mxu0 0
    %3477 = vmatpush1.bf16.msra.mxu0 0
    %3478 = vmatprep.mubr.bf16.mxu0 0
    %3479 = vmatmul.mubr.bf16.gmra.mrb[0].mxu0 %v3442
    %v3480 = vpop.f32.mrb[0].mxu0
    %v3481 = vadd.f32 0.0, %v3480
    %v3482 = vpop.f32.mrb[0].mxu0
    %v3483 = vpop.f32.mrb[0].mxu0
    %v3484 = vpop.f32.mrb[0].mxu0
    %3485 = vdwg.mxu0
    %v3486 = vpack.c.bf16 %v3346, %v3346
    %v3487 = vpack.c.bf16 %v3378, %v3378
    %v3489 = vsel %vm3062, %v3486, 0
    %v3492 = vsel %vm3066, %v2807, 0
    %3494 = vmatprep.subr.bf16.mxu0 0
    %3495 = vmatpush1.bf16.msra.mxu0 %v3492
    %3496 = vmatprep.subr.bf16.mxu0 0
    %3497 = vmatpush1.bf16.msra.mxu0 0
    %3498 = vmatprep.subr.bf16.mxu0 0
    %3499 = vmatpush1.bf16.msra.mxu0 0
    %3500 = vmatprep.subr.bf16.mxu0 0
    %3501 = vmatpush1.bf16.msra.mxu0 0
    %3502 = vmatprep.subr.bf16.mxu0 0
    %3503 = vmatpush1.bf16.msra.mxu0 0
    %3504 = vmatprep.subr.bf16.mxu0 0
    %3505 = vmatpush1.bf16.msra.mxu0 0
    %3506 = vmatprep.subr.bf16.mxu0 0
    %3507 = vmatpush1.bf16.msra.mxu0 0
    %3508 = vmatprep.subr.bf16.mxu0 0
    %3509 = vmatpush1.bf16.msra.mxu0 0
    %3510 = vmatprep.subr.bf16.mxu0 0
    %3511 = vmatpush1.bf16.msra.mxu0 0
    %3512 = vmatprep.subr.bf16.mxu0 0
    %3513 = vmatpush1.bf16.msra.mxu0 0
    %3514 = vmatprep.subr.bf16.mxu0 0
    %3515 = vmatpush1.bf16.msra.mxu0 0
    %3516 = vmatprep.subr.bf16.mxu0 0
    %3517 = vmatpush1.bf16.msra.mxu0 0
    %3518 = vmatprep.subr.bf16.mxu0 0
    %3519 = vmatpush1.bf16.msra.mxu0 0
    %3520 = vmatprep.subr.bf16.mxu0 0
    %3521 = vmatpush1.bf16.msra.mxu0 0
    %3522 = vmatprep.subr.bf16.mxu0 0
    %3523 = vmatpush1.bf16.msra.mxu0 0
    %3524 = vmatprep.subr.bf16.mxu0 0
    %3525 = vmatpush1.bf16.msra.mxu0 0
    %3526 = vmatprep.mubr.bf16.mxu0 0
    %3527 = vmatmul.mubr.bf16.gmra.mrb[0].mxu0 %v3489
    %v3528 = vpop.f32.mrb[0].mxu0
    %v3529 = vadd.f32 0.0, %v3528
    %v3530 = vpop.f32.mrb[0].mxu0
    %v3531 = vpop.f32.mrb[0].mxu0
    %v3532 = vpop.f32.mrb[0].mxu0
    %3533 = vdwg.mxu0
    %v3535 = vsel %vm3062, %v3487, 0
    %v3538 = vsel %vm3066, %v2808, 0
    %3540 = vmatprep.subr.bf16.mxu0 0
    %3541 = vmatpush1.bf16.msra.mxu0 %v3538
    %3542 = vmatprep.subr.bf16.mxu0 0
    %3543 = vmatpush1.bf16.msra.mxu0 0
    %3544 = vmatprep.subr.bf16.mxu0 0
    %3545 = vmatpush1.bf16.msra.mxu0 0
    %3546 = vmatprep.subr.bf16.mxu0 0
    %3547 = vmatpush1.bf16.msra.mxu0 0
    %3548 = vmatprep.subr.bf16.mxu0 0
    %3549 = vmatpush1.bf16.msra.mxu0 0
    %3550 = vmatprep.subr.bf16.mxu0 0
    %3551 = vmatpush1.bf16.msra.mxu0 0
    %3552 = vmatprep.subr.bf16.mxu0 0
    %3553 = vmatpush1.bf16.msra.mxu0 0
    %3554 = vmatprep.subr.bf16.mxu0 0
    %3555 = vmatpush1.bf16.msra.mxu0 0
    %3556 = vmatprep.subr.bf16.mxu0 0
    %3557 = vmatpush1.bf16.msra.mxu0 0
    %3558 = vmatprep.subr.bf16.mxu0 0
    %3559 = vmatpush1.bf16.msra.mxu0 0
    %3560 = vmatprep.subr.bf16.mxu0 0
    %3561 = vmatpush1.bf16.msra.mxu0 0
    %3562 = vmatprep.subr.bf16.mxu0 0
    %3563 = vmatpush1.bf16.msra.mxu0 0
    %3564 = vmatprep.subr.bf16.mxu0 0
    %3565 = vmatpush1.bf16.msra.mxu0 0
    %3566 = vmatprep.subr.bf16.mxu0 0
    %3567 = vmatpush1.bf16.msra.mxu0 0
    %3568 = vmatprep.subr.bf16.mxu0 0
    %3569 = vmatpush1.bf16.msra.mxu0 0
    %3570 = vmatprep.subr.bf16.mxu0 0
    %3571 = vmatpush1.bf16.msra.mxu0 0
    %3572 = vmatprep.mubr.bf16.mxu0 0
    %3573 = vmatmul.mubr.bf16.gmra.mrb[0].mxu0 %v3535
    %v3574 = vpop.f32.mrb[0].mxu0
    %v3575 = vadd.f32 0.0, %v3574
    %v3576 = vpop.f32.mrb[0].mxu0
    %v3577 = vpop.f32.mrb[0].mxu0
    %v3578 = vpop.f32.mrb[0].mxu0
    %3579 = vdwg.mxu0
    %3582 = vrot.lane.b32.xlu0 %v3529, 32
    %v3583 = vpop.permute.xlu0 %3582
    %3584 = vrot.lane.b32.xlu0 %v3575, 32
    %v3585 = vpop.permute.xlu0 %3584
    %v3588 = vsel %vm1399, %v3436, %v3583
    %v3589 = vsel %vm1399, %v3481, %v3585
    %v3590 = vld [vmem:[#allocation34] sm:$0x1]
    %v3592 = vlaneseq
    %v3593 = vshrl.u32 %v3592, 7
    %v3594 = vsub.s32 0, %v3593
    %v3595 = vrot.slane %v3590, %v3594
    %v3597 = vmul.f32 %v3588, %v3595
    %v3598 = vmul.f32 %v3589, %v3595
    %vm3599 = vcmask 519168
    %v3600 = vsel %vm3599, %v3597, 0.0
    %3601 = vadd.xlane.f32.xlu0 %v3600
    %v3602 = vpop.xlane.xlu0 %3601
    %v3603 = vsel %vm3599, %v3598, 0.0
    %3604 = vadd.xlane.f32.xlu0 %v3603
    %v3605 = vpop.xlane.xlu0 %3604
    %v3606 = vld [vmem:[#allocation6] sm:$0x1]
    %v3608 = vlaneseq
    %v3609 = vshrl.u32 %v3608, 7
    %v3610 = vsub.s32 0, %v3609
    %v3611 = vrot.slane %v3606, %v3610
    %v3613 = vadd.f32 %v3602, %v3611
    %v3614 = vadd.f32 %v3605, %v3611
    %v3615 = vxor.u32 %v3613, 2147483648
    %v3616 = vxor.u32 %v3614, 2147483648
    %v3617 = vmul.f32 %v3615, 1.442695
    %v3618 = vpow.pop %v3617
    %v3619 = vmul.f32 %v3616, 1.442695
    %v3620 = vpow.pop %v3619
    %v3621 = vadd.f32 %v3618, 1.0
    %v3622 = vadd.f32 %v3620, 1.0
    %v3623 = vrcp.pop %v3621
    %v3624 = vmul.f32 1.0, %v3623
    %v3625 = vrcp.pop %v3622
    %v3626 = vmul.f32 1.0, %v3625
    %v3627 = vld [vmem:[#allocation35] sm:$0x1]
    %v3629 = vlaneseq
    %v3630 = vshrl.u32 %v3629, 7
    %v3631 = vsub.s32 0, %v3630
    %v3632 = vrot.slane %v3627, %v3631
    %v3634 = vmul.f32 %v3104, %v3632
    %v3635 = vmul.f32 %v3149, %v3632
    %v3636 = vsel %vm3599, %v3634, 0.0
    %3637 = vadd.xlane.f32.xlu0 %v3636
    %v3638 = vpop.xlane.xlu0 %3637
    %v3639 = vsel %vm3599, %v3635, 0.0
    %3640 = vadd.xlane.f32.xlu0 %v3639
    %v3641 = vpop.xlane.xlu0 %3640
    %v3642 = vld [vmem:[#allocation7] sm:$0x1]
    %v3644 = vlaneseq
    %v3645 = vshrl.u32 %v3644, 7
    %v3646 = vsub.s32 0, %v3645
    %v3647 = vrot.slane %v3642, %v3646
    %v3649 = vadd.f32 %v3638, %v3647
    %v3650 = vadd.f32 %v3641, %v3647
    %v3651 = vxor.u32 %v3649, 2147483648
    %v3652 = vxor.u32 %v3650, 2147483648
    %v3653 = vmul.f32 %v3651, 1.442695
    %v3654 = vpow.pop %v3653
    %v3655 = vmul.f32 %v3652, 1.442695
    %v3656 = vpow.pop %v3655
    %v3657 = vadd.f32 %v3654, 1.0
    %v3658 = vadd.f32 %v3656, 1.0
    %v3659 = vrcp.pop %v3657
    %v3660 = vmul.f32 1.0, %v3659
    %v3661 = vrcp.pop %v3658
    %v3662 = vmul.f32 1.0, %v3661
    %v3663 = vadd.f32 %v3624, %v3660
    %v3664 = vadd.f32 %v3626, %v3662
    %v3665 = vrcp.pop %v3663
    %v3666 = vrcp.pop %v3664
    %v3667 = vmul.f32 %v3624, %v3665
    %v3668 = vmul.f32 %v3626, %v3666
    %v3669 = vsub.f32 1.0, %v3667
    %v3670 = vsub.f32 1.0, %v3668
    %3672 = vset.pattern.permute.xlu0 0
    %3673 = vperm.xlu0 %3672, %v3667
    %v3674 = vpop.permute.xlu0 %3673
    %3677 = vset.pattern.permute.xlu0 0
    %3678 = vperm.xlu0 %3677, %v3668
    %v3679 = vpop.permute.xlu0 %3678
    %v3681 = vmul.f32 %v3674, %v3588
    %v3682 = vmul.f32 %v3679, %v3589
    %3684 = vset.pattern.permute.xlu0 0
    %3685 = vperm.xlu0 %3684, %v3669
    %v3686 = vpop.permute.xlu0 %3685
    %3689 = vset.pattern.permute.xlu0 0
    %3690 = vperm.xlu0 %3689, %v3670
    %v3691 = vpop.permute.xlu0 %3690
    %v3693 = vmul.f32 %v3686, %v3104
    %v3694 = vmul.f32 %v3691, %v3149
    %v3695 = vadd.f32 %v3681, %v3693
    %v3696 = vadd.f32 %v3682, %v3694
    %v3697 = vsel %vm3599, %v3695, 0.0
    %v3698 = vrot.slane %v3697, 4
    %v3699 = vadd.f32 %v3697, %v3698
    %v3700 = vrot.slane %v3699, 2
    %v3701 = vadd.f32 %v3699, %v3700
    %v3702 = vrot.slane %v3701, 1
    %v3703 = vadd.f32 %v3701, %v3702
    %v3704 = vsel %vm3599, %v3696, 0.0
    %v3705 = vrot.slane %v3704, 4
    %v3706 = vadd.f32 %v3704, %v3705
    %v3707 = vrot.slane %v3706, 2
    %v3708 = vadd.f32 %v3706, %v3707
    %v3709 = vrot.slane %v3708, 1
    %v3710 = vadd.f32 %v3708, %v3709
    %v3711 = vmul.f32 %v3703, 0.25
    %v3712 = vmul.f32 %v3710, 0.25
    %v3713 = vpack.c.bf16 %v3711, %v3711
    %v3714 = vpack.c.bf16 %v3712, %v3712
    %v3715 = vld [vmem:[#allocation37] sm:$0xf]
    %v3716 = vld [vmem:[#allocation37 + $0x4] sm:$0xf]
    %v3717 = vld [vmem:[#allocation37 + $0x8] sm:$0xf]
    %v3718 = vld [vmem:[#allocation37 + $0xc] sm:$0xf]
    %v3719 = vld [vmem:[#allocation37 + $0x10] sm:$0xf]
    %v3720 = vld [vmem:[#allocation37 + $0x14] sm:$0xf]
    %v3721 = vld [vmem:[#allocation37 + $0x18] sm:$0xf]
    %v3722 = vld [vmem:[#allocation37 + $0x1c] sm:$0xf]
    %v3723 = vld [vmem:[#allocation38] sm:$0x1]
    %v3725 = vlaneseq
    %v3726 = vshrl.u32 %v3725, 7
    %v3727 = vsub.s32 0, %v3726
    %v3728 = vrot.slane %v3723, %v3727
    %v3732 = vunpack.c.l.b16 %v3713
    %v3733 = vunpack.c.l.b16 %v3714
    %vm3734 = vcmask 1041409
    %v3735 = vsel %vm3734, %v3733, %v3732
    %v3736 = vpack.c.b16 %v3735, %v3735
    %v3745 = vunpack.c.l.b16 %v3715
    %v3746 = vunpack.c.l.b16 %v3716
    %v3747 = vunpack.c.l.b16 %v3717
    %v3748 = vunpack.c.l.b16 %v3718
    %v3749 = vunpack.c.l.b16 %v3719
    %v3750 = vunpack.c.l.b16 %v3720
    %v3751 = vunpack.c.l.b16 %v3721
    %v3752 = vunpack.c.l.b16 %v3722
    %v3753 = vpack.c.b16 %v3746, %v3745
    %v3754 = vpack.c.b16 %v3748, %v3747
    %v3755 = vpack.c.b16 %v3750, %v3749
    %v3756 = vpack.c.b16 %v3752, %v3751
    %v3762 = vsel %vm2865, %v3736, 0
    %3764 = vmatprep.subr.bf16.mxu0 0
    %3765 = vmatpush1.bf16.msra.mxu0 %v3753
    %3766 = vmatprep.subr.bf16.mxu0 0
    %3767 = vmatpush1.bf16.msra.mxu0 %v3754
    %3768 = vmatprep.subr.bf16.mxu0 0
    %3769 = vmatpush1.bf16.msra.mxu0 %v3755
    %3770 = vmatprep.subr.bf16.mxu0 0
    %3771 = vmatpush1.bf16.msra.mxu0 %v3756
    %3772 = vmatprep.subr.bf16.mxu0 0
    %3773 = vmatpush1.bf16.msra.mxu0 0
    %3774 = vmatprep.subr.bf16.mxu0 0
    %3775 = vmatpush1.bf16.msra.mxu0 0
    %3776 = vmatprep.subr.bf16.mxu0 0
    %3777 = vmatpush1.bf16.msra.mxu0 0
    %3778 = vmatprep.subr.bf16.mxu0 0
    %3779 = vmatpush1.bf16.msra.mxu0 0
    %3780 = vmatprep.subr.bf16.mxu0 0
    %3781 = vmatpush1.bf16.msra.mxu0 0
    %3782 = vmatprep.subr.bf16.mxu0 0
    %3783 = vmatpush1.bf16.msra.mxu0 0
    %3784 = vmatprep.subr.bf16.mxu0 0
    %3785 = vmatpush1.bf16.msra.mxu0 0
    %3786 = vmatprep.subr.bf16.mxu0 0
    %3787 = vmatpush1.bf16.msra.mxu0 0
    %3788 = vmatprep.subr.bf16.mxu0 0
    %3789 = vmatpush1.bf16.msra.mxu0 0
    %3790 = vmatprep.subr.bf16.mxu0 0
    %3791 = vmatpush1.bf16.msra.mxu0 0
    %3792 = vmatprep.subr.bf16.mxu0 0
    %3793 = vmatpush1.bf16.msra.mxu0 0
    %3794 = vmatprep.subr.bf16.mxu0 0
    %3795 = vmatpush1.bf16.msra.mxu0 0
    %3796 = vmatprep.mubr.bf16.mxu0 0
    %3797 = vmatmul.mubr.bf16.gmra.mrb[0].mxu0 %v3762
    %v3798 = vpop.f32.mrb[0].mxu0
    %v3799 = vadd.f32 %v3728, %v3798
    %v3800 = vpop.f32.mrb[0].mxu0
    %v3801 = vpop.f32.mrb[0].mxu0
    %v3802 = vpop.f32.mrb[0].mxu0
    %3803 = vdwg.mxu0
    %v3804 = vxor.u32 %v3799, 2147483648
    %v3805 = vmul.f32 %v3804, 1.442695
    %v3806 = vpow.pop %v3805
    %v3807 = vadd.f32 %v3806, 1.0
    %v3808 = vrcp.pop %v3807
    %v3809 = vmul.f32 1.0, %v3808
    %vm3810 = vcmask 25600
    %3811 = vst.msk [vmem:[#allocation40] sm:$0x3] %vm3810, %v3809
    %v3812 = vadd.f32 %v3058, %v3686
    %v3813 = vadd.f32 %v3059, %v3691
    %3814 = vst.msk [vmem:[#allocation41] sm:$0xf] %vm3037, %v3812
    %3815 = vst.msk [vmem:[#allocation41 + $0x4] sm:$0xf] %vm3037, %v3813
    // Predicated region
    $region170: #{structured_self_attention_forward.1} parent=1 // pred_check
      _
    $region171: #{structured_self_attention_forward.1} parent=1 // pred_check_branch
      %3817 = sbr.rel (0) target = $region173
    $region172: #{structured_self_attention_forward.1} parent=1 // pred_region
      %s3819 = ssub.s32 32, 32
      %3820 = vsyncadd [#allocation10], %s3819
      %s3822 = sshll.u32 [#allocation40], 4
      %s3823 = int_to_ptr.vmem [resolvable:$true] %s3822
      %3825 = dma.vmem_to_hbm [thread:$0]  %s3823, 32, %s22, [#allocation10]
    $region173: #{structured_self_attention_forward.1} parent=1 // pred_fallthru
      _
    // Predicated region
    $region174: #{structured_self_attention_forward.1} parent=1 // pred_check
      _
    $region175: #{structured_self_attention_forward.1} parent=1 // pred_check_branch
      %3827 = sbr.rel (0) target = $region177
    $region176: #{structured_self_attention_forward.1} parent=1 // pred_region
      %s3829 = ssub.s32 128, 128
      %3830 = vsyncadd [#allocation42], %s3829
      %s3831 = sshll.u32 [#allocation41], 4
      %s3832 = int_to_ptr.vmem [resolvable:$true] %s3831
      %3837 = dma.vmem_to_hbm [thread:$0]  %s3832, 128, %s23, [#allocation42], 64, 64, 4
    $region177: #{structured_self_attention_forward.1} parent=1 // pred_fallthru
      _
    // Predicated region
    $region178: #{structured_self_attention_forward.1} parent=1 // pred_check
      _
    $region179: #{structured_self_attention_forward.1} parent=1 // pred_check_branch
      %3839 = sbr.rel (0) target = $region181
    $region180: #{structured_self_attention_forward.1} parent=1 // pred_region
      %3840 = dma.done [#allocation10], 32
    $region181: #{structured_self_attention_forward.1} parent=1 // pred_fallthru
      _
    // Predicated region
    $region182: #{structured_self_attention_forward.1} parent=1 // pred_check
      _
    $region183: #{structured_self_attention_forward.1} parent=1 // pred_check_branch
      %3842 = sbr.rel (0) target = $region185
    $region184: #{structured_self_attention_forward.1} parent=1 // pred_region
      %3843 = dma.done [#allocation42], 128
    $region185: #{structured_self_attention_forward.1} parent=1 // pred_fallthru
      _
    %3844 = vsyncpa [#allocation9], 1
    %3845 = vsyncpa [#allocation12], 1
    %3846 = vsyncpa [#allocation15], 1
    %3847 = vsyncpa [#allocation18], 1
    %3848 = vsyncpa [#allocation21], 1
    %3849 = vsyncpa [#allocation24], 1
    %3850 = vsyncpa [#allocation27], 1
    %3851 = vsyncpa [#allocation30], 1
    %3852 = vsyncpa [#allocation33], 1
    %3853 = vsyncpa [#allocation36], 1
    %3854 = vsyncpa [#allocation39], 1
    %3855 = vsyncpa [#allocation10], 1
    %3856 = vsyncpa [#allocation42], 1

</llo_original>
